<compile_context>
chip_gen: v5e
topology: v5e:2x2
jax: 0.10.0
libtpu: 0.0.40
codegen_flags: <defaults>
</compile_context>

<pallas_src>
import functools
import math

import jax
import jax.numpy as jnp
from jax.experimental import pallas as pl
from jax.experimental.pallas import tpu as pltpu


_MXU_DTYPE = jnp.bfloat16   # MXU operand dtype (accumulation stays f32)


# ----------------------------------------------------------------------------- device-aware tiling

def _device_kind():
    try:
        return jax.devices()[0].device_kind.lower()
    except Exception:  # pragma: no cover - defensive
        return ""


def _tile_targets():
    """(tm, tn, tk) targets for the tiled linears, per TPU generation."""
    kind = _device_kind()
    if "v7" in kind:
        # 64 MiB physical VMEM per TC -> keep double-buffered footprint < ~20 MiB
        return 512, 1024, 512
    # v5e / v6e have 128 MiB VMEM: big tiles amortize the ~0.35us grid-step
    # overhead and cut weight re-streaming (weights are re-fetched once per M tile).
    return 1024, 2048, 1024


def _kv_tile_target():
    return 512 if "v7" in _device_kind() else 1024


def _vmem_limit():
    if "v7" in _device_kind():
        return 44 * 1024 * 1024      # headroom under 64 MiB physical
    return 100 * 1024 * 1024         # v5e / v6e: 128 MiB physical


def _cdiv(a, b):
    return -(-a // b)


def _round_up(a, m):
    return _cdiv(a, m) * m


def _tile_and_pad(dim, target, align):
    """(tile, padded_dim): tile == dim (full-dim block) when it fits the target,
    otherwise an `align`-aligned tile and the padded extent it evenly divides."""
    if dim <= target:
        return dim, dim
    nblk = _cdiv(dim, target)
    tile = _round_up(_cdiv(dim, nblk), align)
    return tile, tile * nblk


# ----------------------------------------------------------------------------- in-kernel math

def _erf(x):
    # Abramowitz & Stegun 7.1.26 rational approximation (|err| < 1.5e-7).
    # Exact (non-approx) reciprocal here to avoid stacking approximations.
    a1, a2, a3, a4, a5 = 0.254829592, -0.284496736, 1.421413741, -1.453152027, 1.061405429
    p = 0.3275911
    z = jnp.abs(x)
    t = 1.0 / (1.0 + p * z)
    poly = ((((a5 * t + a4) * t + a3) * t + a2) * t + a1) * t
    y = 1.0 - poly * jnp.exp(-z * z)
    return jnp.where(x >= 0.0, y, -y)


def _gelu_exact(x):
    # matches torch.nn.GELU() (erf-based, not tanh approximation)
    return 0.5 * x * (1.0 + _erf(x * (1.0 / math.sqrt(2.0))))


# ----------------------------------------------------------------------------- fused linear kernel

def _fused_matmul_kernel(*refs, ln, act, residual, cdtype):
    """[optional LayerNorm (cached per M tile)] -> bf16 matmul (K-tiled, f32
    accum) -> +bias [-> GELU] [-> +residual] -> cast.

    Ref order: x, [ln_g, ln_b], w, bias, [res], out, acc_scratch, [ln_scratch]."""
    idx = 0
    x_ref = refs[idx]; idx += 1
    if ln:
        g_ref = refs[idx]; bln_ref = refs[idx + 1]; idx += 2
    w_ref = refs[idx]; idx += 1
    b_ref = refs[idx]; idx += 1
    r_ref = None
    if residual:
        r_ref = refs[idx]; idx += 1
    o_ref = refs[idx]; idx += 1
    acc_ref = refs[idx]; idx += 1
    xn_ref = refs[idx] if ln else None

    kstep = pl.program_id(2)
    nk = pl.num_programs(2)

    @pl.when(kstep == 0)
    def _init():
        acc_ref[...] = jnp.zeros_like(acc_ref)

    if ln:
        # LN only fused when tk == K (whole feature row resident).  Normalize once
        # per M tile (first N step) into a VMEM scratch, reuse for all N tiles.
        @pl.when(pl.program_id(1) == 0)
        def _layernorm():
            xf = x_ref[...].astype(jnp.float32)
            mean = jnp.mean(xf, axis=-1, keepdims=True)
            xc = xf - mean
            var = jnp.mean(xc * xc, axis=-1, keepdims=True)
            xn = xc * jax.lax.rsqrt(var + 1e-5)
            xn = xn * g_ref[...].astype(jnp.float32) + bln_ref[...].astype(jnp.float32)
            xn_ref[...] = xn.astype(xn_ref.dtype)
        x = xn_ref[...]
    else:
        x = x_ref[...].astype(cdtype)

    acc_ref[...] += jnp.dot(x, w_ref[...], preferred_element_type=jnp.float32)

    @pl.when(kstep == nk - 1)
    def _finalize():
        y = acc_ref[...] + b_ref[...].astype(jnp.float32)
        if act == "gelu":
            y = _gelu_exact(y)
        if residual:
            y = y + r_ref[...].astype(jnp.float32)
        o_ref[...] = y.astype(o_ref.dtype)


def fused_linear(x2d, w, b, *, ln=None, activation=None, residual=None, out_dtype=None):
    """y = [LN](x) @ w + b [, GELU] [, + residual].  x2d: (M, K), w: (K, N), b: (N,)."""
    M, K = x2d.shape
    N = w.shape[1]
    if out_dtype is None:
        out_dtype = residual.dtype if residual is not None else x2d.dtype

    tm_t, tn_t, tk_t = _tile_targets()
    tm, Mp = _tile_and_pad(M, tm_t, 16)      # 16-row align for bf16 sublane packing
    tn, Np = _tile_and_pad(N, tn_t, 128)
    if ln is not None:
        tk, Kp = K, K                        # LN needs the full feature row
    else:
        tk, Kp = _tile_and_pad(K, tk_t, 128)

    # Zero-pad to the tiled extents; the pad tail is sliced off below.
    # TODO(synk): pre-pad the constant weights/biases once at load time so the
    # pad copy never hits HBM inside the forward pass.
    xp = x2d if (Mp == M and Kp == K) else jnp.pad(x2d, ((0, Mp - M), (0, Kp - K)))
    wp = w if (Kp == K and Np == N) else jnp.pad(w, ((0, Kp - K), (0, Np - N)))
    bp = (b if Np == N else jnp.pad(b, (0, Np - N))).reshape(1, Np)
    rp = None
    if residual is not None:
        rp = residual if (Mp == M and Np == N) else jnp.pad(
            residual, ((0, Mp - M), (0, Np - N)))

    in_specs = [pl.BlockSpec((tm, tk), lambda i, j, kk: (i, kk))]
    args = [xp]
    if ln is not None:
        g, bln = ln
        in_specs += [pl.BlockSpec((1, tk), lambda i, j, kk: (0, kk)),
                     pl.BlockSpec((1, tk), lambda i, j, kk: (0, kk))]
        args += [g.reshape(1, K), bln.reshape(1, K)]
    in_specs += [pl.BlockSpec((tk, tn), lambda i, j, kk: (kk, j)),
                 pl.BlockSpec((1, tn), lambda i, j, kk: (0, j))]
    args += [wp, bp]
    if residual is not None:
        # TODO(synk): pl.Buffered(1) on this spec would reclaim one (tm, tn) f32
        # buffer on v7x (residual is only read at finalize); kept at the default
        # double-buffering for lowering compatibility.
        in_specs.append(pl.BlockSpec((tm, tn), lambda i, j, kk: (i, j)))
        args.append(rp)

    scratch = [pltpu.VMEM((tm, tn), jnp.float32)]
    if ln is not None:
        scratch.append(pltpu.VMEM((tm, Kp), _MXU_DTYPE))

    flops = 2 * M * N * K
    transcendentals = M * N if activation == "gelu" else 0
    bytes_accessed = (M * K * x2d.dtype.itemsize + K * N * w.dtype.itemsize
                      + N * b.dtype.itemsize + M * N * jnp.dtype(out_dtype).itemsize)
    if ln is not None:
        bytes_accessed += 2 * K * 4
    if residual is not None:
        bytes_accessed += M * N * residual.dtype.itemsize

    kernel = functools.partial(_fused_matmul_kernel, ln=ln is not None,
                               act=activation, residual=residual is not None,
                               cdtype=_MXU_DTYPE)
    out = pl.pallas_call(
        kernel,
        out_shape=jax.ShapeDtypeStruct((Mp, Np), out_dtype),
        grid=(Mp // tm, Np // tn, Kp // tk),
        in_specs=in_specs,
        out_specs=pl.BlockSpec((tm, tn), lambda i, j, kk: (i, j)),
        scratch_shapes=scratch,
        compiler_params=pltpu.CompilerParams(
            # N axis must stay on one core when the LN scratch is reused across it
            dimension_semantics=("parallel",
                                 "arbitrary" if ln is not None else "parallel",
                                 "arbitrary"),
            vmem_limit_bytes=_vmem_limit()),
        cost_estimate=pl.CostEstimate(flops=flops, transcendentals=transcendentals,
                                      bytes_accessed=bytes_accessed),
    )(*args)
    if Mp != M or Np != N:
        out = out[:M, :N]
    return out


# ----------------------------------------------------------------------------- attention kernel

def _attention_kernel(*refs, heads, dh, q_col, k_col, v_col, scale, causal,
                      has_mask, kv_tile, kv_valid, kv_padded):
    """One (batch, head-group) pair per program; flash-style online softmax over
    the KV grid axis.  Q is pre-scaled; causal / pad masks built in-kernel."""
    if has_mask:
        q_ref, k_ref, v_ref, m_ref, o_ref, m_sc, l_sc, acc_sc = refs
    else:
        q_ref, k_ref, v_ref, o_ref, m_sc, l_sc, acc_sc = refs

    kv_i = pl.program_id(2)
    n_kv = pl.num_programs(2)

    @pl.when(kv_i == 0)
    def _init():
        m_sc[...] = jnp.full_like(m_sc, -1e30)
        l_sc[...] = jnp.zeros_like(l_sc)
        acc_sc[...] = jnp.zeros_like(acc_sc)

    qb = q_ref[0]            # (Tq, Wq)   native (bf16) dtype -> MXU
    kb = k_ref[0]            # (tk, Wk)
    vb = v_ref[0]            # (tk, Wv)
    tq = qb.shape[0]
    tk = kb.shape[0]

    # additive score bias shared by every head in this block
    bias = None
    if has_mask:
        bias = m_ref[0].astype(jnp.float32)                                 # (1, tk)
    if kv_padded > kv_valid:
        kcols = kv_i * kv_tile + jax.lax.broadcasted_iota(jnp.int32, (1, tk), 1)
        pad_b = jnp.where(kcols < kv_valid, 0.0, -1e9)
        bias = pad_b if bias is None else bias + pad_b
    if causal:
        # TODO(synk): kv_cache offset (offset > 0) unsupported; assumes query row
        # i attends to keys 0..i (Tq == Tk, offset == 0).
        rows = jax.lax.broadcasted_iota(jnp.int32, (tq, tk), 0)
        cols = kv_i * kv_tile + jax.lax.broadcasted_iota(jnp.int32, (tq, tk), 1)
        cb = jnp.where(rows >= cols, 0.0, -1e9)
        bias = cb if bias is None else bias + cb

    for h in range(heads):                    # static unroll over heads in the block
        qh = qb[:, q_col + h * dh:q_col + (h + 1) * dh] * scale   # scale Q, not S
        kh = kb[:, k_col + h * dh:k_col + (h + 1) * dh]
        vh = vb[:, v_col + h * dh:v_col + (h + 1) * dh]
        s = jax.lax.dot_general(qh, kh, (((1,), (1,)), ((), ())),
                                preferred_element_type=jnp.float32)       # (tq, tk)
        if bias is not None:
            s = s + bias
        m_prev = m_sc[h]                                                  # (tq, 1)
        m_new = jnp.maximum(m_prev, jnp.max(s, axis=-1, keepdims=True))
        alpha = jnp.exp(m_prev - m_new)
        p = jnp.exp(s - m_new)
        l_sc[h] = alpha * l_sc[h] + jnp.sum(p, axis=-1, keepdims=True)
        acc_sc[:, h * dh:(h + 1) * dh] = (
            alpha * acc_sc[:, h * dh:(h + 1) * dh]
            + jax.lax.dot_general(p.astype(vh.dtype), vh, (((1,), (0,)), ((), ())),
                                  preferred_element_type=jnp.float32))
        m_sc[h] = m_new

    @pl.when(kv_i == n_kv - 1)
    def _finalize():
        cols_out = []
        for h in range(heads):
            cols_out.append(acc_sc[:, h * dh:(h + 1) * dh] * (1.0 / l_sc[h]))
        o_ref[0] = jnp.concatenate(cols_out, axis=-1).astype(o_ref.dtype)


def _heads_per_block(n_head, dh):
    """Smallest head group whose width is lane-dense (multiple of 128 lanes).
    Returns 0 when no such grouping exists (tiny demo shapes -> full-width path)."""
    if dh % 128 == 0:
        return 1
    for h in range(1, n_head + 1):
        if n_head % h == 0 and (h * dh) % 128 == 0:
            return h
    return 0


def attention(q_arr, kv_arr, *, n_head, d_model, q_col, k_col, v_col,
              key_mask=None, causal=False):
    """Multi-head attention reading Q/K/V straight out of fused projection
    outputs (no head split/merge transposes) and writing a (B, Tq, D) output.

    q_arr : (B, Tq, Wq)  with query columns at [q_col, q_col + D)
    kv_arr: (B, Tk, Wkv) with key / value columns at [k_col, ...) / [v_col, ...)
    key_mask: optional (B, Tk) additive float mask (self-attention only)."""
    B, Tq, Wq = q_arr.shape
    _, Tk, Wkv = kv_arr.shape
    dh = d_model // n_head
    scale = 1.0 / math.sqrt(dh)          # SDPA default scaling
    out_dtype = q_arr.dtype

    # flash-style KV tiling (online softmax); pad Tk to the tile, mask in-kernel.
    tkv, Tk_pad = _tile_and_pad(Tk, _kv_tile_target(), 128)
    if Tk_pad != Tk:
        kv_arr = jnp.pad(kv_arr, ((0, 0), (0, Tk_pad - Tk), (0, 0)))
    n_kv = Tk_pad // tkv

    km = None
    if key_mask is not None:
        km = key_mask.reshape(B, 1, Tk).astype(jnp.float32)
        if Tk_pad != Tk:
            km = jnp.pad(km, ((0, 0), (0, 0), (0, Tk_pad - Tk)))

    hpb = _heads_per_block(n_head, dh)
    if hpb:
        # lane-dense path: one program handles `hpb` adjacent heads (width >= 128)
        n_hg = n_head // hpb
        w_blk = hpb * dh
        q_spec = pl.BlockSpec((1, Tq, w_blk),
                              lambda b, hg, kv, base=q_col // w_blk: (b, 0, base + hg))
        k_spec = pl.BlockSpec((1, tkv, w_blk),
                              lambda b, hg, kv, base=k_col // w_blk: (b, kv, base + hg))
        v_spec = pl.BlockSpec((1, tkv, w_blk),
                              lambda b, hg, kv, base=v_col // w_blk: (b, kv, base + hg))
        heads_blk, qc, kc, vc = hpb, 0, 0, 0
    else:
        # tiny-shape fallback: full-width blocks, column offsets resolved in-kernel
        n_hg = 1
        w_blk = d_model
        q_spec = pl.BlockSpec((1, Tq, Wq), lambda b, hg, kv: (b, 0, 0))
        k_spec = pl.BlockSpec((1, tkv, Wkv), lambda b, hg, kv: (b, kv, 0))
        v_spec = pl.BlockSpec((1, tkv, Wkv), lambda b, hg, kv: (b, kv, 0))
        heads_blk, qc, kc, vc = n_head, q_col, k_col, v_col

    in_specs = [q_spec, k_spec, v_spec]
    args = [q_arr, kv_arr, kv_arr]
    if km is not None:
        in_specs.append(pl.BlockSpec((1, 1, tkv), lambda b, hg, kv: (b, 0, kv)))
        args.append(km)

    kernel = functools.partial(
        _attention_kernel, heads=heads_blk, dh=dh, q_col=qc, k_col=kc, v_col=vc,
        scale=scale, causal=causal, has_mask=km is not None,
        kv_tile=tkv, kv_valid=Tk, kv_padded=Tk_pad)

    return pl.pallas_call(
        kernel,
        out_shape=jax.ShapeDtypeStruct((B, Tq, d_model), out_dtype),
        grid=(B, n_hg, n_kv),
        in_specs=in_specs,
        out_specs=pl.BlockSpec((1, Tq, w_blk), lambda b, hg, kv: (b, 0, hg)),
        scratch_shapes=[pltpu.VMEM((heads_blk, Tq, 1), jnp.float32),
                        pltpu.VMEM((heads_blk, Tq, 1), jnp.float32),
                        pltpu.VMEM((Tq, heads_blk * dh), jnp.float32)],
        compiler_params=pltpu.CompilerParams(
            dimension_semantics=("parallel", "parallel", "arbitrary"),
            vmem_limit_bytes=_vmem_limit()),
    )(*args)


# ----------------------------------------------------------------------------- decoder blocks

def residual_block(x, xa, p, n_head, attn_mask):
    B, T, D = x.shape
    S = xa.shape[1]
    x2 = x.reshape(B * T, D)           # f32 residual stream
    xa2 = xa.reshape(B * S, D)

    # --- self-attention: LN + fused QKV; attention reads columns of qkv directly.
    qkv = fused_linear(x2, p["attn"]["w_qkv"], p["attn"]["b_qkv"],
                       ln=(p["attn_ln_g"], p["attn_ln_b"]),
                       out_dtype=_MXU_DTYPE).reshape(B, T, 3 * D)
    wv = attention(qkv, qkv, n_head=n_head, d_model=D,
                   q_col=0, k_col=D, v_col=2 * D,
                   key_mask=attn_mask, causal=(T > 1))
    x2 = fused_linear(wv.reshape(B * T, D), p["attn"]["wo"], p["attn"]["bo"],
                      residual=x2)

    # --- cross-attention: LN + Q fused; K/V fused over the audio features
    #     (no mask, not causal); out-proj + residual fused.
    q = fused_linear(x2, p["cross"]["wq"], p["cross"]["bq"],
                     ln=(p["cross_ln_g"], p["cross_ln_b"]),
                     out_dtype=_MXU_DTYPE).reshape(B, T, D)
    kv = fused_linear(xa2, p["cross"]["w_kv"], p["cross"]["b_kv"],
                      out_dtype=_MXU_DTYPE).reshape(B, S, 2 * D)
    wv = attention(q, kv, n_head=n_head, d_model=D,
                   q_col=0, k_col=0, v_col=D, key_mask=None, causal=False)
    x2 = fused_linear(wv.reshape(B * T, D), p["cross"]["wo"], p["cross"]["bo"],
                      residual=x2)

    # --- MLP: LN + up-proj + exact GELU fused; down-proj + residual fused.
    h1 = fused_linear(x2, p["w1"], p["b1"],
                      ln=(p["mlp_ln_g"], p["mlp_ln_b"]), activation="gelu",
                      out_dtype=_MXU_DTYPE)
    x2 = fused_linear(h1, p["w2"], p["b2"], residual=x2)
    return x2.reshape(B, T, D)


def text_decoder_forward(tokens, attn_mask, xa, params, n_head):
    """tokens: (B, T) int32; attn_mask: (B, T) additive float key mask;
    xa: (B, S, D) audio features.  Returns logits (B, T, n_vocab)."""
    B, T = tokens.shape
    D = params["tok_emb"].shape[1]

    # embedding gather + positional embedding (XLA glue; offset = 0, no kv_cache)
    # TODO(synk): kv_cache incremental-decode path (offset > 0) not implemented.
    x = params["tok_emb"][tokens] + params["pos_emb"][:T]
    x = x.astype(xa.dtype)

    for p in params["blocks"]:
        x = residual_block(x, xa, p, n_head, attn_mask)

    # final LayerNorm fused into the (padded, tiled) vocab projection
    logits = fused_linear(x.reshape(B * T, D), params["w_out"], params["b_out"],
                          ln=(params["ln_g"], params["ln_b"]))
    return logits.reshape(B, T, -1)


# ----------------------------------------------------------------------------- params

def init_params(key, n_vocab, n_ctx, n_state, n_layer):
    n_mlp = 4 * n_state
    keys = iter(jax.random.split(key, 16 + 32 * n_layer))
    wdt = _MXU_DTYPE   # matmul weights stored bf16 (halves weight HBM traffic)

    def w(shape, scale=0.02):
        return scale * jax.random.normal(next(keys), shape, jnp.float32)

    def wm(shape):
        return w(shape).astype(wdt)

    def ln():
        return 1.0 + w((n_state,)), w((n_state,))

    zeros_d = jnp.zeros((n_state,), jnp.float32)

    def self_attn_params():
        wq, bq = w((n_state, n_state)), w((n_state,))
        wk = w((n_state, n_state))                      # key Linear has no bias
        wv, bv = w((n_state, n_state)), w((n_state,))
        return {
            "w_qkv": jnp.concatenate([wq, wk, wv], axis=1).astype(wdt),  # (D, 3D)
            "b_qkv": jnp.concatenate([bq, zeros_d, bv]),   # zero slot = no key bias
            "wo": wm((n_state, n_state)), "bo": w((n_state,)),
        }

    def cross_attn_params():
        wq, bq = w((n_state, n_state)), w((n_state,))
        wk = w((n_state, n_state))
        wv, bv = w((n_state, n_state)), w((n_state,))
        return {
            "wq": wq.astype(wdt), "bq": bq,
            "w_kv": jnp.concatenate([wk, wv], axis=1).astype(wdt),       # (D, 2D)
            "b_kv": jnp.concatenate([zeros_d, bv]),
            "wo": wm((n_state, n_state)), "bo": w((n_state,)),
        }

    blocks = []
    for _ in range(n_layer):
        attn_g, attn_b = ln()
        cross_g, cross_b = ln()
        mlp_g, mlp_b = ln()
        blocks.append({
            "attn": self_attn_params(), "attn_ln_g": attn_g, "attn_ln_b": attn_b,
            "cross": cross_attn_params(), "cross_ln_g": cross_g, "cross_ln_b": cross_b,
            "w1": wm((n_state, n_mlp)), "b1": w((n_mlp,)),
            "w2": wm((n_mlp, n_state)), "b2": w((n_state,)),
            "mlp_ln_g": mlp_g, "mlp_ln_b": mlp_b,
        })

    ln_g, ln_b = ln()
    return {
        "tok_emb": w((n_vocab, n_state)),
        "pos_emb": w((n_ctx, n_state)),
        "blocks": blocks,
        "ln_g": ln_g, "ln_b": ln_b,
        "w_out": wm((n_state, n_vocab)), "b_out": w((n_vocab,)),
    }


# ----------------------------------------------------------------------------- main

if __name__ == "__main__":
    # small config: n_vocab=64, n_ctx=16, n_state=32, n_head=4, n_layer=2
    n_vocab, n_ctx, n_state, n_head, n_layer = 64, 16, 32, 4, 2
    B, T, S = 2, 8, 16  # batch, text length, audio context

    key = jax.random.PRNGKey(0)
    k_par, k_tok, k_xa = jax.random.split(key, 3)

    params = init_params(k_par, n_vocab, n_ctx, n_state, n_layer)
    tokens = jax.random.randint(k_tok, (B, T), 0, n_vocab, dtype=jnp.int32)
    attn_mask = jnp.zeros((B, T), jnp.float32)           # additive key mask (0 = attend)
    xa = jax.random.normal(k_xa, (B, S, n_state), jnp.float32)

    fwd = jax.jit(text_decoder_forward, static_argnames=("n_head",))
    logits = fwd(tokens, attn_mask, xa, params, n_head=n_head)
    jax.block_until_ready(logits)
    assert logits.shape == (B, T, n_vocab) and logits.dtype == jnp.float32
    assert bool(jnp.all(jnp.isfinite(logits)))
    print("KERNEL_OK")
</pallas_src>

<mosaic_0001>
module attributes {stable_mosaic.version = 11 : i64} {
  func.func @_fused_matmul_kernel(%arg0: i32, %arg1: i32, %arg2: i32, %arg3: memref<16x32xf32, #tpu.memory_space<vmem>>, %arg4: memref<1x32xf32, #tpu.memory_space<vmem>>, %arg5: memref<1x32xf32, #tpu.memory_space<vmem>>, %arg6: memref<32x96xbf16, #tpu.memory_space<vmem>>, %arg7: memref<1x96xf32, #tpu.memory_space<vmem>>, %arg8: memref<16x96xbf16, #tpu.memory_space<vmem>>, %arg9: memref<16x96xf32, #tpu.memory_space<vmem>>, %arg10: memref<16x32xbf16, #tpu.memory_space<vmem>>) attributes {dimension_semantics = [#tpu.dimension_semantics<parallel>, #tpu.dimension_semantics<arbitrary>, #tpu.dimension_semantics<arbitrary>], iteration_bounds = array<i64: 1, 1, 1>, scalar_prefetch = 0 : i64, scratch_operands = 2 : i64, tpu.core_type = #tpu.core_type<tc>, window_params = [{transform_indices = @transform_0, window_bounds = array<i64: 16, 32>}, {transform_indices = @transform_1, window_bounds = array<i64: 1, 32>}, {transform_indices = @transform_2, window_bounds = array<i64: 1, 32>}, {transform_indices = @transform_3, window_bounds = array<i64: 32, 96>}, {transform_indices = @transform_4, window_bounds = array<i64: 1, 96>}, {transform_indices = @transform_5, window_bounds = array<i64: 16, 96>}]} {
    %c0_i32 = arith.constant 0 : i32
    %0 = arith.cmpi eq, %arg2, %c0_i32 : i32
    %1 = arith.extui %0 : i1 to i32
    %c0_i32_0 = arith.constant 0 : i32
    %2 = arith.cmpi ne, %1, %c0_i32_0 : i32
    scf.if %2 {
      %cst_12 = arith.constant 0.000000e+00 : f32
      %15 = vector.broadcast %cst_12 : f32 to vector<16x96xf32>
      %c0_13 = arith.constant 0 : index
      %c0_14 = arith.constant 0 : index
      %16 = vector.load %arg9[%c0_13, %c0_14] : memref<16x96xf32, #tpu.memory_space<vmem>>, vector<16x96xf32>
      tpu.vector_store %arg9[%c0_13, %c0_14], %15 {strides = array<i32>} : memref<16x96xf32, #tpu.memory_space<vmem>>, vector<16x96xf32>,
    } else {
    }
    %c0_i32_1 = arith.constant 0 : i32
    %3 = arith.cmpi eq, %arg1, %c0_i32_1 : i32
    %4 = arith.extui %3 : i1 to i32
    %c0_i32_2 = arith.constant 0 : i32
    %5 = arith.cmpi ne, %4, %c0_i32_2 : i32
    scf.if %5 {
      %c0_12 = arith.constant 0 : index
      %c0_13 = arith.constant 0 : index
      %15 = vector.load %arg3[%c0_12, %c0_13] : memref<16x32xf32, #tpu.memory_space<vmem>>, vector<16x32xf32>
      %cst_14 = arith.constant dense<0.000000e+00> : vector<16xf32>
      %16 = vector.multi_reduction <add>, %15, %cst_14 [1] : vector<16x32xf32> to vector<16xf32>
      %17 = vector.shape_cast %16 : vector<16xf32> to vector<16x1xf32>
      %cst_15 = arith.constant 3.200000e+01 : f32
      %18 = vector.broadcast %cst_15 : f32 to vector<16x1xf32>
      %19 = arith.divf %17, %18 : vector<16x1xf32>
      %20 = vector.broadcast %19 : vector<16x1xf32> to vector<16x32xf32>
      %21 = arith.subf %15, %20 : vector<16x32xf32>
      %22 = arith.mulf %21, %21 : vector<16x32xf32>
      %cst_16 = arith.constant dense<0.000000e+00> : vector<16xf32>
      %23 = vector.multi_reduction <add>, %22, %cst_16 [1] : vector<16x32xf32> to vector<16xf32>
      %24 = vector.shape_cast %23 : vector<16xf32> to vector<16x1xf32>
      %cst_17 = arith.constant 3.200000e+01 : f32
      %25 = vector.broadcast %cst_17 : f32 to vector<16x1xf32>
      %26 = arith.divf %24, %25 : vector<16x1xf32>
      %cst_18 = arith.constant 9.99999974E-6 : f32
      %27 = vector.broadcast %cst_18 : f32 to vector<16x1xf32>
      %28 = arith.addf %26, %27 : vector<16x1xf32>
      %29 = math.rsqrt %28 : vector<16x1xf32>
      %30 = vector.broadcast %29 : vector<16x1xf32> to vector<16x32xf32>
      %31 = arith.mulf %21, %30 : vector<16x32xf32>
      %c0_19 = arith.constant 0 : index
      %c0_20 = arith.constant 0 : index
      %32 = vector.load %arg4[%c0_19, %c0_20] : memref<1x32xf32, #tpu.memory_space<vmem>>, vector<1x32xf32>
      %33 = vector.broadcast %32 : vector<1x32xf32> to vector<16x32xf32>
      %34 = arith.mulf %31, %33 : vector<16x32xf32>
      %c0_21 = arith.constant 0 : index
      %c0_22 = arith.constant 0 : index
      %35 = vector.load %arg5[%c0_21, %c0_22] : memref<1x32xf32, #tpu.memory_space<vmem>>, vector<1x32xf32>
      %36 = vector.broadcast %35 : vector<1x32xf32> to vector<16x32xf32>
      %37 = arith.addf %34, %36 : vector<16x32xf32>
      %38 = arith.truncf %37 : vector<16x32xf32> to vector<16x32xbf16>
      %c0_23 = arith.constant 0 : index
      %c0_24 = arith.constant 0 : index
      %39 = vector.load %arg10[%c0_23, %c0_24] : memref<16x32xbf16, #tpu.memory_space<vmem>>, vector<16x32xbf16>
      tpu.vector_store %arg10[%c0_23, %c0_24], %38 {strides = array<i32>} : memref<16x32xbf16, #tpu.memory_space<vmem>>, vector<16x32xbf16>,
    } else {
    }
    %c0 = arith.constant 0 : index
    %c0_3 = arith.constant 0 : index
    %6 = vector.load %arg10[%c0, %c0_3] : memref<16x32xbf16, #tpu.memory_space<vmem>>, vector<16x32xbf16>
    %c0_4 = arith.constant 0 : index
    %c0_5 = arith.constant 0 : index
    %7 = vector.load %arg9[%c0_4, %c0_5] : memref<16x96xf32, #tpu.memory_space<vmem>>, vector<16x96xf32>
    %c0_6 = arith.constant 0 : index
    %c0_7 = arith.constant 0 : index
    %8 = vector.load %arg6[%c0_6, %c0_7] : memref<32x96xbf16, #tpu.memory_space<vmem>>, vector<32x96xbf16>
    %cst = arith.constant dense<0.000000e+00> : vector<16x96xf32>
    %9 = tpu.matmul %6, %8, %cst {dimension_numbers = #tpu.dot_dimension_numbers<[1], [0], [0], [1], [0, 0, 1, 1], [], []>} : vector<16x32xbf16>, vector<32x96xbf16>, vector<16x96xf32> -> vector<16x96xf32>
    %10 = arith.addf %7, %9 : vector<16x96xf32>
    %c0_8 = arith.constant 0 : index
    %c0_9 = arith.constant 0 : index
    %11 = vector.load %arg9[%c0_8, %c0_9] : memref<16x96xf32, #tpu.memory_space<vmem>>, vector<16x96xf32>
    tpu.vector_store %arg9[%c0_8, %c0_9], %10 {strides = array<i32>} : memref<16x96xf32, #tpu.memory_space<vmem>>, vector<16x96xf32>,
    %c0_i32_10 = arith.constant 0 : i32
    %12 = arith.cmpi eq, %arg2, %c0_i32_10 : i32
    %13 = arith.extui %12 : i1 to i32
    %c0_i32_11 = arith.constant 0 : i32
    %14 = arith.cmpi ne, %13, %c0_i32_11 : i32
    scf.if %14 {
      %c0_12 = arith.constant 0 : index
      %c0_13 = arith.constant 0 : index
      %15 = vector.load %arg9[%c0_12, %c0_13] : memref<16x96xf32, #tpu.memory_space<vmem>>, vector<16x96xf32>
      %c0_14 = arith.constant 0 : index
      %c0_15 = arith.constant 0 : index
      %16 = vector.load %arg7[%c0_14, %c0_15] : memref<1x96xf32, #tpu.memory_space<vmem>>, vector<1x96xf32>
      %17 = vector.broadcast %16 : vector<1x96xf32> to vector<16x96xf32>
      %18 = arith.addf %15, %17 : vector<16x96xf32>
      %19 = arith.truncf %18 : vector<16x96xf32> to vector<16x96xbf16>
      %c0_16 = arith.constant 0 : index
      %c0_17 = arith.constant 0 : index
      %20 = vector.load %arg8[%c0_16, %c0_17] : memref<16x96xbf16, #tpu.memory_space<vmem>>, vector<16x96xbf16>
      tpu.vector_store %arg8[%c0_16, %c0_17], %19 {strides = array<i32>} : memref<16x96xbf16, #tpu.memory_space<vmem>>, vector<16x96xbf16>,
    } else {
    }
    return
  }
  func.func @transform_0(%arg0: i32, %arg1: i32, %arg2: i32) -> (i32, i32) {
    %c0_i32 = arith.constant 0 : i32
    return %arg0, %arg2 : i32, i32
  }
  func.func @transform_1(%arg0: i32, %arg1: i32, %arg2: i32) -> (i32, i32) {
    %c0_i32 = arith.constant 0 : i32
    %c0_i32_0 = arith.constant 0 : i32
    return %c0_i32, %arg2 : i32, i32
  }
  func.func @transform_2(%arg0: i32, %arg1: i32, %arg2: i32) -> (i32, i32) {
    %c0_i32 = arith.constant 0 : i32
    %c0_i32_0 = arith.constant 0 : i32
    return %c0_i32, %arg2 : i32, i32
  }
  func.func @transform_3(%arg0: i32, %arg1: i32, %arg2: i32) -> (i32, i32) {
    %c0_i32 = arith.constant 0 : i32
    return %arg2, %arg1 : i32, i32
  }
  func.func @transform_4(%arg0: i32, %arg1: i32, %arg2: i32) -> (i32, i32) {
    %c0_i32 = arith.constant 0 : i32
    %c0_i32_0 = arith.constant 0 : i32
    return %c0_i32, %arg1 : i32, i32
  }
  func.func @transform_5(%arg0: i32, %arg1: i32, %arg2: i32) -> (i32, i32) {
    %c0_i32 = arith.constant 0 : i32
    return %arg0, %arg1 : i32, i32
  }
}

module attributes {stable_mosaic.version = 11 : i64} {
  func.func @_fused_matmul_kernel(%arg0: i32, %arg1: i32, %arg2: i32, %arg3: memref<16x32xbf16, #tpu.memory_space<vmem>>, %arg4: memref<32x32xbf16, #tpu.memory_space<vmem>>, %arg5: memref<1x32xf32, #tpu.memory_space<vmem>>, %arg6: memref<16x32xf32, #tpu.memory_space<vmem>>, %arg7: memref<16x32xf32, #tpu.memory_space<vmem>>, %arg8: memref<16x32xf32, #tpu.memory_space<vmem>>) attributes {dimension_semantics = [#tpu.dimension_semantics<parallel>, #tpu.dimension_semantics<parallel>, #tpu.dimension_semantics<arbitrary>], iteration_bounds = array<i64: 1, 1, 1>, scalar_prefetch = 0 : i64, scratch_operands = 1 : i64, tpu.core_type = #tpu.core_type<tc>, window_params = [{transform_indices = @transform_0, window_bounds = array<i64: 16, 32>}, {transform_indices = @transform_1, window_bounds = array<i64: 32, 32>}, {transform_indices = @transform_2, window_bounds = array<i64: 1, 32>}, {transform_indices = @transform_3, window_bounds = array<i64: 16, 32>}, {transform_indices = @transform_4, window_bounds = array<i64: 16, 32>}]} {
    %c0_i32 = arith.constant 0 : i32
    %0 = arith.cmpi eq, %arg2, %c0_i32 : i32
    %1 = arith.extui %0 : i1 to i32
    %c0_i32_0 = arith.constant 0 : i32
    %2 = arith.cmpi ne, %1, %c0_i32_0 : i32
    scf.if %2 {
      %cst_10 = arith.constant 0.000000e+00 : f32
      %12 = vector.broadcast %cst_10 : f32 to vector<16x32xf32>
      %c0_11 = arith.constant 0 : index
      %c0_12 = arith.constant 0 : index
      %13 = vector.load %arg8[%c0_11, %c0_12] : memref<16x32xf32, #tpu.memory_space<vmem>>, vector<16x32xf32>
      tpu.vector_store %arg8[%c0_11, %c0_12], %12 {strides = array<i32>} : memref<16x32xf32, #tpu.memory_space<vmem>>, vector<16x32xf32>,
    } else {
    }
    %c0 = arith.constant 0 : index
    %c0_1 = arith.constant 0 : index
    %3 = vector.load %arg3[%c0, %c0_1] : memref<16x32xbf16, #tpu.memory_space<vmem>>, vector<16x32xbf16>
    %c0_2 = arith.constant 0 : index
    %c0_3 = arith.constant 0 : index
    %4 = vector.load %arg8[%c0_2, %c0_3] : memref<16x32xf32, #tpu.memory_space<vmem>>, vector<16x32xf32>
    %c0_4 = arith.constant 0 : index
    %c0_5 = arith.constant 0 : index
    %5 = vector.load %arg4[%c0_4, %c0_5] : memref<32x32xbf16, #tpu.memory_space<vmem>>, vector<32x32xbf16>
    %cst = arith.constant dense<0.000000e+00> : vector<16x32xf32>
    %6 = tpu.matmul %3, %5, %cst {dimension_numbers = #tpu.dot_dimension_numbers<[1], [0], [0], [1], [0, 0, 1, 1], [], []>} : vector<16x32xbf16>, vector<32x32xbf16>, vector<16x32xf32> -> vector<16x32xf32>
    %7 = arith.addf %4, %6 : vector<16x32xf32>
    %c0_6 = arith.constant 0 : index
    %c0_7 = arith.constant 0 : index
    %8 = vector.load %arg8[%c0_6, %c0_7] : memref<16x32xf32, #tpu.memory_space<vmem>>, vector<16x32xf32>
    tpu.vector_store %arg8[%c0_6, %c0_7], %7 {strides = array<i32>} : memref<16x32xf32, #tpu.memory_space<vmem>>, vector<16x32xf32>,
    %c0_i32_8 = arith.constant 0 : i32
    %9 = arith.cmpi eq, %arg2, %c0_i32_8 : i32
    %10 = arith.extui %9 : i1 to i32
    %c0_i32_9 = arith.constant 0 : i32
    %11 = arith.cmpi ne, %10, %c0_i32_9 : i32
    scf.if %11 {
      %c0_10 = arith.constant 0 : index
      %c0_11 = arith.constant 0 : index
      %12 = vector.load %arg8[%c0_10, %c0_11] : memref<16x32xf32, #tpu.memory_space<vmem>>, vector<16x32xf32>
      %c0_12 = arith.constant 0 : index
      %c0_13 = arith.constant 0 : index
      %13 = vector.load %arg5[%c0_12, %c0_13] : memref<1x32xf32, #tpu.memory_space<vmem>>, vector<1x32xf32>
      %14 = vector.broadcast %13 : vector<1x32xf32> to vector<16x32xf32>
      %15 = arith.addf %12, %14 : vector<16x32xf32>
      %c0_14 = arith.constant 0 : index
      %c0_15 = arith.constant 0 : index
      %16 = vector.load %arg6[%c0_14, %c0_15] : memref<16x32xf32, #tpu.memory_space<vmem>>, vector<16x32xf32>
      %17 = arith.addf %15, %16 : vector<16x32xf32>
      %c0_16 = arith.constant 0 : index
      %c0_17 = arith.constant 0 : index
      %18 = vector.load %arg7[%c0_16, %c0_17] : memref<16x32xf32, #tpu.memory_space<vmem>>, vector<16x32xf32>
      tpu.vector_store %arg7[%c0_16, %c0_17], %17 {strides = array<i32>} : memref<16x32xf32, #tpu.memory_space<vmem>>, vector<16x32xf32>,
    } else {
    }
    return
  }
  func.func @transform_0(%arg0: i32, %arg1: i32, %arg2: i32) -> (i32, i32) {
    %c0_i32 = arith.constant 0 : i32
    return %arg0, %arg2 : i32, i32
  }
  func.func @transform_1(%arg0: i32, %arg1: i32, %arg2: i32) -> (i32, i32) {
    %c0_i32 = arith.constant 0 : i32
    return %arg2, %arg1 : i32, i32
  }
  func.func @transform_2(%arg0: i32, %arg1: i32, %arg2: i32) -> (i32, i32) {
    %c0_i32 = arith.constant 0 : i32
    %c0_i32_0 = arith.constant 0 : i32
    return %c0_i32, %arg1 : i32, i32
  }
  func.func @transform_3(%arg0: i32, %arg1: i32, %arg2: i32) -> (i32, i32) {
    %c0_i32 = arith.constant 0 : i32
    return %arg0, %arg1 : i32, i32
  }
  func.func @transform_4(%arg0: i32, %arg1: i32, %arg2: i32) -> (i32, i32) {
    %c0_i32 = arith.constant 0 : i32
    return %arg0, %arg1 : i32, i32
  }
}

module attributes {stable_mosaic.version = 11 : i64} {
  func.func @_attention_kernel(%arg0: i32, %arg1: i32, %arg2: i32, %arg3: memref<1x8x96xbf16, #tpu.memory_space<vmem>>, %arg4: memref<1x8x96xbf16, #tpu.memory_space<vmem>>, %arg5: memref<1x8x96xbf16, #tpu.memory_space<vmem>>, %arg6: memref<1x1x8xf32, #tpu.memory_space<vmem>>, %arg7: memref<1x8x32xbf16, #tpu.memory_space<vmem>>, %arg8: memref<4x8x1xf32, #tpu.memory_space<vmem>>, %arg9: memref<4x8x1xf32, #tpu.memory_space<vmem>>, %arg10: memref<8x32xf32, #tpu.memory_space<vmem>>) attributes {dimension_semantics = [#tpu.dimension_semantics<parallel>, #tpu.dimension_semantics<parallel>, #tpu.dimension_semantics<arbitrary>], iteration_bounds = array<i64: 2, 1, 1>, scalar_prefetch = 0 : i64, scratch_operands = 3 : i64, tpu.core_type = #tpu.core_type<tc>, window_params = [{transform_indices = @transform_0, window_bounds = array<i64: 1, 8, 96>}, {transform_indices = @transform_1, window_bounds = array<i64: 1, 8, 96>}, {transform_indices = @transform_2, window_bounds = array<i64: 1, 8, 96>}, {transform_indices = @transform_3, window_bounds = array<i64: 1, 1, 8>}, {transform_indices = @transform_4, window_bounds = array<i64: 1, 8, 32>}]} {
    %c0_i32 = arith.constant 0 : i32
    %0 = arith.cmpi eq, %arg2, %c0_i32 : i32
    %1 = arith.extui %0 : i1 to i32
    %c0_i32_0 = arith.constant 0 : i32
    %2 = arith.cmpi ne, %1, %c0_i32_0 : i32
    scf.if %2 {
      %cst_93 = arith.constant -1.000000e+30 : f32
      %169 = vector.broadcast %cst_93 : f32 to vector<4x8x1xf32>
      %c0_94 = arith.constant 0 : index
      %c0_95 = arith.constant 0 : index
      %c0_96 = arith.constant 0 : index
      %170 = vector.load %arg8[%c0_94, %c0_95, %c0_96] : memref<4x8x1xf32, #tpu.memory_space<vmem>>, vector<4x8x1xf32>
      tpu.vector_store %arg8[%c0_94, %c0_95, %c0_96], %169 {strides = array<i32>} : memref<4x8x1xf32, #tpu.memory_space<vmem>>, vector<4x8x1xf32>,
      %cst_97 = arith.constant 0.000000e+00 : f32
      %171 = vector.broadcast %cst_97 : f32 to vector<4x8x1xf32>
      %c0_98 = arith.constant 0 : index
      %c0_99 = arith.constant 0 : index
      %c0_100 = arith.constant 0 : index
      %172 = vector.load %arg9[%c0_98, %c0_99, %c0_100] : memref<4x8x1xf32, #tpu.memory_space<vmem>>, vector<4x8x1xf32>
      tpu.vector_store %arg9[%c0_98, %c0_99, %c0_100], %171 {strides = array<i32>} : memref<4x8x1xf32, #tpu.memory_space<vmem>>, vector<4x8x1xf32>,
      %cst_101 = arith.constant 0.000000e+00 : f32
      %173 = vector.broadcast %cst_101 : f32 to vector<8x32xf32>
      %c0_102 = arith.constant 0 : index
      %c0_103 = arith.constant 0 : index
      %174 = vector.load %arg10[%c0_102, %c0_103] : memref<8x32xf32, #tpu.memory_space<vmem>>, vector<8x32xf32>
      tpu.vector_store %arg10[%c0_102, %c0_103], %173 {strides = array<i32>} : memref<8x32xf32, #tpu.memory_space<vmem>>, vector<8x32xf32>,
    } else {
    }
    %c0 = arith.constant 0 : index
    %c0_1 = arith.constant 0 : index
    %c0_2 = arith.constant 0 : index
    %3 = vector.load %arg3[%c0, %c0_1, %c0_2] : memref<1x8x96xbf16, #tpu.memory_space<vmem>>, vector<1x8x96xbf16>
    %4 = vector.shape_cast %3 : vector<1x8x96xbf16> to vector<8x96xbf16>
    %c0_3 = arith.constant 0 : index
    %c0_4 = arith.constant 0 : index
    %c0_5 = arith.constant 0 : index
    %5 = vector.load %arg4[%c0_3, %c0_4, %c0_5] : memref<1x8x96xbf16, #tpu.memory_space<vmem>>, vector<1x8x96xbf16>
    %6 = vector.shape_cast %5 : vector<1x8x96xbf16> to vector<8x96xbf16>
    %c0_6 = arith.constant 0 : index
    %c0_7 = arith.constant 0 : index
    %c0_8 = arith.constant 0 : index
    %7 = vector.load %arg5[%c0_6, %c0_7, %c0_8] : memref<1x8x96xbf16, #tpu.memory_space<vmem>>, vector<1x8x96xbf16>
    %8 = vector.shape_cast %7 : vector<1x8x96xbf16> to vector<8x96xbf16>
    %c0_9 = arith.constant 0 : index
    %c0_10 = arith.constant 0 : index
    %c0_11 = arith.constant 0 : index
    %9 = vector.load %arg6[%c0_9, %c0_10, %c0_11] : memref<1x1x8xf32, #tpu.memory_space<vmem>>, vector<1x1x8xf32>
    %10 = vector.shape_cast %9 : vector<1x1x8xf32> to vector<1x8xf32>
    %11 = tpu.iota {dimensions = array<i32: 0>} : vector<8x8xi32>
    %c8_i32 = arith.constant 8 : i32
    %12 = arith.muli %arg2, %c8_i32 : i32
    %13 = tpu.iota {dimensions = array<i32: 1>} : vector<8x8xi32>
    %14 = vector.broadcast %12 : i32 to vector<8x8xi32>
    %15 = arith.addi %14, %13 : vector<8x8xi32>
    %16 = arith.cmpi sge, %11, %15 : vector<8x8xi32>
    %cst = arith.constant 0.000000e+00 : f32
    %cst_12 = arith.constant -1.000000e+09 : f32
    %17 = vector.broadcast %cst : f32 to vector<8x8xf32>
    %18 = vector.broadcast %cst_12 : f32 to vector<8x8xf32>
    %19 = arith.select %16, %17, %18 : vector<8x8xi1>, vector<8x8xf32>
    %20 = vector.broadcast %10 : vector<1x8xf32> to vector<8x8xf32>
    %21 = arith.addf %20, %19 : vector<8x8xf32>
    %22 = vector.extract_strided_slice %4 {offsets = [0, 0], sizes = [8, 8], strides = [1, 1]} : vector<8x96xbf16> to vector<8x8xbf16>
    %cst_13 = arith.constant 3.535160e-01 : bf16
    %23 = vector.broadcast %cst_13 : bf16 to vector<8x8xbf16>
    %24 = arith.mulf %22, %23 : vector<8x8xbf16>
    %25 = vector.extract_strided_slice %6 {offsets = [0, 32], sizes = [8, 8], strides = [1, 1]} : vector<8x96xbf16> to vector<8x8xbf16>
    %26 = vector.extract_strided_slice %8 {offsets = [0, 64], sizes = [8, 8], strides = [1, 1]} : vector<8x96xbf16> to vector<8x8xbf16>
    %cst_14 = arith.constant dense<0.000000e+00> : vector<8x8xf32>
    %27 = tpu.matmul %24, %25, %cst_14 {dimension_numbers = #tpu.dot_dimension_numbers<[1], [1], [0], [0], [0, 0, 1, 0], [], []>} : vector<8x8xbf16>, vector<8x8xbf16>, vector<8x8xf32> -> vector<8x8xf32>
    %28 = arith.addf %27, %21 : vector<8x8xf32>
    %c0_15 = arith.constant 0 : index
    %c0_16 = arith.constant 0 : index
    %c0_17 = arith.constant 0 : index
    %29 = vector.load %arg8[%c0_15, %c0_16, %c0_17] : memref<4x8x1xf32, #tpu.memory_space<vmem>>, vector<1x8x1xf32>
    %30 = vector.shape_cast %29 : vector<1x8x1xf32> to vector<8x1xf32>
    %cst_18 = arith.constant dense<0xFF800000> : vector<8xf32>
    %31 = vector.multi_reduction <maximumf>, %28, %cst_18 [1] : vector<8x8xf32> to vector<8xf32>
    %32 = vector.shape_cast %31 : vector<8xf32> to vector<8x1xf32>
    %33 = arith.maximumf %30, %32 : vector<8x1xf32>
    %34 = arith.subf %30, %33 : vector<8x1xf32>
    %35 = math.exp %34 : vector<8x1xf32>
    %36 = vector.broadcast %33 : vector<8x1xf32> to vector<8x8xf32>
    %37 = arith.subf %28, %36 : vector<8x8xf32>
    %38 = math.exp %37 : vector<8x8xf32>
    %c0_19 = arith.constant 0 : index
    %c0_20 = arith.constant 0 : index
    %c0_21 = arith.constant 0 : index
    %39 = vector.load %arg9[%c0_19, %c0_20, %c0_21] : memref<4x8x1xf32, #tpu.memory_space<vmem>>, vector<1x8x1xf32>
    %40 = vector.shape_cast %39 : vector<1x8x1xf32> to vector<8x1xf32>
    %41 = arith.mulf %35, %40 : vector<8x1xf32>
    %cst_22 = arith.constant dense<0.000000e+00> : vector<8xf32>
    %42 = vector.multi_reduction <add>, %38, %cst_22 [1] : vector<8x8xf32> to vector<8xf32>
    %43 = vector.shape_cast %42 : vector<8xf32> to vector<8x1xf32>
    %44 = arith.addf %41, %43 : vector<8x1xf32>
    %c0_23 = arith.constant 0 : index
    %c0_24 = arith.constant 0 : index
    %c0_25 = arith.constant 0 : index
    %45 = vector.load %arg9[%c0_23, %c0_24, %c0_25] : memref<4x8x1xf32, #tpu.memory_space<vmem>>, vector<1x8x1xf32>
    %46 = vector.shape_cast %45 : vector<1x8x1xf32> to vector<8x1xf32>
    %47 = vector.shape_cast %44 : vector<8x1xf32> to vector<1x8x1xf32>
    tpu.vector_store %arg9[%c0_23, %c0_24, %c0_25], %47 {strides = array<i32>} : memref<4x8x1xf32, #tpu.memory_space<vmem>>, vector<1x8x1xf32>,
    %c0_26 = arith.constant 0 : index
    %c0_27 = arith.constant 0 : index
    %48 = vector.load %arg10[%c0_26, %c0_27] : memref<8x32xf32, #tpu.memory_space<vmem>>, vector<8x8xf32>
    %49 = vector.broadcast %35 : vector<8x1xf32> to vector<8x8xf32>
    %50 = arith.mulf %49, %48 : vector<8x8xf32>
    %51 = arith.truncf %38 : vector<8x8xf32> to vector<8x8xbf16>
    %cst_28 = arith.constant dense<0.000000e+00> : vector<8x8xf32>
    %52 = tpu.matmul %51, %26, %cst_28 {dimension_numbers = #tpu.dot_dimension_numbers<[1], [0], [0], [1], [0, 0, 1, 1], [], []>} : vector<8x8xbf16>, vector<8x8xbf16>, vector<8x8xf32> -> vector<8x8xf32>
    %53 = arith.addf %50, %52 : vector<8x8xf32>
    %c0_29 = arith.constant 0 : index
    %c0_30 = arith.constant 0 : index
    %54 = vector.load %arg10[%c0_29, %c0_30] : memref<8x32xf32, #tpu.memory_space<vmem>>, vector<8x8xf32>
    tpu.vector_store %arg10[%c0_29, %c0_30], %53 {strides = array<i32>} : memref<8x32xf32, #tpu.memory_space<vmem>>, vector<8x8xf32>,
    %c0_31 = arith.constant 0 : index
    %c0_32 = arith.constant 0 : index
    %c0_33 = arith.constant 0 : index
    %55 = vector.load %arg8[%c0_31, %c0_32, %c0_33] : memref<4x8x1xf32, #tpu.memory_space<vmem>>, vector<1x8x1xf32>
    %56 = vector.shape_cast %55 : vector<1x8x1xf32> to vector<8x1xf32>
    %57 = vector.shape_cast %33 : vector<8x1xf32> to vector<1x8x1xf32>
    tpu.vector_store %arg8[%c0_31, %c0_32, %c0_33], %57 {strides = array<i32>} : memref<4x8x1xf32, #tpu.memory_space<vmem>>, vector<1x8x1xf32>,
    %58 = vector.extract_strided_slice %4 {offsets = [0, 8], sizes = [8, 8], strides = [1, 1]} : vector<8x96xbf16> to vector<8x8xbf16>
    %cst_34 = arith.constant 3.535160e-01 : bf16
    %59 = vector.broadcast %cst_34 : bf16 to vector<8x8xbf16>
    %60 = arith.mulf %58, %59 : vector<8x8xbf16>
    %61 = vector.extract_strided_slice %6 {offsets = [0, 40], sizes = [8, 8], strides = [1, 1]} : vector<8x96xbf16> to vector<8x8xbf16>
    %62 = vector.extract_strided_slice %8 {offsets = [0, 72], sizes = [8, 8], strides = [1, 1]} : vector<8x96xbf16> to vector<8x8xbf16>
    %cst_35 = arith.constant dense<0.000000e+00> : vector<8x8xf32>
    %63 = tpu.matmul %60, %61, %cst_35 {dimension_numbers = #tpu.dot_dimension_numbers<[1], [1], [0], [0], [0, 0, 1, 0], [], []>} : vector<8x8xbf16>, vector<8x8xbf16>, vector<8x8xf32> -> vector<8x8xf32>
    %64 = arith.addf %63, %21 : vector<8x8xf32>
    %c1 = arith.constant 1 : index
    %c0_36 = arith.constant 0 : index
    %c0_37 = arith.constant 0 : index
    %65 = vector.load %arg8[%c1, %c0_36, %c0_37] : memref<4x8x1xf32, #tpu.memory_space<vmem>>, vector<1x8x1xf32>
    %66 = vector.shape_cast %65 : vector<1x8x1xf32> to vector<8x1xf32>
    %cst_38 = arith.constant dense<0xFF800000> : vector<8xf32>
    %67 = vector.multi_reduction <maximumf>, %64, %cst_38 [1] : vector<8x8xf32> to vector<8xf32>
    %68 = vector.shape_cast %67 : vector<8xf32> to vector<8x1xf32>
    %69 = arith.maximumf %66, %68 : vector<8x1xf32>
    %70 = arith.subf %66, %69 : vector<8x1xf32>
    %71 = math.exp %70 : vector<8x1xf32>
    %72 = vector.broadcast %69 : vector<8x1xf32> to vector<8x8xf32>
    %73 = arith.subf %64, %72 : vector<8x8xf32>
    %74 = math.exp %73 : vector<8x8xf32>
    %c1_39 = arith.constant 1 : index
    %c0_40 = arith.constant 0 : index
    %c0_41 = arith.constant 0 : index
    %75 = vector.load %arg9[%c1_39, %c0_40, %c0_41] : memref<4x8x1xf32, #tpu.memory_space<vmem>>, vector<1x8x1xf32>
    %76 = vector.shape_cast %75 : vector<1x8x1xf32> to vector<8x1xf32>
    %77 = arith.mulf %71, %76 : vector<8x1xf32>
    %cst_42 = arith.constant dense<0.000000e+00> : vector<8xf32>
    %78 = vector.multi_reduction <add>, %74, %cst_42 [1] : vector<8x8xf32> to vector<8xf32>
    %79 = vector.shape_cast %78 : vector<8xf32> to vector<8x1xf32>
    %80 = arith.addf %77, %79 : vector<8x1xf32>
    %c1_43 = arith.constant 1 : index
    %c0_44 = arith.constant 0 : index
    %c0_45 = arith.constant 0 : index
    %81 = vector.load %arg9[%c1_43, %c0_44, %c0_45] : memref<4x8x1xf32, #tpu.memory_space<vmem>>, vector<1x8x1xf32>
    %82 = vector.shape_cast %81 : vector<1x8x1xf32> to vector<8x1xf32>
    %83 = vector.shape_cast %80 : vector<8x1xf32> to vector<1x8x1xf32>
    tpu.vector_store %arg9[%c1_43, %c0_44, %c0_45], %83 {strides = array<i32>} : memref<4x8x1xf32, #tpu.memory_space<vmem>>, vector<1x8x1xf32>,
    %c0_46 = arith.constant 0 : index
    %c8 = arith.constant 8 : index
    %84 = vector.load %arg10[%c0_46, %c8] : memref<8x32xf32, #tpu.memory_space<vmem>>, vector<8x8xf32>
    %85 = vector.broadcast %71 : vector<8x1xf32> to vector<8x8xf32>
    %86 = arith.mulf %85, %84 : vector<8x8xf32>
    %87 = arith.truncf %74 : vector<8x8xf32> to vector<8x8xbf16>
    %cst_47 = arith.constant dense<0.000000e+00> : vector<8x8xf32>
    %88 = tpu.matmul %87, %62, %cst_47 {dimension_numbers = #tpu.dot_dimension_numbers<[1], [0], [0], [1], [0, 0, 1, 1], [], []>} : vector<8x8xbf16>, vector<8x8xbf16>, vector<8x8xf32> -> vector<8x8xf32>
    %89 = arith.addf %86, %88 : vector<8x8xf32>
    %c0_48 = arith.constant 0 : index
    %c8_49 = arith.constant 8 : index
    %90 = vector.load %arg10[%c0_48, %c8_49] : memref<8x32xf32, #tpu.memory_space<vmem>>, vector<8x8xf32>
    tpu.vector_store %arg10[%c0_48, %c8_49], %89 {strides = array<i32>} : memref<8x32xf32, #tpu.memory_space<vmem>>, vector<8x8xf32>,
    %c1_50 = arith.constant 1 : index
    %c0_51 = arith.constant 0 : index
    %c0_52 = arith.constant 0 : index
    %91 = vector.load %arg8[%c1_50, %c0_51, %c0_52] : memref<4x8x1xf32, #tpu.memory_space<vmem>>, vector<1x8x1xf32>
    %92 = vector.shape_cast %91 : vector<1x8x1xf32> to vector<8x1xf32>
    %93 = vector.shape_cast %69 : vector<8x1xf32> to vector<1x8x1xf32>
    tpu.vector_store %arg8[%c1_50, %c0_51, %c0_52], %93 {strides = array<i32>} : memref<4x8x1xf32, #tpu.memory_space<vmem>>, vector<1x8x1xf32>,
    %94 = vector.extract_strided_slice %4 {offsets = [0, 16], sizes = [8, 8], strides = [1, 1]} : vector<8x96xbf16> to vector<8x8xbf16>
    %cst_53 = arith.constant 3.535160e-01 : bf16
    %95 = vector.broadcast %cst_53 : bf16 to vector<8x8xbf16>
    %96 = arith.mulf %94, %95 : vector<8x8xbf16>
    %97 = vector.extract_strided_slice %6 {offsets = [0, 48], sizes = [8, 8], strides = [1, 1]} : vector<8x96xbf16> to vector<8x8xbf16>
    %98 = vector.extract_strided_slice %8 {offsets = [0, 80], sizes = [8, 8], strides = [1, 1]} : vector<8x96xbf16> to vector<8x8xbf16>
    %cst_54 = arith.constant dense<0.000000e+00> : vector<8x8xf32>
    %99 = tpu.matmul %96, %97, %cst_54 {dimension_numbers = #tpu.dot_dimension_numbers<[1], [1], [0], [0], [0, 0, 1, 0], [], []>} : vector<8x8xbf16>, vector<8x8xbf16>, vector<8x8xf32> -> vector<8x8xf32>
    %100 = arith.addf %99, %21 : vector<8x8xf32>
    %c2 = arith.constant 2 : index
    %c0_55 = arith.constant 0 : index
    %c0_56 = arith.constant 0 : index
    %101 = vector.load %arg8[%c2, %c0_55, %c0_56] : memref<4x8x1xf32, #tpu.memory_space<vmem>>, vector<1x8x1xf32>
    %102 = vector.shape_cast %101 : vector<1x8x1xf32> to vector<8x1xf32>
    %cst_57 = arith.constant dense<0xFF800000> : vector<8xf32>
    %103 = vector.multi_reduction <maximumf>, %100, %cst_57 [1] : vector<8x8xf32> to vector<8xf32>
    %104 = vector.shape_cast %103 : vector<8xf32> to vector<8x1xf32>
    %105 = arith.maximumf %102, %104 : vector<8x1xf32>
    %106 = arith.subf %102, %105 : vector<8x1xf32>
    %107 = math.exp %106 : vector<8x1xf32>
    %108 = vector.broadcast %105 : vector<8x1xf32> to vector<8x8xf32>
    %109 = arith.subf %100, %108 : vector<8x8xf32>
    %110 = math.exp %109 : vector<8x8xf32>
    %c2_58 = arith.constant 2 : index
    %c0_59 = arith.constant 0 : index
    %c0_60 = arith.constant 0 : index
    %111 = vector.load %arg9[%c2_58, %c0_59, %c0_60] : memref<4x8x1xf32, #tpu.memory_space<vmem>>, vector<1x8x1xf32>
    %112 = vector.shape_cast %111 : vector<1x8x1xf32> to vector<8x1xf32>
    %113 = arith.mulf %107, %112 : vector<8x1xf32>
    %cst_61 = arith.constant dense<0.000000e+00> : vector<8xf32>
    %114 = vector.multi_reduction <add>, %110, %cst_61 [1] : vector<8x8xf32> to vector<8xf32>
    %115 = vector.shape_cast %114 : vector<8xf32> to vector<8x1xf32>
    %116 = arith.addf %113, %115 : vector<8x1xf32>
    %c2_62 = arith.constant 2 : index
    %c0_63 = arith.constant 0 : index
    %c0_64 = arith.constant 0 : index
    %117 = vector.load %arg9[%c2_62, %c0_63, %c0_64] : memref<4x8x1xf32, #tpu.memory_space<vmem>>, vector<1x8x1xf32>
    %118 = vector.shape_cast %117 : vector<1x8x1xf32> to vector<8x1xf32>
    %119 = vector.shape_cast %116 : vector<8x1xf32> to vector<1x8x1xf32>
    tpu.vector_store %arg9[%c2_62, %c0_63, %c0_64], %119 {strides = array<i32>} : memref<4x8x1xf32, #tpu.memory_space<vmem>>, vector<1x8x1xf32>,
    %c0_65 = arith.constant 0 : index
    %c16 = arith.constant 16 : index
    %120 = vector.load %arg10[%c0_65, %c16] : memref<8x32xf32, #tpu.memory_space<vmem>>, vector<8x8xf32>
    %121 = vector.broadcast %107 : vector<8x1xf32> to vector<8x8xf32>
    %122 = arith.mulf %121, %120 : vector<8x8xf32>
    %123 = arith.truncf %110 : vector<8x8xf32> to vector<8x8xbf16>
    %cst_66 = arith.constant dense<0.000000e+00> : vector<8x8xf32>
    %124 = tpu.matmul %123, %98, %cst_66 {dimension_numbers = #tpu.dot_dimension_numbers<[1], [0], [0], [1], [0, 0, 1, 1], [], []>} : vector<8x8xbf16>, vector<8x8xbf16>, vector<8x8xf32> -> vector<8x8xf32>
    %125 = arith.addf %122, %124 : vector<8x8xf32>
    %c0_67 = arith.constant 0 : index
    %c16_68 = arith.constant 16 : index
    %126 = vector.load %arg10[%c0_67, %c16_68] : memref<8x32xf32, #tpu.memory_space<vmem>>, vector<8x8xf32>
    tpu.vector_store %arg10[%c0_67, %c16_68], %125 {strides = array<i32>} : memref<8x32xf32, #tpu.memory_space<vmem>>, vector<8x8xf32>,
    %c2_69 = arith.constant 2 : index
    %c0_70 = arith.constant 0 : index
    %c0_71 = arith.constant 0 : index
    %127 = vector.load %arg8[%c2_69, %c0_70, %c0_71] : memref<4x8x1xf32, #tpu.memory_space<vmem>>, vector<1x8x1xf32>
    %128 = vector.shape_cast %127 : vector<1x8x1xf32> to vector<8x1xf32>
    %129 = vector.shape_cast %105 : vector<8x1xf32> to vector<1x8x1xf32>
    tpu.vector_store %arg8[%c2_69, %c0_70, %c0_71], %129 {strides = array<i32>} : memref<4x8x1xf32, #tpu.memory_space<vmem>>, vector<1x8x1xf32>,
    %130 = vector.extract_strided_slice %4 {offsets = [0, 24], sizes = [8, 8], strides = [1, 1]} : vector<8x96xbf16> to vector<8x8xbf16>
    %cst_72 = arith.constant 3.535160e-01 : bf16
    %131 = vector.broadcast %cst_72 : bf16 to vector<8x8xbf16>
    %132 = arith.mulf %130, %131 : vector<8x8xbf16>
    %133 = vector.extract_strided_slice %6 {offsets = [0, 56], sizes = [8, 8], strides = [1, 1]} : vector<8x96xbf16> to vector<8x8xbf16>
    %134 = vector.extract_strided_slice %8 {offsets = [0, 88], sizes = [8, 8], strides = [1, 1]} : vector<8x96xbf16> to vector<8x8xbf16>
    %cst_73 = arith.constant dense<0.000000e+00> : vector<8x8xf32>
    %135 = tpu.matmul %132, %133, %cst_73 {dimension_numbers = #tpu.dot_dimension_numbers<[1], [1], [0], [0], [0, 0, 1, 0], [], []>} : vector<8x8xbf16>, vector<8x8xbf16>, vector<8x8xf32> -> vector<8x8xf32>
    %136 = arith.addf %135, %21 : vector<8x8xf32>
    %c3 = arith.constant 3 : index
    %c0_74 = arith.constant 0 : index
    %c0_75 = arith.constant 0 : index
    %137 = vector.load %arg8[%c3, %c0_74, %c0_75] : memref<4x8x1xf32, #tpu.memory_space<vmem>>, vector<1x8x1xf32>
    %138 = vector.shape_cast %137 : vector<1x8x1xf32> to vector<8x1xf32>
    %cst_76 = arith.constant dense<0xFF800000> : vector<8xf32>
    %139 = vector.multi_reduction <maximumf>, %136, %cst_76 [1] : vector<8x8xf32> to vector<8xf32>
    %140 = vector.shape_cast %139 : vector<8xf32> to vector<8x1xf32>
    %141 = arith.maximumf %138, %140 : vector<8x1xf32>
    %142 = arith.subf %138, %141 : vector<8x1xf32>
    %143 = math.exp %142 : vector<8x1xf32>
    %144 = vector.broadcast %141 : vector<8x1xf32> to vector<8x8xf32>
    %145 = arith.subf %136, %144 : vector<8x8xf32>
    %146 = math.exp %145 : vector<8x8xf32>
    %c3_77 = arith.constant 3 : index
    %c0_78 = arith.constant 0 : index
    %c0_79 = arith.constant 0 : index
    %147 = vector.load %arg9[%c3_77, %c0_78, %c0_79] : memref<4x8x1xf32, #tpu.memory_space<vmem>>, vector<1x8x1xf32>
    %148 = vector.shape_cast %147 : vector<1x8x1xf32> to vector<8x1xf32>
    %149 = arith.mulf %143, %148 : vector<8x1xf32>
    %cst_80 = arith.constant dense<0.000000e+00> : vector<8xf32>
    %150 = vector.multi_reduction <add>, %146, %cst_80 [1] : vector<8x8xf32> to vector<8xf32>
    %151 = vector.shape_cast %150 : vector<8xf32> to vector<8x1xf32>
    %152 = arith.addf %149, %151 : vector<8x1xf32>
    %c3_81 = arith.constant 3 : index
    %c0_82 = arith.constant 0 : index
    %c0_83 = arith.constant 0 : index
    %153 = vector.load %arg9[%c3_81, %c0_82, %c0_83] : memref<4x8x1xf32, #tpu.memory_space<vmem>>, vector<1x8x1xf32>
    %154 = vector.shape_cast %153 : vector<1x8x1xf32> to vector<8x1xf32>
    %155 = vector.shape_cast %152 : vector<8x1xf32> to vector<1x8x1xf32>
    tpu.vector_store %arg9[%c3_81, %c0_82, %c0_83], %155 {strides = array<i32>} : memref<4x8x1xf32, #tpu.memory_space<vmem>>, vector<1x8x1xf32>,
    %c0_84 = arith.constant 0 : index
    %c24 = arith.constant 24 : index
    %156 = vector.load %arg10[%c0_84, %c24] : memref<8x32xf32, #tpu.memory_space<vmem>>, vector<8x8xf32>
    %157 = vector.broadcast %143 : vector<8x1xf32> to vector<8x8xf32>
    %158 = arith.mulf %157, %156 : vector<8x8xf32>
    %159 = arith.truncf %146 : vector<8x8xf32> to vector<8x8xbf16>
    %cst_85 = arith.constant dense<0.000000e+00> : vector<8x8xf32>
    %160 = tpu.matmul %159, %134, %cst_85 {dimension_numbers = #tpu.dot_dimension_numbers<[1], [0], [0], [1], [0, 0, 1, 1], [], []>} : vector<8x8xbf16>, vector<8x8xbf16>, vector<8x8xf32> -> vector<8x8xf32>
    %161 = arith.addf %158, %160 : vector<8x8xf32>
    %c0_86 = arith.constant 0 : index
    %c24_87 = arith.constant 24 : index
    %162 = vector.load %arg10[%c0_86, %c24_87] : memref<8x32xf32, #tpu.memory_space<vmem>>, vector<8x8xf32>
    tpu.vector_store %arg10[%c0_86, %c24_87], %161 {strides = array<i32>} : memref<8x32xf32, #tpu.memory_space<vmem>>, vector<8x8xf32>,
    %c3_88 = arith.constant 3 : index
    %c0_89 = arith.constant 0 : index
    %c0_90 = arith.constant 0 : index
    %163 = vector.load %arg8[%c3_88, %c0_89, %c0_90] : memref<4x8x1xf32, #tpu.memory_space<vmem>>, vector<1x8x1xf32>
    %164 = vector.shape_cast %163 : vector<1x8x1xf32> to vector<8x1xf32>
    %165 = vector.shape_cast %141 : vector<8x1xf32> to vector<1x8x1xf32>
    tpu.vector_store %arg8[%c3_88, %c0_89, %c0_90], %165 {strides = array<i32>} : memref<4x8x1xf32, #tpu.memory_space<vmem>>, vector<1x8x1xf32>,
    %c0_i32_91 = arith.constant 0 : i32
    %166 = arith.cmpi eq, %arg2, %c0_i32_91 : i32
    %167 = arith.extui %166 : i1 to i32
    %c0_i32_92 = arith.constant 0 : i32
    %168 = arith.cmpi ne, %167, %c0_i32_92 : i32
    scf.if %168 {
      %c0_93 = arith.constant 0 : index
      %c0_94 = arith.constant 0 : index
      %169 = vector.load %arg10[%c0_93, %c0_94] : memref<8x32xf32, #tpu.memory_space<vmem>>, vector<8x8xf32>
      %c0_95 = arith.constant 0 : index
      %c0_96 = arith.constant 0 : index
      %c0_97 = arith.constant 0 : index
      %170 = vector.load %arg9[%c0_95, %c0_96, %c0_97] : memref<4x8x1xf32, #tpu.memory_space<vmem>>, vector<1x8x1xf32>
      %171 = vector.shape_cast %170 : vector<1x8x1xf32> to vector<8x1xf32>
      %cst_98 = arith.constant 1.000000e+00 : f32
      %172 = vector.broadcast %cst_98 : f32 to vector<8x1xf32>
      %173 = arith.divf %172, %171 : vector<8x1xf32>
      %174 = vector.broadcast %173 : vector<8x1xf32> to vector<8x8xf32>
      %175 = arith.mulf %169, %174 : vector<8x8xf32>
      %c0_99 = arith.constant 0 : index
      %c8_100 = arith.constant 8 : index
      %176 = vector.load %arg10[%c0_99, %c8_100] : memref<8x32xf32, #tpu.memory_space<vmem>>, vector<8x8xf32>
      %c1_101 = arith.constant 1 : index
      %c0_102 = arith.constant 0 : index
      %c0_103 = arith.constant 0 : index
      %177 = vector.load %arg9[%c1_101, %c0_102, %c0_103] : memref<4x8x1xf32, #tpu.memory_space<vmem>>, vector<1x8x1xf32>
      %178 = vector.shape_cast %177 : vector<1x8x1xf32> to vector<8x1xf32>
      %cst_104 = arith.constant 1.000000e+00 : f32
      %179 = vector.broadcast %cst_104 : f32 to vector<8x1xf32>
      %180 = arith.divf %179, %178 : vector<8x1xf32>
      %181 = vector.broadcast %180 : vector<8x1xf32> to vector<8x8xf32>
      %182 = arith.mulf %176, %181 : vector<8x8xf32>
      %c0_105 = arith.constant 0 : index
      %c16_106 = arith.constant 16 : index
      %183 = vector.load %arg10[%c0_105, %c16_106] : memref<8x32xf32, #tpu.memory_space<vmem>>, vector<8x8xf32>
      %c2_107 = arith.constant 2 : index
      %c0_108 = arith.constant 0 : index
      %c0_109 = arith.constant 0 : index
      %184 = vector.load %arg9[%c2_107, %c0_108, %c0_109] : memref<4x8x1xf32, #tpu.memory_space<vmem>>, vector<1x8x1xf32>
      %185 = vector.shape_cast %184 : vector<1x8x1xf32> to vector<8x1xf32>
      %cst_110 = arith.constant 1.000000e+00 : f32
      %186 = vector.broadcast %cst_110 : f32 to vector<8x1xf32>
      %187 = arith.divf %186, %185 : vector<8x1xf32>
      %188 = vector.broadcast %187 : vector<8x1xf32> to vector<8x8xf32>
      %189 = arith.mulf %183, %188 : vector<8x8xf32>
      %c0_111 = arith.constant 0 : index
      %c24_112 = arith.constant 24 : index
      %190 = vector.load %arg10[%c0_111, %c24_112] : memref<8x32xf32, #tpu.memory_space<vmem>>, vector<8x8xf32>
      %c3_113 = arith.constant 3 : index
      %c0_114 = arith.constant 0 : index
      %c0_115 = arith.constant 0 : index
      %191 = vector.load %arg9[%c3_113, %c0_114, %c0_115] : memref<4x8x1xf32, #tpu.memory_space<vmem>>, vector<1x8x1xf32>
      %192 = vector.shape_cast %191 : vector<1x8x1xf32> to vector<8x1xf32>
      %cst_116 = arith.constant 1.000000e+00 : f32
      %193 = vector.broadcast %cst_116 : f32 to vector<8x1xf32>
      %194 = arith.divf %193, %192 : vector<8x1xf32>
      %195 = vector.broadcast %194 : vector<8x1xf32> to vector<8x8xf32>
      %196 = arith.mulf %190, %195 : vector<8x8xf32>
      %197 = tpu.concatenate %175, %182, %189, %196 in 1 : vector<8x8xf32>, vector<8x8xf32>, vector<8x8xf32>, vector<8x8xf32> -> vector<8x32xf32>
      %198 = arith.truncf %197 : vector<8x32xf32> to vector<8x32xbf16>
      %c0_117 = arith.constant 0 : index
      %c0_118 = arith.constant 0 : index
      %c0_119 = arith.constant 0 : index
      %199 = vector.load %arg7[%c0_117, %c0_118, %c0_119] : memref<1x8x32xbf16, #tpu.memory_space<vmem>>, vector<1x8x32xbf16>
      %200 = vector.shape_cast %199 : vector<1x8x32xbf16> to vector<8x32xbf16>
      %201 = vector.shape_cast %198 : vector<8x32xbf16> to vector<1x8x32xbf16>
      tpu.vector_store %arg7[%c0_117, %c0_118, %c0_119], %201 {strides = array<i32>} : memref<1x8x32xbf16, #tpu.memory_space<vmem>>, vector<1x8x32xbf16>,
    } else {
    }
    return
  }
  func.func @transform_0(%arg0: i32, %arg1: i32, %arg2: i32) -> (i32, i32, i32) {
    %c0_i32 = arith.constant 0 : i32
    %c0_i32_0 = arith.constant 0 : i32
    %c0_i32_1 = arith.constant 0 : i32
    return %arg0, %c0_i32, %c0_i32_0 : i32, i32, i32
  }
  func.func @transform_1(%arg0: i32, %arg1: i32, %arg2: i32) -> (i32, i32, i32) {
    %c0_i32 = arith.constant 0 : i32
    %c0_i32_0 = arith.constant 0 : i32
    return %arg0, %arg2, %c0_i32 : i32, i32, i32
  }
  func.func @transform_2(%arg0: i32, %arg1: i32, %arg2: i32) -> (i32, i32, i32) {
    %c0_i32 = arith.constant 0 : i32
    %c0_i32_0 = arith.constant 0 : i32
    return %arg0, %arg2, %c0_i32 : i32, i32, i32
  }
  func.func @transform_3(%arg0: i32, %arg1: i32, %arg2: i32) -> (i32, i32, i32) {
    %c0_i32 = arith.constant 0 : i32
    %c0_i32_0 = arith.constant 0 : i32
    return %arg0, %c0_i32, %arg2 : i32, i32, i32
  }
  func.func @transform_4(%arg0: i32, %arg1: i32, %arg2: i32) -> (i32, i32, i32) {
    %c0_i32 = arith.constant 0 : i32
    %c0_i32_0 = arith.constant 0 : i32
    return %arg0, %c0_i32, %arg1 : i32, i32, i32
  }
}

module attributes {stable_mosaic.version = 11 : i64} {
  func.func @_fused_matmul_kernel(%arg0: i32, %arg1: i32, %arg2: i32, %arg3: memref<16x32xf32, #tpu.memory_space<vmem>>, %arg4: memref<1x32xf32, #tpu.memory_space<vmem>>, %arg5: memref<1x32xf32, #tpu.memory_space<vmem>>, %arg6: memref<32x32xbf16, #tpu.memory_space<vmem>>, %arg7: memref<1x32xf32, #tpu.memory_space<vmem>>, %arg8: memref<16x32xbf16, #tpu.memory_space<vmem>>, %arg9: memref<16x32xf32, #tpu.memory_space<vmem>>, %arg10: memref<16x32xbf16, #tpu.memory_space<vmem>>) attributes {dimension_semantics = [#tpu.dimension_semantics<parallel>, #tpu.dimension_semantics<arbitrary>, #tpu.dimension_semantics<arbitrary>], iteration_bounds = array<i64: 1, 1, 1>, scalar_prefetch = 0 : i64, scratch_operands = 2 : i64, tpu.core_type = #tpu.core_type<tc>, window_params = [{transform_indices = @transform_0, window_bounds = array<i64: 16, 32>}, {transform_indices = @transform_1, window_bounds = array<i64: 1, 32>}, {transform_indices = @transform_2, window_bounds = array<i64: 1, 32>}, {transform_indices = @transform_3, window_bounds = array<i64: 32, 32>}, {transform_indices = @transform_4, window_bounds = array<i64: 1, 32>}, {transform_indices = @transform_5, window_bounds = array<i64: 16, 32>}]} {
    %c0_i32 = arith.constant 0 : i32
    %0 = arith.cmpi eq, %arg2, %c0_i32 : i32
    %1 = arith.extui %0 : i1 to i32
    %c0_i32_0 = arith.constant 0 : i32
    %2 = arith.cmpi ne, %1, %c0_i32_0 : i32
    scf.if %2 {
      %cst_12 = arith.constant 0.000000e+00 : f32
      %15 = vector.broadcast %cst_12 : f32 to vector<16x32xf32>
      %c0_13 = arith.constant 0 : index
      %c0_14 = arith.constant 0 : index
      %16 = vector.load %arg9[%c0_13, %c0_14] : memref<16x32xf32, #tpu.memory_space<vmem>>, vector<16x32xf32>
      tpu.vector_store %arg9[%c0_13, %c0_14], %15 {strides = array<i32>} : memref<16x32xf32, #tpu.memory_space<vmem>>, vector<16x32xf32>,
    } else {
    }
    %c0_i32_1 = arith.constant 0 : i32
    %3 = arith.cmpi eq, %arg1, %c0_i32_1 : i32
    %4 = arith.extui %3 : i1 to i32
    %c0_i32_2 = arith.constant 0 : i32
    %5 = arith.cmpi ne, %4, %c0_i32_2 : i32
    scf.if %5 {
      %c0_12 = arith.constant 0 : index
      %c0_13 = arith.constant 0 : index
      %15 = vector.load %arg3[%c0_12, %c0_13] : memref<16x32xf32, #tpu.memory_space<vmem>>, vector<16x32xf32>
      %cst_14 = arith.constant dense<0.000000e+00> : vector<16xf32>
      %16 = vector.multi_reduction <add>, %15, %cst_14 [1] : vector<16x32xf32> to vector<16xf32>
      %17 = vector.shape_cast %16 : vector<16xf32> to vector<16x1xf32>
      %cst_15 = arith.constant 3.200000e+01 : f32
      %18 = vector.broadcast %cst_15 : f32 to vector<16x1xf32>
      %19 = arith.divf %17, %18 : vector<16x1xf32>
      %20 = vector.broadcast %19 : vector<16x1xf32> to vector<16x32xf32>
      %21 = arith.subf %15, %20 : vector<16x32xf32>
      %22 = arith.mulf %21, %21 : vector<16x32xf32>
      %cst_16 = arith.constant dense<0.000000e+00> : vector<16xf32>
      %23 = vector.multi_reduction <add>, %22, %cst_16 [1] : vector<16x32xf32> to vector<16xf32>
      %24 = vector.shape_cast %23 : vector<16xf32> to vector<16x1xf32>
      %cst_17 = arith.constant 3.200000e+01 : f32
      %25 = vector.broadcast %cst_17 : f32 to vector<16x1xf32>
      %26 = arith.divf %24, %25 : vector<16x1xf32>
      %cst_18 = arith.constant 9.99999974E-6 : f32
      %27 = vector.broadcast %cst_18 : f32 to vector<16x1xf32>
      %28 = arith.addf %26, %27 : vector<16x1xf32>
      %29 = math.rsqrt %28 : vector<16x1xf32>
      %30 = vector.broadcast %29 : vector<16x1xf32> to vector<16x32xf32>
      %31 = arith.mulf %21, %30 : vector<16x32xf32>
      %c0_19 = arith.constant 0 : index
      %c0_20 = arith.constant 0 : index
      %32 = vector.load %arg4[%c0_19, %c0_20] : memref<1x32xf32, #tpu.memory_space<vmem>>, vector<1x32xf32>
      %33 = vector.broadcast %32 : vector<1x32xf32> to vector<16x32xf32>
      %34 = arith.mulf %31, %33 : vector<16x32xf32>
      %c0_21 = arith.constant 0 : index
      %c0_22 = arith.constant 0 : index
      %35 = vector.load %arg5[%c0_21, %c0_22] : memref<1x32xf32, #tpu.memory_space<vmem>>, vector<1x32xf32>
      %36 = vector.broadcast %35 : vector<1x32xf32> to vector<16x32xf32>
      %37 = arith.addf %34, %36 : vector<16x32xf32>
      %38 = arith.truncf %37 : vector<16x32xf32> to vector<16x32xbf16>
      %c0_23 = arith.constant 0 : index
      %c0_24 = arith.constant 0 : index
      %39 = vector.load %arg10[%c0_23, %c0_24] : memref<16x32xbf16, #tpu.memory_space<vmem>>, vector<16x32xbf16>
      tpu.vector_store %arg10[%c0_23, %c0_24], %38 {strides = array<i32>} : memref<16x32xbf16, #tpu.memory_space<vmem>>, vector<16x32xbf16>,
    } else {
    }
    %c0 = arith.constant 0 : index
    %c0_3 = arith.constant 0 : index
    %6 = vector.load %arg10[%c0, %c0_3] : memref<16x32xbf16, #tpu.memory_space<vmem>>, vector<16x32xbf16>
    %c0_4 = arith.constant 0 : index
    %c0_5 = arith.constant 0 : index
    %7 = vector.load %arg9[%c0_4, %c0_5] : memref<16x32xf32, #tpu.memory_space<vmem>>, vector<16x32xf32>
    %c0_6 = arith.constant 0 : index
    %c0_7 = arith.constant 0 : index
    %8 = vector.load %arg6[%c0_6, %c0_7] : memref<32x32xbf16, #tpu.memory_space<vmem>>, vector<32x32xbf16>
    %cst = arith.constant dense<0.000000e+00> : vector<16x32xf32>
    %9 = tpu.matmul %6, %8, %cst {dimension_numbers = #tpu.dot_dimension_numbers<[1], [0], [0], [1], [0, 0, 1, 1], [], []>} : vector<16x32xbf16>, vector<32x32xbf16>, vector<16x32xf32> -> vector<16x32xf32>
    %10 = arith.addf %7, %9 : vector<16x32xf32>
    %c0_8 = arith.constant 0 : index
    %c0_9 = arith.constant 0 : index
    %11 = vector.load %arg9[%c0_8, %c0_9] : memref<16x32xf32, #tpu.memory_space<vmem>>, vector<16x32xf32>
    tpu.vector_store %arg9[%c0_8, %c0_9], %10 {strides = array<i32>} : memref<16x32xf32, #tpu.memory_space<vmem>>, vector<16x32xf32>,
    %c0_i32_10 = arith.constant 0 : i32
    %12 = arith.cmpi eq, %arg2, %c0_i32_10 : i32
    %13 = arith.extui %12 : i1 to i32
    %c0_i32_11 = arith.constant 0 : i32
    %14 = arith.cmpi ne, %13, %c0_i32_11 : i32
    scf.if %14 {
      %c0_12 = arith.constant 0 : index
      %c0_13 = arith.constant 0 : index
      %15 = vector.load %arg9[%c0_12, %c0_13] : memref<16x32xf32, #tpu.memory_space<vmem>>, vector<16x32xf32>
      %c0_14 = arith.constant 0 : index
      %c0_15 = arith.constant 0 : index
      %16 = vector.load %arg7[%c0_14, %c0_15] : memref<1x32xf32, #tpu.memory_space<vmem>>, vector<1x32xf32>
      %17 = vector.broadcast %16 : vector<1x32xf32> to vector<16x32xf32>
      %18 = arith.addf %15, %17 : vector<16x32xf32>
      %19 = arith.truncf %18 : vector<16x32xf32> to vector<16x32xbf16>
      %c0_16 = arith.constant 0 : index
      %c0_17 = arith.constant 0 : index
      %20 = vector.load %arg8[%c0_16, %c0_17] : memref<16x32xbf16, #tpu.memory_space<vmem>>, vector<16x32xbf16>
      tpu.vector_store %arg8[%c0_16, %c0_17], %19 {strides = array<i32>} : memref<16x32xbf16, #tpu.memory_space<vmem>>, vector<16x32xbf16>,
    } else {
    }
    return
  }
  func.func @transform_0(%arg0: i32, %arg1: i32, %arg2: i32) -> (i32, i32) {
    %c0_i32 = arith.constant 0 : i32
    return %arg0, %arg2 : i32, i32
  }
  func.func @transform_1(%arg0: i32, %arg1: i32, %arg2: i32) -> (i32, i32) {
    %c0_i32 = arith.constant 0 : i32
    %c0_i32_0 = arith.constant 0 : i32
    return %c0_i32, %arg2 : i32, i32
  }
  func.func @transform_2(%arg0: i32, %arg1: i32, %arg2: i32) -> (i32, i32) {
    %c0_i32 = arith.constant 0 : i32
    %c0_i32_0 = arith.constant 0 : i32
    return %c0_i32, %arg2 : i32, i32
  }
  func.func @transform_3(%arg0: i32, %arg1: i32, %arg2: i32) -> (i32, i32) {
    %c0_i32 = arith.constant 0 : i32
    return %arg2, %arg1 : i32, i32
  }
  func.func @transform_4(%arg0: i32, %arg1: i32, %arg2: i32) -> (i32, i32) {
    %c0_i32 = arith.constant 0 : i32
    %c0_i32_0 = arith.constant 0 : i32
    return %c0_i32, %arg1 : i32, i32
  }
  func.func @transform_5(%arg0: i32, %arg1: i32, %arg2: i32) -> (i32, i32) {
    %c0_i32 = arith.constant 0 : i32
    return %arg0, %arg1 : i32, i32
  }
}

module attributes {stable_mosaic.version = 11 : i64} {
  func.func @_fused_matmul_kernel(%arg0: i32, %arg1: i32, %arg2: i32, %arg3: memref<32x32xf32, #tpu.memory_space<vmem>>, %arg4: memref<32x64xbf16, #tpu.memory_space<vmem>>, %arg5: memref<1x64xf32, #tpu.memory_space<vmem>>, %arg6: memref<32x64xbf16, #tpu.memory_space<vmem>>, %arg7: memref<32x64xf32, #tpu.memory_space<vmem>>) attributes {dimension_semantics = [#tpu.dimension_semantics<parallel>, #tpu.dimension_semantics<parallel>, #tpu.dimension_semantics<arbitrary>], iteration_bounds = array<i64: 1, 1, 1>, scalar_prefetch = 0 : i64, scratch_operands = 1 : i64, tpu.core_type = #tpu.core_type<tc>, window_params = [{transform_indices = @transform_0, window_bounds = array<i64: 32, 32>}, {transform_indices = @transform_1, window_bounds = array<i64: 32, 64>}, {transform_indices = @transform_2, window_bounds = array<i64: 1, 64>}, {transform_indices = @transform_3, window_bounds = array<i64: 32, 64>}]} {
    %c0_i32 = arith.constant 0 : i32
    %0 = arith.cmpi eq, %arg2, %c0_i32 : i32
    %1 = arith.extui %0 : i1 to i32
    %c0_i32_0 = arith.constant 0 : i32
    %2 = arith.cmpi ne, %1, %c0_i32_0 : i32
    scf.if %2 {
      %cst_10 = arith.constant 0.000000e+00 : f32
      %13 = vector.broadcast %cst_10 : f32 to vector<32x64xf32>
      %c0_11 = arith.constant 0 : index
      %c0_12 = arith.constant 0 : index
      %14 = vector.load %arg7[%c0_11, %c0_12] : memref<32x64xf32, #tpu.memory_space<vmem>>, vector<32x64xf32>
      tpu.vector_store %arg7[%c0_11, %c0_12], %13 {strides = array<i32>} : memref<32x64xf32, #tpu.memory_space<vmem>>, vector<32x64xf32>,
    } else {
    }
    %c0 = arith.constant 0 : index
    %c0_1 = arith.constant 0 : index
    %3 = vector.load %arg3[%c0, %c0_1] : memref<32x32xf32, #tpu.memory_space<vmem>>, vector<32x32xf32>
    %4 = arith.truncf %3 : vector<32x32xf32> to vector<32x32xbf16>
    %c0_2 = arith.constant 0 : index
    %c0_3 = arith.constant 0 : index
    %5 = vector.load %arg7[%c0_2, %c0_3] : memref<32x64xf32, #tpu.memory_space<vmem>>, vector<32x64xf32>
    %c0_4 = arith.constant 0 : index
    %c0_5 = arith.constant 0 : index
    %6 = vector.load %arg4[%c0_4, %c0_5] : memref<32x64xbf16, #tpu.memory_space<vmem>>, vector<32x64xbf16>
    %cst = arith.constant dense<0.000000e+00> : vector<32x64xf32>
    %7 = tpu.matmul %4, %6, %cst {dimension_numbers = #tpu.dot_dimension_numbers<[1], [0], [0], [1], [0, 0, 1, 1], [], []>} : vector<32x32xbf16>, vector<32x64xbf16>, vector<32x64xf32> -> vector<32x64xf32>
    %8 = arith.addf %5, %7 : vector<32x64xf32>
    %c0_6 = arith.constant 0 : index
    %c0_7 = arith.constant 0 : index
    %9 = vector.load %arg7[%c0_6, %c0_7] : memref<32x64xf32, #tpu.memory_space<vmem>>, vector<32x64xf32>
    tpu.vector_store %arg7[%c0_6, %c0_7], %8 {strides = array<i32>} : memref<32x64xf32, #tpu.memory_space<vmem>>, vector<32x64xf32>,
    %c0_i32_8 = arith.constant 0 : i32
    %10 = arith.cmpi eq, %arg2, %c0_i32_8 : i32
    %11 = arith.extui %10 : i1 to i32
    %c0_i32_9 = arith.constant 0 : i32
    %12 = arith.cmpi ne, %11, %c0_i32_9 : i32
    scf.if %12 {
      %c0_10 = arith.constant 0 : index
      %c0_11 = arith.constant 0 : index
      %13 = vector.load %arg7[%c0_10, %c0_11] : memref<32x64xf32, #tpu.memory_space<vmem>>, vector<32x64xf32>
      %c0_12 = arith.constant 0 : index
      %c0_13 = arith.constant 0 : index
      %14 = vector.load %arg5[%c0_12, %c0_13] : memref<1x64xf32, #tpu.memory_space<vmem>>, vector<1x64xf32>
      %15 = vector.broadcast %14 : vector<1x64xf32> to vector<32x64xf32>
      %16 = arith.addf %13, %15 : vector<32x64xf32>
      %17 = arith.truncf %16 : vector<32x64xf32> to vector<32x64xbf16>
      %c0_14 = arith.constant 0 : index
      %c0_15 = arith.constant 0 : index
      %18 = vector.load %arg6[%c0_14, %c0_15] : memref<32x64xbf16, #tpu.memory_space<vmem>>, vector<32x64xbf16>
      tpu.vector_store %arg6[%c0_14, %c0_15], %17 {strides = array<i32>} : memref<32x64xbf16, #tpu.memory_space<vmem>>, vector<32x64xbf16>,
    } else {
    }
    return
  }
  func.func @transform_0(%arg0: i32, %arg1: i32, %arg2: i32) -> (i32, i32) {
    %c0_i32 = arith.constant 0 : i32
    return %arg0, %arg2 : i32, i32
  }
  func.func @transform_1(%arg0: i32, %arg1: i32, %arg2: i32) -> (i32, i32) {
    %c0_i32 = arith.constant 0 : i32
    return %arg2, %arg1 : i32, i32
  }
  func.func @transform_2(%arg0: i32, %arg1: i32, %arg2: i32) -> (i32, i32) {
    %c0_i32 = arith.constant 0 : i32
    %c0_i32_0 = arith.constant 0 : i32
    return %c0_i32, %arg1 : i32, i32
  }
  func.func @transform_3(%arg0: i32, %arg1: i32, %arg2: i32) -> (i32, i32) {
    %c0_i32 = arith.constant 0 : i32
    return %arg0, %arg1 : i32, i32
  }
}

module attributes {stable_mosaic.version = 11 : i64} {
  func.func @_attention_kernel(%arg0: i32, %arg1: i32, %arg2: i32, %arg3: memref<1x8x32xbf16, #tpu.memory_space<vmem>>, %arg4: memref<1x16x64xbf16, #tpu.memory_space<vmem>>, %arg5: memref<1x16x64xbf16, #tpu.memory_space<vmem>>, %arg6: memref<1x8x32xbf16, #tpu.memory_space<vmem>>, %arg7: memref<4x8x1xf32, #tpu.memory_space<vmem>>, %arg8: memref<4x8x1xf32, #tpu.memory_space<vmem>>, %arg9: memref<8x32xf32, #tpu.memory_space<vmem>>) attributes {dimension_semantics = [#tpu.dimension_semantics<parallel>, #tpu.dimension_semantics<parallel>, #tpu.dimension_semantics<arbitrary>], iteration_bounds = array<i64: 2, 1, 1>, scalar_prefetch = 0 : i64, scratch_operands = 3 : i64, tpu.core_type = #tpu.core_type<tc>, window_params = [{transform_indices = @transform_0, window_bounds = array<i64: 1, 8, 32>}, {transform_indices = @transform_1, window_bounds = array<i64: 1, 16, 64>}, {transform_indices = @transform_2, window_bounds = array<i64: 1, 16, 64>}, {transform_indices = @transform_3, window_bounds = array<i64: 1, 8, 32>}]} {
    %c0_i32 = arith.constant 0 : i32
    %0 = arith.cmpi eq, %arg2, %c0_i32 : i32
    %1 = arith.extui %0 : i1 to i32
    %c0_i32_0 = arith.constant 0 : i32
    %2 = arith.cmpi ne, %1, %c0_i32_0 : i32
    scf.if %2 {
      %cst_88 = arith.constant -1.000000e+30 : f32
      %152 = vector.broadcast %cst_88 : f32 to vector<4x8x1xf32>
      %c0_89 = arith.constant 0 : index
      %c0_90 = arith.constant 0 : index
      %c0_91 = arith.constant 0 : index
      %153 = vector.load %arg7[%c0_89, %c0_90, %c0_91] : memref<4x8x1xf32, #tpu.memory_space<vmem>>, vector<4x8x1xf32>
      tpu.vector_store %arg7[%c0_89, %c0_90, %c0_91], %152 {strides = array<i32>} : memref<4x8x1xf32, #tpu.memory_space<vmem>>, vector<4x8x1xf32>,
      %cst_92 = arith.constant 0.000000e+00 : f32
      %154 = vector.broadcast %cst_92 : f32 to vector<4x8x1xf32>
      %c0_93 = arith.constant 0 : index
      %c0_94 = arith.constant 0 : index
      %c0_95 = arith.constant 0 : index
      %155 = vector.load %arg8[%c0_93, %c0_94, %c0_95] : memref<4x8x1xf32, #tpu.memory_space<vmem>>, vector<4x8x1xf32>
      tpu.vector_store %arg8[%c0_93, %c0_94, %c0_95], %154 {strides = array<i32>} : memref<4x8x1xf32, #tpu.memory_space<vmem>>, vector<4x8x1xf32>,
      %cst_96 = arith.constant 0.000000e+00 : f32
      %156 = vector.broadcast %cst_96 : f32 to vector<8x32xf32>
      %c0_97 = arith.constant 0 : index
      %c0_98 = arith.constant 0 : index
      %157 = vector.load %arg9[%c0_97, %c0_98] : memref<8x32xf32, #tpu.memory_space<vmem>>, vector<8x32xf32>
      tpu.vector_store %arg9[%c0_97, %c0_98], %156 {strides = array<i32>} : memref<8x32xf32, #tpu.memory_space<vmem>>, vector<8x32xf32>,
    } else {
    }
    %c0 = arith.constant 0 : index
    %c0_1 = arith.constant 0 : index
    %c0_2 = arith.constant 0 : index
    %3 = vector.load %arg3[%c0, %c0_1, %c0_2] : memref<1x8x32xbf16, #tpu.memory_space<vmem>>, vector<1x8x32xbf16>
    %4 = vector.shape_cast %3 : vector<1x8x32xbf16> to vector<8x32xbf16>
    %c0_3 = arith.constant 0 : index
    %c0_4 = arith.constant 0 : index
    %c0_5 = arith.constant 0 : index
    %5 = vector.load %arg4[%c0_3, %c0_4, %c0_5] : memref<1x16x64xbf16, #tpu.memory_space<vmem>>, vector<1x16x64xbf16>
    %6 = vector.shape_cast %5 : vector<1x16x64xbf16> to vector<16x64xbf16>
    %c0_6 = arith.constant 0 : index
    %c0_7 = arith.constant 0 : index
    %c0_8 = arith.constant 0 : index
    %7 = vector.load %arg5[%c0_6, %c0_7, %c0_8] : memref<1x16x64xbf16, #tpu.memory_space<vmem>>, vector<1x16x64xbf16>
    %8 = vector.shape_cast %7 : vector<1x16x64xbf16> to vector<16x64xbf16>
    %9 = vector.extract_strided_slice %4 {offsets = [0, 0], sizes = [8, 8], strides = [1, 1]} : vector<8x32xbf16> to vector<8x8xbf16>
    %cst = arith.constant 3.535160e-01 : bf16
    %10 = vector.broadcast %cst : bf16 to vector<8x8xbf16>
    %11 = arith.mulf %9, %10 : vector<8x8xbf16>
    %12 = vector.extract_strided_slice %6 {offsets = [0, 0], sizes = [16, 8], strides = [1, 1]} : vector<16x64xbf16> to vector<16x8xbf16>
    %13 = vector.extract_strided_slice %8 {offsets = [0, 32], sizes = [16, 8], strides = [1, 1]} : vector<16x64xbf16> to vector<16x8xbf16>
    %cst_9 = arith.constant dense<0.000000e+00> : vector<8x16xf32>
    %14 = tpu.matmul %11, %12, %cst_9 {dimension_numbers = #tpu.dot_dimension_numbers<[1], [1], [0], [0], [0, 0, 1, 0], [], []>} : vector<8x8xbf16>, vector<16x8xbf16>, vector<8x16xf32> -> vector<8x16xf32>
    %c0_10 = arith.constant 0 : index
    %c0_11 = arith.constant 0 : index
    %c0_12 = arith.constant 0 : index
    %15 = vector.load %arg7[%c0_10, %c0_11, %c0_12] : memref<4x8x1xf32, #tpu.memory_space<vmem>>, vector<1x8x1xf32>
    %16 = vector.shape_cast %15 : vector<1x8x1xf32> to vector<8x1xf32>
    %cst_13 = arith.constant dense<0xFF800000> : vector<8xf32>
    %17 = vector.multi_reduction <maximumf>, %14, %cst_13 [1] : vector<8x16xf32> to vector<8xf32>
    %18 = vector.shape_cast %17 : vector<8xf32> to vector<8x1xf32>
    %19 = arith.maximumf %16, %18 : vector<8x1xf32>
    %20 = arith.subf %16, %19 : vector<8x1xf32>
    %21 = math.exp %20 : vector<8x1xf32>
    %22 = vector.broadcast %19 : vector<8x1xf32> to vector<8x16xf32>
    %23 = arith.subf %14, %22 : vector<8x16xf32>
    %24 = math.exp %23 : vector<8x16xf32>
    %c0_14 = arith.constant 0 : index
    %c0_15 = arith.constant 0 : index
    %c0_16 = arith.constant 0 : index
    %25 = vector.load %arg8[%c0_14, %c0_15, %c0_16] : memref<4x8x1xf32, #tpu.memory_space<vmem>>, vector<1x8x1xf32>
    %26 = vector.shape_cast %25 : vector<1x8x1xf32> to vector<8x1xf32>
    %27 = arith.mulf %21, %26 : vector<8x1xf32>
    %cst_17 = arith.constant dense<0.000000e+00> : vector<8xf32>
    %28 = vector.multi_reduction <add>, %24, %cst_17 [1] : vector<8x16xf32> to vector<8xf32>
    %29 = vector.shape_cast %28 : vector<8xf32> to vector<8x1xf32>
    %30 = arith.addf %27, %29 : vector<8x1xf32>
    %c0_18 = arith.constant 0 : index
    %c0_19 = arith.constant 0 : index
    %c0_20 = arith.constant 0 : index
    %31 = vector.load %arg8[%c0_18, %c0_19, %c0_20] : memref<4x8x1xf32, #tpu.memory_space<vmem>>, vector<1x8x1xf32>
    %32 = vector.shape_cast %31 : vector<1x8x1xf32> to vector<8x1xf32>
    %33 = vector.shape_cast %30 : vector<8x1xf32> to vector<1x8x1xf32>
    tpu.vector_store %arg8[%c0_18, %c0_19, %c0_20], %33 {strides = array<i32>} : memref<4x8x1xf32, #tpu.memory_space<vmem>>, vector<1x8x1xf32>,
    %c0_21 = arith.constant 0 : index
    %c0_22 = arith.constant 0 : index
    %34 = vector.load %arg9[%c0_21, %c0_22] : memref<8x32xf32, #tpu.memory_space<vmem>>, vector<8x8xf32>
    %35 = vector.broadcast %21 : vector<8x1xf32> to vector<8x8xf32>
    %36 = arith.mulf %35, %34 : vector<8x8xf32>
    %37 = arith.truncf %24 : vector<8x16xf32> to vector<8x16xbf16>
    %cst_23 = arith.constant dense<0.000000e+00> : vector<8x8xf32>
    %38 = tpu.matmul %37, %13, %cst_23 {dimension_numbers = #tpu.dot_dimension_numbers<[1], [0], [0], [1], [0, 0, 1, 1], [], []>} : vector<8x16xbf16>, vector<16x8xbf16>, vector<8x8xf32> -> vector<8x8xf32>
    %39 = arith.addf %36, %38 : vector<8x8xf32>
    %c0_24 = arith.constant 0 : index
    %c0_25 = arith.constant 0 : index
    %40 = vector.load %arg9[%c0_24, %c0_25] : memref<8x32xf32, #tpu.memory_space<vmem>>, vector<8x8xf32>
    tpu.vector_store %arg9[%c0_24, %c0_25], %39 {strides = array<i32>} : memref<8x32xf32, #tpu.memory_space<vmem>>, vector<8x8xf32>,
    %c0_26 = arith.constant 0 : index
    %c0_27 = arith.constant 0 : index
    %c0_28 = arith.constant 0 : index
    %41 = vector.load %arg7[%c0_26, %c0_27, %c0_28] : memref<4x8x1xf32, #tpu.memory_space<vmem>>, vector<1x8x1xf32>
    %42 = vector.shape_cast %41 : vector<1x8x1xf32> to vector<8x1xf32>
    %43 = vector.shape_cast %19 : vector<8x1xf32> to vector<1x8x1xf32>
    tpu.vector_store %arg7[%c0_26, %c0_27, %c0_28], %43 {strides = array<i32>} : memref<4x8x1xf32, #tpu.memory_space<vmem>>, vector<1x8x1xf32>,
    %44 = vector.extract_strided_slice %4 {offsets = [0, 8], sizes = [8, 8], strides = [1, 1]} : vector<8x32xbf16> to vector<8x8xbf16>
    %cst_29 = arith.constant 3.535160e-01 : bf16
    %45 = vector.broadcast %cst_29 : bf16 to vector<8x8xbf16>
    %46 = arith.mulf %44, %45 : vector<8x8xbf16>
    %47 = vector.extract_strided_slice %6 {offsets = [0, 8], sizes = [16, 8], strides = [1, 1]} : vector<16x64xbf16> to vector<16x8xbf16>
    %48 = vector.extract_strided_slice %8 {offsets = [0, 40], sizes = [16, 8], strides = [1, 1]} : vector<16x64xbf16> to vector<16x8xbf16>
    %cst_30 = arith.constant dense<0.000000e+00> : vector<8x16xf32>
    %49 = tpu.matmul %46, %47, %cst_30 {dimension_numbers = #tpu.dot_dimension_numbers<[1], [1], [0], [0], [0, 0, 1, 0], [], []>} : vector<8x8xbf16>, vector<16x8xbf16>, vector<8x16xf32> -> vector<8x16xf32>
    %c1 = arith.constant 1 : index
    %c0_31 = arith.constant 0 : index
    %c0_32 = arith.constant 0 : index
    %50 = vector.load %arg7[%c1, %c0_31, %c0_32] : memref<4x8x1xf32, #tpu.memory_space<vmem>>, vector<1x8x1xf32>
    %51 = vector.shape_cast %50 : vector<1x8x1xf32> to vector<8x1xf32>
    %cst_33 = arith.constant dense<0xFF800000> : vector<8xf32>
    %52 = vector.multi_reduction <maximumf>, %49, %cst_33 [1] : vector<8x16xf32> to vector<8xf32>
    %53 = vector.shape_cast %52 : vector<8xf32> to vector<8x1xf32>
    %54 = arith.maximumf %51, %53 : vector<8x1xf32>
    %55 = arith.subf %51, %54 : vector<8x1xf32>
    %56 = math.exp %55 : vector<8x1xf32>
    %57 = vector.broadcast %54 : vector<8x1xf32> to vector<8x16xf32>
    %58 = arith.subf %49, %57 : vector<8x16xf32>
    %59 = math.exp %58 : vector<8x16xf32>
    %c1_34 = arith.constant 1 : index
    %c0_35 = arith.constant 0 : index
    %c0_36 = arith.constant 0 : index
    %60 = vector.load %arg8[%c1_34, %c0_35, %c0_36] : memref<4x8x1xf32, #tpu.memory_space<vmem>>, vector<1x8x1xf32>
    %61 = vector.shape_cast %60 : vector<1x8x1xf32> to vector<8x1xf32>
    %62 = arith.mulf %56, %61 : vector<8x1xf32>
    %cst_37 = arith.constant dense<0.000000e+00> : vector<8xf32>
    %63 = vector.multi_reduction <add>, %59, %cst_37 [1] : vector<8x16xf32> to vector<8xf32>
    %64 = vector.shape_cast %63 : vector<8xf32> to vector<8x1xf32>
    %65 = arith.addf %62, %64 : vector<8x1xf32>
    %c1_38 = arith.constant 1 : index
    %c0_39 = arith.constant 0 : index
    %c0_40 = arith.constant 0 : index
    %66 = vector.load %arg8[%c1_38, %c0_39, %c0_40] : memref<4x8x1xf32, #tpu.memory_space<vmem>>, vector<1x8x1xf32>
    %67 = vector.shape_cast %66 : vector<1x8x1xf32> to vector<8x1xf32>
    %68 = vector.shape_cast %65 : vector<8x1xf32> to vector<1x8x1xf32>
    tpu.vector_store %arg8[%c1_38, %c0_39, %c0_40], %68 {strides = array<i32>} : memref<4x8x1xf32, #tpu.memory_space<vmem>>, vector<1x8x1xf32>,
    %c0_41 = arith.constant 0 : index
    %c8 = arith.constant 8 : index
    %69 = vector.load %arg9[%c0_41, %c8] : memref<8x32xf32, #tpu.memory_space<vmem>>, vector<8x8xf32>
    %70 = vector.broadcast %56 : vector<8x1xf32> to vector<8x8xf32>
    %71 = arith.mulf %70, %69 : vector<8x8xf32>
    %72 = arith.truncf %59 : vector<8x16xf32> to vector<8x16xbf16>
    %cst_42 = arith.constant dense<0.000000e+00> : vector<8x8xf32>
    %73 = tpu.matmul %72, %48, %cst_42 {dimension_numbers = #tpu.dot_dimension_numbers<[1], [0], [0], [1], [0, 0, 1, 1], [], []>} : vector<8x16xbf16>, vector<16x8xbf16>, vector<8x8xf32> -> vector<8x8xf32>
    %74 = arith.addf %71, %73 : vector<8x8xf32>
    %c0_43 = arith.constant 0 : index
    %c8_44 = arith.constant 8 : index
    %75 = vector.load %arg9[%c0_43, %c8_44] : memref<8x32xf32, #tpu.memory_space<vmem>>, vector<8x8xf32>
    tpu.vector_store %arg9[%c0_43, %c8_44], %74 {strides = array<i32>} : memref<8x32xf32, #tpu.memory_space<vmem>>, vector<8x8xf32>,
    %c1_45 = arith.constant 1 : index
    %c0_46 = arith.constant 0 : index
    %c0_47 = arith.constant 0 : index
    %76 = vector.load %arg7[%c1_45, %c0_46, %c0_47] : memref<4x8x1xf32, #tpu.memory_space<vmem>>, vector<1x8x1xf32>
    %77 = vector.shape_cast %76 : vector<1x8x1xf32> to vector<8x1xf32>
    %78 = vector.shape_cast %54 : vector<8x1xf32> to vector<1x8x1xf32>
    tpu.vector_store %arg7[%c1_45, %c0_46, %c0_47], %78 {strides = array<i32>} : memref<4x8x1xf32, #tpu.memory_space<vmem>>, vector<1x8x1xf32>,
    %79 = vector.extract_strided_slice %4 {offsets = [0, 16], sizes = [8, 8], strides = [1, 1]} : vector<8x32xbf16> to vector<8x8xbf16>
    %cst_48 = arith.constant 3.535160e-01 : bf16
    %80 = vector.broadcast %cst_48 : bf16 to vector<8x8xbf16>
    %81 = arith.mulf %79, %80 : vector<8x8xbf16>
    %82 = vector.extract_strided_slice %6 {offsets = [0, 16], sizes = [16, 8], strides = [1, 1]} : vector<16x64xbf16> to vector<16x8xbf16>
    %83 = vector.extract_strided_slice %8 {offsets = [0, 48], sizes = [16, 8], strides = [1, 1]} : vector<16x64xbf16> to vector<16x8xbf16>
    %cst_49 = arith.constant dense<0.000000e+00> : vector<8x16xf32>
    %84 = tpu.matmul %81, %82, %cst_49 {dimension_numbers = #tpu.dot_dimension_numbers<[1], [1], [0], [0], [0, 0, 1, 0], [], []>} : vector<8x8xbf16>, vector<16x8xbf16>, vector<8x16xf32> -> vector<8x16xf32>
    %c2 = arith.constant 2 : index
    %c0_50 = arith.constant 0 : index
    %c0_51 = arith.constant 0 : index
    %85 = vector.load %arg7[%c2, %c0_50, %c0_51] : memref<4x8x1xf32, #tpu.memory_space<vmem>>, vector<1x8x1xf32>
    %86 = vector.shape_cast %85 : vector<1x8x1xf32> to vector<8x1xf32>
    %cst_52 = arith.constant dense<0xFF800000> : vector<8xf32>
    %87 = vector.multi_reduction <maximumf>, %84, %cst_52 [1] : vector<8x16xf32> to vector<8xf32>
    %88 = vector.shape_cast %87 : vector<8xf32> to vector<8x1xf32>
    %89 = arith.maximumf %86, %88 : vector<8x1xf32>
    %90 = arith.subf %86, %89 : vector<8x1xf32>
    %91 = math.exp %90 : vector<8x1xf32>
    %92 = vector.broadcast %89 : vector<8x1xf32> to vector<8x16xf32>
    %93 = arith.subf %84, %92 : vector<8x16xf32>
    %94 = math.exp %93 : vector<8x16xf32>
    %c2_53 = arith.constant 2 : index
    %c0_54 = arith.constant 0 : index
    %c0_55 = arith.constant 0 : index
    %95 = vector.load %arg8[%c2_53, %c0_54, %c0_55] : memref<4x8x1xf32, #tpu.memory_space<vmem>>, vector<1x8x1xf32>
    %96 = vector.shape_cast %95 : vector<1x8x1xf32> to vector<8x1xf32>
    %97 = arith.mulf %91, %96 : vector<8x1xf32>
    %cst_56 = arith.constant dense<0.000000e+00> : vector<8xf32>
    %98 = vector.multi_reduction <add>, %94, %cst_56 [1] : vector<8x16xf32> to vector<8xf32>
    %99 = vector.shape_cast %98 : vector<8xf32> to vector<8x1xf32>
    %100 = arith.addf %97, %99 : vector<8x1xf32>
    %c2_57 = arith.constant 2 : index
    %c0_58 = arith.constant 0 : index
    %c0_59 = arith.constant 0 : index
    %101 = vector.load %arg8[%c2_57, %c0_58, %c0_59] : memref<4x8x1xf32, #tpu.memory_space<vmem>>, vector<1x8x1xf32>
    %102 = vector.shape_cast %101 : vector<1x8x1xf32> to vector<8x1xf32>
    %103 = vector.shape_cast %100 : vector<8x1xf32> to vector<1x8x1xf32>
    tpu.vector_store %arg8[%c2_57, %c0_58, %c0_59], %103 {strides = array<i32>} : memref<4x8x1xf32, #tpu.memory_space<vmem>>, vector<1x8x1xf32>,
    %c0_60 = arith.constant 0 : index
    %c16 = arith.constant 16 : index
    %104 = vector.load %arg9[%c0_60, %c16] : memref<8x32xf32, #tpu.memory_space<vmem>>, vector<8x8xf32>
    %105 = vector.broadcast %91 : vector<8x1xf32> to vector<8x8xf32>
    %106 = arith.mulf %105, %104 : vector<8x8xf32>
    %107 = arith.truncf %94 : vector<8x16xf32> to vector<8x16xbf16>
    %cst_61 = arith.constant dense<0.000000e+00> : vector<8x8xf32>
    %108 = tpu.matmul %107, %83, %cst_61 {dimension_numbers = #tpu.dot_dimension_numbers<[1], [0], [0], [1], [0, 0, 1, 1], [], []>} : vector<8x16xbf16>, vector<16x8xbf16>, vector<8x8xf32> -> vector<8x8xf32>
    %109 = arith.addf %106, %108 : vector<8x8xf32>
    %c0_62 = arith.constant 0 : index
    %c16_63 = arith.constant 16 : index
    %110 = vector.load %arg9[%c0_62, %c16_63] : memref<8x32xf32, #tpu.memory_space<vmem>>, vector<8x8xf32>
    tpu.vector_store %arg9[%c0_62, %c16_63], %109 {strides = array<i32>} : memref<8x32xf32, #tpu.memory_space<vmem>>, vector<8x8xf32>,
    %c2_64 = arith.constant 2 : index
    %c0_65 = arith.constant 0 : index
    %c0_66 = arith.constant 0 : index
    %111 = vector.load %arg7[%c2_64, %c0_65, %c0_66] : memref<4x8x1xf32, #tpu.memory_space<vmem>>, vector<1x8x1xf32>
    %112 = vector.shape_cast %111 : vector<1x8x1xf32> to vector<8x1xf32>
    %113 = vector.shape_cast %89 : vector<8x1xf32> to vector<1x8x1xf32>
    tpu.vector_store %arg7[%c2_64, %c0_65, %c0_66], %113 {strides = array<i32>} : memref<4x8x1xf32, #tpu.memory_space<vmem>>, vector<1x8x1xf32>,
    %114 = vector.extract_strided_slice %4 {offsets = [0, 24], sizes = [8, 8], strides = [1, 1]} : vector<8x32xbf16> to vector<8x8xbf16>
    %cst_67 = arith.constant 3.535160e-01 : bf16
    %115 = vector.broadcast %cst_67 : bf16 to vector<8x8xbf16>
    %116 = arith.mulf %114, %115 : vector<8x8xbf16>
    %117 = vector.extract_strided_slice %6 {offsets = [0, 24], sizes = [16, 8], strides = [1, 1]} : vector<16x64xbf16> to vector<16x8xbf16>
    %118 = vector.extract_strided_slice %8 {offsets = [0, 56], sizes = [16, 8], strides = [1, 1]} : vector<16x64xbf16> to vector<16x8xbf16>
    %cst_68 = arith.constant dense<0.000000e+00> : vector<8x16xf32>
    %119 = tpu.matmul %116, %117, %cst_68 {dimension_numbers = #tpu.dot_dimension_numbers<[1], [1], [0], [0], [0, 0, 1, 0], [], []>} : vector<8x8xbf16>, vector<16x8xbf16>, vector<8x16xf32> -> vector<8x16xf32>
    %c3 = arith.constant 3 : index
    %c0_69 = arith.constant 0 : index
    %c0_70 = arith.constant 0 : index
    %120 = vector.load %arg7[%c3, %c0_69, %c0_70] : memref<4x8x1xf32, #tpu.memory_space<vmem>>, vector<1x8x1xf32>
    %121 = vector.shape_cast %120 : vector<1x8x1xf32> to vector<8x1xf32>
    %cst_71 = arith.constant dense<0xFF800000> : vector<8xf32>
    %122 = vector.multi_reduction <maximumf>, %119, %cst_71 [1] : vector<8x16xf32> to vector<8xf32>
    %123 = vector.shape_cast %122 : vector<8xf32> to vector<8x1xf32>
    %124 = arith.maximumf %121, %123 : vector<8x1xf32>
    %125 = arith.subf %121, %124 : vector<8x1xf32>
    %126 = math.exp %125 : vector<8x1xf32>
    %127 = vector.broadcast %124 : vector<8x1xf32> to vector<8x16xf32>
    %128 = arith.subf %119, %127 : vector<8x16xf32>
    %129 = math.exp %128 : vector<8x16xf32>
    %c3_72 = arith.constant 3 : index
    %c0_73 = arith.constant 0 : index
    %c0_74 = arith.constant 0 : index
    %130 = vector.load %arg8[%c3_72, %c0_73, %c0_74] : memref<4x8x1xf32, #tpu.memory_space<vmem>>, vector<1x8x1xf32>
    %131 = vector.shape_cast %130 : vector<1x8x1xf32> to vector<8x1xf32>
    %132 = arith.mulf %126, %131 : vector<8x1xf32>
    %cst_75 = arith.constant dense<0.000000e+00> : vector<8xf32>
    %133 = vector.multi_reduction <add>, %129, %cst_75 [1] : vector<8x16xf32> to vector<8xf32>
    %134 = vector.shape_cast %133 : vector<8xf32> to vector<8x1xf32>
    %135 = arith.addf %132, %134 : vector<8x1xf32>
    %c3_76 = arith.constant 3 : index
    %c0_77 = arith.constant 0 : index
    %c0_78 = arith.constant 0 : index
    %136 = vector.load %arg8[%c3_76, %c0_77, %c0_78] : memref<4x8x1xf32, #tpu.memory_space<vmem>>, vector<1x8x1xf32>
    %137 = vector.shape_cast %136 : vector<1x8x1xf32> to vector<8x1xf32>
    %138 = vector.shape_cast %135 : vector<8x1xf32> to vector<1x8x1xf32>
    tpu.vector_store %arg8[%c3_76, %c0_77, %c0_78], %138 {strides = array<i32>} : memref<4x8x1xf32, #tpu.memory_space<vmem>>, vector<1x8x1xf32>,
    %c0_79 = arith.constant 0 : index
    %c24 = arith.constant 24 : index
    %139 = vector.load %arg9[%c0_79, %c24] : memref<8x32xf32, #tpu.memory_space<vmem>>, vector<8x8xf32>
    %140 = vector.broadcast %126 : vector<8x1xf32> to vector<8x8xf32>
    %141 = arith.mulf %140, %139 : vector<8x8xf32>
    %142 = arith.truncf %129 : vector<8x16xf32> to vector<8x16xbf16>
    %cst_80 = arith.constant dense<0.000000e+00> : vector<8x8xf32>
    %143 = tpu.matmul %142, %118, %cst_80 {dimension_numbers = #tpu.dot_dimension_numbers<[1], [0], [0], [1], [0, 0, 1, 1], [], []>} : vector<8x16xbf16>, vector<16x8xbf16>, vector<8x8xf32> -> vector<8x8xf32>
    %144 = arith.addf %141, %143 : vector<8x8xf32>
    %c0_81 = arith.constant 0 : index
    %c24_82 = arith.constant 24 : index
    %145 = vector.load %arg9[%c0_81, %c24_82] : memref<8x32xf32, #tpu.memory_space<vmem>>, vector<8x8xf32>
    tpu.vector_store %arg9[%c0_81, %c24_82], %144 {strides = array<i32>} : memref<8x32xf32, #tpu.memory_space<vmem>>, vector<8x8xf32>,
    %c3_83 = arith.constant 3 : index
    %c0_84 = arith.constant 0 : index
    %c0_85 = arith.constant 0 : index
    %146 = vector.load %arg7[%c3_83, %c0_84, %c0_85] : memref<4x8x1xf32, #tpu.memory_space<vmem>>, vector<1x8x1xf32>
    %147 = vector.shape_cast %146 : vector<1x8x1xf32> to vector<8x1xf32>
    %148 = vector.shape_cast %124 : vector<8x1xf32> to vector<1x8x1xf32>
    tpu.vector_store %arg7[%c3_83, %c0_84, %c0_85], %148 {strides = array<i32>} : memref<4x8x1xf32, #tpu.memory_space<vmem>>, vector<1x8x1xf32>,
    %c0_i32_86 = arith.constant 0 : i32
    %149 = arith.cmpi eq, %arg2, %c0_i32_86 : i32
    %150 = arith.extui %149 : i1 to i32
    %c0_i32_87 = arith.constant 0 : i32
    %151 = arith.cmpi ne, %150, %c0_i32_87 : i32
    scf.if %151 {
      %c0_88 = arith.constant 0 : index
      %c0_89 = arith.constant 0 : index
      %152 = vector.load %arg9[%c0_88, %c0_89] : memref<8x32xf32, #tpu.memory_space<vmem>>, vector<8x8xf32>
      %c0_90 = arith.constant 0 : index
      %c0_91 = arith.constant 0 : index
      %c0_92 = arith.constant 0 : index
      %153 = vector.load %arg8[%c0_90, %c0_91, %c0_92] : memref<4x8x1xf32, #tpu.memory_space<vmem>>, vector<1x8x1xf32>
      %154 = vector.shape_cast %153 : vector<1x8x1xf32> to vector<8x1xf32>
      %cst_93 = arith.constant 1.000000e+00 : f32
      %155 = vector.broadcast %cst_93 : f32 to vector<8x1xf32>
      %156 = arith.divf %155, %154 : vector<8x1xf32>
      %157 = vector.broadcast %156 : vector<8x1xf32> to vector<8x8xf32>
      %158 = arith.mulf %152, %157 : vector<8x8xf32>
      %c0_94 = arith.constant 0 : index
      %c8_95 = arith.constant 8 : index
      %159 = vector.load %arg9[%c0_94, %c8_95] : memref<8x32xf32, #tpu.memory_space<vmem>>, vector<8x8xf32>
      %c1_96 = arith.constant 1 : index
      %c0_97 = arith.constant 0 : index
      %c0_98 = arith.constant 0 : index
      %160 = vector.load %arg8[%c1_96, %c0_97, %c0_98] : memref<4x8x1xf32, #tpu.memory_space<vmem>>, vector<1x8x1xf32>
      %161 = vector.shape_cast %160 : vector<1x8x1xf32> to vector<8x1xf32>
      %cst_99 = arith.constant 1.000000e+00 : f32
      %162 = vector.broadcast %cst_99 : f32 to vector<8x1xf32>
      %163 = arith.divf %162, %161 : vector<8x1xf32>
      %164 = vector.broadcast %163 : vector<8x1xf32> to vector<8x8xf32>
      %165 = arith.mulf %159, %164 : vector<8x8xf32>
      %c0_100 = arith.constant 0 : index
      %c16_101 = arith.constant 16 : index
      %166 = vector.load %arg9[%c0_100, %c16_101] : memref<8x32xf32, #tpu.memory_space<vmem>>, vector<8x8xf32>
      %c2_102 = arith.constant 2 : index
      %c0_103 = arith.constant 0 : index
      %c0_104 = arith.constant 0 : index
      %167 = vector.load %arg8[%c2_102, %c0_103, %c0_104] : memref<4x8x1xf32, #tpu.memory_space<vmem>>, vector<1x8x1xf32>
      %168 = vector.shape_cast %167 : vector<1x8x1xf32> to vector<8x1xf32>
      %cst_105 = arith.constant 1.000000e+00 : f32
      %169 = vector.broadcast %cst_105 : f32 to vector<8x1xf32>
      %170 = arith.divf %169, %168 : vector<8x1xf32>
      %171 = vector.broadcast %170 : vector<8x1xf32> to vector<8x8xf32>
      %172 = arith.mulf %166, %171 : vector<8x8xf32>
      %c0_106 = arith.constant 0 : index
      %c24_107 = arith.constant 24 : index
      %173 = vector.load %arg9[%c0_106, %c24_107] : memref<8x32xf32, #tpu.memory_space<vmem>>, vector<8x8xf32>
      %c3_108 = arith.constant 3 : index
      %c0_109 = arith.constant 0 : index
      %c0_110 = arith.constant 0 : index
      %174 = vector.load %arg8[%c3_108, %c0_109, %c0_110] : memref<4x8x1xf32, #tpu.memory_space<vmem>>, vector<1x8x1xf32>
      %175 = vector.shape_cast %174 : vector<1x8x1xf32> to vector<8x1xf32>
      %cst_111 = arith.constant 1.000000e+00 : f32
      %176 = vector.broadcast %cst_111 : f32 to vector<8x1xf32>
      %177 = arith.divf %176, %175 : vector<8x1xf32>
      %178 = vector.broadcast %177 : vector<8x1xf32> to vector<8x8xf32>
      %179 = arith.mulf %173, %178 : vector<8x8xf32>
      %180 = tpu.concatenate %158, %165, %172, %179 in 1 : vector<8x8xf32>, vector<8x8xf32>, vector<8x8xf32>, vector<8x8xf32> -> vector<8x32xf32>
      %181 = arith.truncf %180 : vector<8x32xf32> to vector<8x32xbf16>
      %c0_112 = arith.constant 0 : index
      %c0_113 = arith.constant 0 : index
      %c0_114 = arith.constant 0 : index
      %182 = vector.load %arg6[%c0_112, %c0_113, %c0_114] : memref<1x8x32xbf16, #tpu.memory_space<vmem>>, vector<1x8x32xbf16>
      %183 = vector.shape_cast %182 : vector<1x8x32xbf16> to vector<8x32xbf16>
      %184 = vector.shape_cast %181 : vector<8x32xbf16> to vector<1x8x32xbf16>
      tpu.vector_store %arg6[%c0_112, %c0_113, %c0_114], %184 {strides = array<i32>} : memref<1x8x32xbf16, #tpu.memory_space<vmem>>, vector<1x8x32xbf16>,
    } else {
    }
    return
  }
  func.func @transform_0(%arg0: i32, %arg1: i32, %arg2: i32) -> (i32, i32, i32) {
    %c0_i32 = arith.constant 0 : i32
    %c0_i32_0 = arith.constant 0 : i32
    %c0_i32_1 = arith.constant 0 : i32
    return %arg0, %c0_i32, %c0_i32_0 : i32, i32, i32
  }
  func.func @transform_1(%arg0: i32, %arg1: i32, %arg2: i32) -> (i32, i32, i32) {
    %c0_i32 = arith.constant 0 : i32
    %c0_i32_0 = arith.constant 0 : i32
    return %arg0, %arg2, %c0_i32 : i32, i32, i32
  }
  func.func @transform_2(%arg0: i32, %arg1: i32, %arg2: i32) -> (i32, i32, i32) {
    %c0_i32 = arith.constant 0 : i32
    %c0_i32_0 = arith.constant 0 : i32
    return %arg0, %arg2, %c0_i32 : i32, i32, i32
  }
  func.func @transform_3(%arg0: i32, %arg1: i32, %arg2: i32) -> (i32, i32, i32) {
    %c0_i32 = arith.constant 0 : i32
    %c0_i32_0 = arith.constant 0 : i32
    return %arg0, %c0_i32, %arg1 : i32, i32, i32
  }
}

module attributes {stable_mosaic.version = 11 : i64} {
  func.func @_fused_matmul_kernel(%arg0: i32, %arg1: i32, %arg2: i32, %arg3: memref<16x128xbf16, #tpu.memory_space<vmem>>, %arg4: memref<128x32xbf16, #tpu.memory_space<vmem>>, %arg5: memref<1x32xf32, #tpu.memory_space<vmem>>, %arg6: memref<16x32xf32, #tpu.memory_space<vmem>>, %arg7: memref<16x32xf32, #tpu.memory_space<vmem>>, %arg8: memref<16x32xf32, #tpu.memory_space<vmem>>) attributes {dimension_semantics = [#tpu.dimension_semantics<parallel>, #tpu.dimension_semantics<parallel>, #tpu.dimension_semantics<arbitrary>], iteration_bounds = array<i64: 1, 1, 1>, scalar_prefetch = 0 : i64, scratch_operands = 1 : i64, tpu.core_type = #tpu.core_type<tc>, window_params = [{transform_indices = @transform_0, window_bounds = array<i64: 16, 128>}, {transform_indices = @transform_1, window_bounds = array<i64: 128, 32>}, {transform_indices = @transform_2, window_bounds = array<i64: 1, 32>}, {transform_indices = @transform_3, window_bounds = array<i64: 16, 32>}, {transform_indices = @transform_4, window_bounds = array<i64: 16, 32>}]} {
    %c0_i32 = arith.constant 0 : i32
    %0 = arith.cmpi eq, %arg2, %c0_i32 : i32
    %1 = arith.extui %0 : i1 to i32
    %c0_i32_0 = arith.constant 0 : i32
    %2 = arith.cmpi ne, %1, %c0_i32_0 : i32
    scf.if %2 {
      %cst_10 = arith.constant 0.000000e+00 : f32
      %12 = vector.broadcast %cst_10 : f32 to vector<16x32xf32>
      %c0_11 = arith.constant 0 : index
      %c0_12 = arith.constant 0 : index
      %13 = vector.load %arg8[%c0_11, %c0_12] : memref<16x32xf32, #tpu.memory_space<vmem>>, vector<16x32xf32>
      tpu.vector_store %arg8[%c0_11, %c0_12], %12 {strides = array<i32>} : memref<16x32xf32, #tpu.memory_space<vmem>>, vector<16x32xf32>,
    } else {
    }
    %c0 = arith.constant 0 : index
    %c0_1 = arith.constant 0 : index
    %3 = vector.load %arg3[%c0, %c0_1] : memref<16x128xbf16, #tpu.memory_space<vmem>>, vector<16x128xbf16>
    %c0_2 = arith.constant 0 : index
    %c0_3 = arith.constant 0 : index
    %4 = vector.load %arg8[%c0_2, %c0_3] : memref<16x32xf32, #tpu.memory_space<vmem>>, vector<16x32xf32>
    %c0_4 = arith.constant 0 : index
    %c0_5 = arith.constant 0 : index
    %5 = vector.load %arg4[%c0_4, %c0_5] : memref<128x32xbf16, #tpu.memory_space<vmem>>, vector<128x32xbf16>
    %cst = arith.constant dense<0.000000e+00> : vector<16x32xf32>
    %6 = tpu.matmul %3, %5, %cst {dimension_numbers = #tpu.dot_dimension_numbers<[1], [0], [0], [1], [0, 0, 1, 1], [], []>} : vector<16x128xbf16>, vector<128x32xbf16>, vector<16x32xf32> -> vector<16x32xf32>
    %7 = arith.addf %4, %6 : vector<16x32xf32>
    %c0_6 = arith.constant 0 : index
    %c0_7 = arith.constant 0 : index
    %8 = vector.load %arg8[%c0_6, %c0_7] : memref<16x32xf32, #tpu.memory_space<vmem>>, vector<16x32xf32>
    tpu.vector_store %arg8[%c0_6, %c0_7], %7 {strides = array<i32>} : memref<16x32xf32, #tpu.memory_space<vmem>>, vector<16x32xf32>,
    %c0_i32_8 = arith.constant 0 : i32
    %9 = arith.cmpi eq, %arg2, %c0_i32_8 : i32
    %10 = arith.extui %9 : i1 to i32
    %c0_i32_9 = arith.constant 0 : i32
    %11 = arith.cmpi ne, %10, %c0_i32_9 : i32
    scf.if %11 {
      %c0_10 = arith.constant 0 : index
      %c0_11 = arith.constant 0 : index
      %12 = vector.load %arg8[%c0_10, %c0_11] : memref<16x32xf32, #tpu.memory_space<vmem>>, vector<16x32xf32>
      %c0_12 = arith.constant 0 : index
      %c0_13 = arith.constant 0 : index
      %13 = vector.load %arg5[%c0_12, %c0_13] : memref<1x32xf32, #tpu.memory_space<vmem>>, vector<1x32xf32>
      %14 = vector.broadcast %13 : vector<1x32xf32> to vector<16x32xf32>
      %15 = arith.addf %12, %14 : vector<16x32xf32>
      %c0_14 = arith.constant 0 : index
      %c0_15 = arith.constant 0 : index
      %16 = vector.load %arg6[%c0_14, %c0_15] : memref<16x32xf32, #tpu.memory_space<vmem>>, vector<16x32xf32>
      %17 = arith.addf %15, %16 : vector<16x32xf32>
      %c0_16 = arith.constant 0 : index
      %c0_17 = arith.constant 0 : index
      %18 = vector.load %arg7[%c0_16, %c0_17] : memref<16x32xf32, #tpu.memory_space<vmem>>, vector<16x32xf32>
      tpu.vector_store %arg7[%c0_16, %c0_17], %17 {strides = array<i32>} : memref<16x32xf32, #tpu.memory_space<vmem>>, vector<16x32xf32>,
    } else {
    }
    return
  }
  func.func @transform_0(%arg0: i32, %arg1: i32, %arg2: i32) -> (i32, i32) {
    %c0_i32 = arith.constant 0 : i32
    return %arg0, %arg2 : i32, i32
  }
  func.func @transform_1(%arg0: i32, %arg1: i32, %arg2: i32) -> (i32, i32) {
    %c0_i32 = arith.constant 0 : i32
    return %arg2, %arg1 : i32, i32
  }
  func.func @transform_2(%arg0: i32, %arg1: i32, %arg2: i32) -> (i32, i32) {
    %c0_i32 = arith.constant 0 : i32
    %c0_i32_0 = arith.constant 0 : i32
    return %c0_i32, %arg1 : i32, i32
  }
  func.func @transform_3(%arg0: i32, %arg1: i32, %arg2: i32) -> (i32, i32) {
    %c0_i32 = arith.constant 0 : i32
    return %arg0, %arg1 : i32, i32
  }
  func.func @transform_4(%arg0: i32, %arg1: i32, %arg2: i32) -> (i32, i32) {
    %c0_i32 = arith.constant 0 : i32
    return %arg0, %arg1 : i32, i32
  }
}

module attributes {stable_mosaic.version = 11 : i64} {
  func.func @_fused_matmul_kernel(%arg0: i32, %arg1: i32, %arg2: i32, %arg3: memref<16x32xf32, #tpu.memory_space<vmem>>, %arg4: memref<1x32xf32, #tpu.memory_space<vmem>>, %arg5: memref<1x32xf32, #tpu.memory_space<vmem>>, %arg6: memref<32x128xbf16, #tpu.memory_space<vmem>>, %arg7: memref<1x128xf32, #tpu.memory_space<vmem>>, %arg8: memref<16x128xbf16, #tpu.memory_space<vmem>>, %arg9: memref<16x128xf32, #tpu.memory_space<vmem>>, %arg10: memref<16x32xbf16, #tpu.memory_space<vmem>>) attributes {dimension_semantics = [#tpu.dimension_semantics<parallel>, #tpu.dimension_semantics<arbitrary>, #tpu.dimension_semantics<arbitrary>], iteration_bounds = array<i64: 1, 1, 1>, scalar_prefetch = 0 : i64, scratch_operands = 2 : i64, tpu.core_type = #tpu.core_type<tc>, window_params = [{transform_indices = @transform_0, window_bounds = array<i64: 16, 32>}, {transform_indices = @transform_1, window_bounds = array<i64: 1, 32>}, {transform_indices = @transform_2, window_bounds = array<i64: 1, 32>}, {transform_indices = @transform_3, window_bounds = array<i64: 32, 128>}, {transform_indices = @transform_4, window_bounds = array<i64: 1, 128>}, {transform_indices = @transform_5, window_bounds = array<i64: 16, 128>}]} {
    %c0_i32 = arith.constant 0 : i32
    %0 = arith.cmpi eq, %arg2, %c0_i32 : i32
    %1 = arith.extui %0 : i1 to i32
    %c0_i32_0 = arith.constant 0 : i32
    %2 = arith.cmpi ne, %1, %c0_i32_0 : i32
    scf.if %2 {
      %cst_12 = arith.constant 0.000000e+00 : f32
      %15 = vector.broadcast %cst_12 : f32 to vector<16x128xf32>
      %c0_13 = arith.constant 0 : index
      %c0_14 = arith.constant 0 : index
      %16 = vector.load %arg9[%c0_13, %c0_14] : memref<16x128xf32, #tpu.memory_space<vmem>>, vector<16x128xf32>
      tpu.vector_store %arg9[%c0_13, %c0_14], %15 {strides = array<i32>} : memref<16x128xf32, #tpu.memory_space<vmem>>, vector<16x128xf32>,
    } else {
    }
    %c0_i32_1 = arith.constant 0 : i32
    %3 = arith.cmpi eq, %arg1, %c0_i32_1 : i32
    %4 = arith.extui %3 : i1 to i32
    %c0_i32_2 = arith.constant 0 : i32
    %5 = arith.cmpi ne, %4, %c0_i32_2 : i32
    scf.if %5 {
      %c0_12 = arith.constant 0 : index
      %c0_13 = arith.constant 0 : index
      %15 = vector.load %arg3[%c0_12, %c0_13] : memref<16x32xf32, #tpu.memory_space<vmem>>, vector<16x32xf32>
      %cst_14 = arith.constant dense<0.000000e+00> : vector<16xf32>
      %16 = vector.multi_reduction <add>, %15, %cst_14 [1] : vector<16x32xf32> to vector<16xf32>
      %17 = vector.shape_cast %16 : vector<16xf32> to vector<16x1xf32>
      %cst_15 = arith.constant 3.200000e+01 : f32
      %18 = vector.broadcast %cst_15 : f32 to vector<16x1xf32>
      %19 = arith.divf %17, %18 : vector<16x1xf32>
      %20 = vector.broadcast %19 : vector<16x1xf32> to vector<16x32xf32>
      %21 = arith.subf %15, %20 : vector<16x32xf32>
      %22 = arith.mulf %21, %21 : vector<16x32xf32>
      %cst_16 = arith.constant dense<0.000000e+00> : vector<16xf32>
      %23 = vector.multi_reduction <add>, %22, %cst_16 [1] : vector<16x32xf32> to vector<16xf32>
      %24 = vector.shape_cast %23 : vector<16xf32> to vector<16x1xf32>
      %cst_17 = arith.constant 3.200000e+01 : f32
      %25 = vector.broadcast %cst_17 : f32 to vector<16x1xf32>
      %26 = arith.divf %24, %25 : vector<16x1xf32>
      %cst_18 = arith.constant 9.99999974E-6 : f32
      %27 = vector.broadcast %cst_18 : f32 to vector<16x1xf32>
      %28 = arith.addf %26, %27 : vector<16x1xf32>
      %29 = math.rsqrt %28 : vector<16x1xf32>
      %30 = vector.broadcast %29 : vector<16x1xf32> to vector<16x32xf32>
      %31 = arith.mulf %21, %30 : vector<16x32xf32>
      %c0_19 = arith.constant 0 : index
      %c0_20 = arith.constant 0 : index
      %32 = vector.load %arg4[%c0_19, %c0_20] : memref<1x32xf32, #tpu.memory_space<vmem>>, vector<1x32xf32>
      %33 = vector.broadcast %32 : vector<1x32xf32> to vector<16x32xf32>
      %34 = arith.mulf %31, %33 : vector<16x32xf32>
      %c0_21 = arith.constant 0 : index
      %c0_22 = arith.constant 0 : index
      %35 = vector.load %arg5[%c0_21, %c0_22] : memref<1x32xf32, #tpu.memory_space<vmem>>, vector<1x32xf32>
      %36 = vector.broadcast %35 : vector<1x32xf32> to vector<16x32xf32>
      %37 = arith.addf %34, %36 : vector<16x32xf32>
      %38 = arith.truncf %37 : vector<16x32xf32> to vector<16x32xbf16>
      %c0_23 = arith.constant 0 : index
      %c0_24 = arith.constant 0 : index
      %39 = vector.load %arg10[%c0_23, %c0_24] : memref<16x32xbf16, #tpu.memory_space<vmem>>, vector<16x32xbf16>
      tpu.vector_store %arg10[%c0_23, %c0_24], %38 {strides = array<i32>} : memref<16x32xbf16, #tpu.memory_space<vmem>>, vector<16x32xbf16>,
    } else {
    }
    %c0 = arith.constant 0 : index
    %c0_3 = arith.constant 0 : index
    %6 = vector.load %arg10[%c0, %c0_3] : memref<16x32xbf16, #tpu.memory_space<vmem>>, vector<16x32xbf16>
    %c0_4 = arith.constant 0 : index
    %c0_5 = arith.constant 0 : index
    %7 = vector.load %arg9[%c0_4, %c0_5] : memref<16x128xf32, #tpu.memory_space<vmem>>, vector<16x128xf32>
    %c0_6 = arith.constant 0 : index
    %c0_7 = arith.constant 0 : index
    %8 = vector.load %arg6[%c0_6, %c0_7] : memref<32x128xbf16, #tpu.memory_space<vmem>>, vector<32x128xbf16>
    %cst = arith.constant dense<0.000000e+00> : vector<16x128xf32>
    %9 = tpu.matmul %6, %8, %cst {dimension_numbers = #tpu.dot_dimension_numbers<[1], [0], [0], [1], [0, 0, 1, 1], [], []>} : vector<16x32xbf16>, vector<32x128xbf16>, vector<16x128xf32> -> vector<16x128xf32>
    %10 = arith.addf %7, %9 : vector<16x128xf32>
    %c0_8 = arith.constant 0 : index
    %c0_9 = arith.constant 0 : index
    %11 = vector.load %arg9[%c0_8, %c0_9] : memref<16x128xf32, #tpu.memory_space<vmem>>, vector<16x128xf32>
    tpu.vector_store %arg9[%c0_8, %c0_9], %10 {strides = array<i32>} : memref<16x128xf32, #tpu.memory_space<vmem>>, vector<16x128xf32>,
    %c0_i32_10 = arith.constant 0 : i32
    %12 = arith.cmpi eq, %arg2, %c0_i32_10 : i32
    %13 = arith.extui %12 : i1 to i32
    %c0_i32_11 = arith.constant 0 : i32
    %14 = arith.cmpi ne, %13, %c0_i32_11 : i32
    scf.if %14 {
      %c0_12 = arith.constant 0 : index
      %c0_13 = arith.constant 0 : index
      %15 = vector.load %arg9[%c0_12, %c0_13] : memref<16x128xf32, #tpu.memory_space<vmem>>, vector<16x128xf32>
      %c0_14 = arith.constant 0 : index
      %c0_15 = arith.constant 0 : index
      %16 = vector.load %arg7[%c0_14, %c0_15] : memref<1x128xf32, #tpu.memory_space<vmem>>, vector<1x128xf32>
      %17 = vector.broadcast %16 : vector<1x128xf32> to vector<16x128xf32>
      %18 = arith.addf %15, %17 : vector<16x128xf32>
      %cst_16 = arith.constant 5.000000e-01 : f32
      %19 = vector.broadcast %cst_16 : f32 to vector<16x128xf32>
      %20 = arith.mulf %19, %18 : vector<16x128xf32>
      %cst_17 = arith.constant 0.707106769 : f32
      %21 = vector.broadcast %cst_17 : f32 to vector<16x128xf32>
      %22 = arith.mulf %18, %21 : vector<16x128xf32>
      %23 = math.absf %22 : vector<16x128xf32>
      %cst_18 = arith.constant 0.327591091 : f32
      %24 = vector.broadcast %cst_18 : f32 to vector<16x128xf32>
      %25 = arith.mulf %24, %23 : vector<16x128xf32>
      %cst_19 = arith.constant 1.000000e+00 : f32
      %26 = vector.broadcast %cst_19 : f32 to vector<16x128xf32>
      %27 = arith.addf %26, %25 : vector<16x128xf32>
      %cst_20 = arith.constant 1.000000e+00 : f32
      %28 = vector.broadcast %cst_20 : f32 to vector<16x128xf32>
      %29 = arith.divf %28, %27 : vector<16x128xf32>
      %cst_21 = arith.constant 1.06140542 : f32
      %30 = vector.broadcast %cst_21 : f32 to vector<16x128xf32>
      %31 = arith.mulf %30, %29 : vector<16x128xf32>
      %cst_22 = arith.constant -1.45315206 : f32
      %32 = vector.broadcast %cst_22 : f32 to vector<16x128xf32>
      %33 = arith.addf %31, %32 : vector<16x128xf32>
      %34 = arith.mulf %33, %29 : vector<16x128xf32>
      %cst_23 = arith.constant 1.42141378 : f32
      %35 = vector.broadcast %cst_23 : f32 to vector<16x128xf32>
      %36 = arith.addf %34, %35 : vector<16x128xf32>
      %37 = arith.mulf %36, %29 : vector<16x128xf32>
      %cst_24 = arith.constant -0.284496725 : f32
      %38 = vector.broadcast %cst_24 : f32 to vector<16x128xf32>
      %39 = arith.addf %37, %38 : vector<16x128xf32>
      %40 = arith.mulf %39, %29 : vector<16x128xf32>
      %cst_25 = arith.constant 0.254829586 : f32
      %41 = vector.broadcast %cst_25 : f32 to vector<16x128xf32>
      %42 = arith.addf %40, %41 : vector<16x128xf32>
      %43 = arith.mulf %42, %29 : vector<16x128xf32>
      %cst_26 = arith.constant 0.000000e+00 : f32
      %44 = vector.broadcast %cst_26 : f32 to vector<16x128xf32>
      %45 = arith.subf %44, %23 : vector<16x128xf32>
      %46 = arith.mulf %45, %23 : vector<16x128xf32>
      %47 = math.exp %46 : vector<16x128xf32>
      %48 = arith.mulf %43, %47 : vector<16x128xf32>
      %cst_27 = arith.constant 1.000000e+00 : f32
      %49 = vector.broadcast %cst_27 : f32 to vector<16x128xf32>
      %50 = arith.subf %49, %48 : vector<16x128xf32>
      %cst_28 = arith.constant 0.000000e+00 : f32
      %51 = vector.broadcast %cst_28 : f32 to vector<16x128xf32>
      %52 = arith.cmpf oge, %22, %51 : vector<16x128xf32>
      %cst_29 = arith.constant 0.000000e+00 : f32
      %53 = vector.broadcast %cst_29 : f32 to vector<16x128xf32>
      %54 = arith.subf %53, %50 : vector<16x128xf32>
      %55 = arith.select %52, %50, %54 : vector<16x128xi1>, vector<16x128xf32>
      %cst_30 = arith.constant 1.000000e+00 : f32
      %56 = vector.broadcast %cst_30 : f32 to vector<16x128xf32>
      %57 = arith.addf %56, %55 : vector<16x128xf32>
      %58 = arith.mulf %20, %57 : vector<16x128xf32>
      %59 = arith.truncf %58 : vector<16x128xf32> to vector<16x128xbf16>
      %c0_31 = arith.constant 0 : index
      %c0_32 = arith.constant 0 : index
      %60 = vector.load %arg8[%c0_31, %c0_32] : memref<16x128xbf16, #tpu.memory_space<vmem>>, vector<16x128xbf16>
      tpu.vector_store %arg8[%c0_31, %c0_32], %59 {strides = array<i32>} : memref<16x128xbf16, #tpu.memory_space<vmem>>, vector<16x128xbf16>,
    } else {
    }
    return
  }
  func.func @transform_0(%arg0: i32, %arg1: i32, %arg2: i32) -> (i32, i32) {
    %c0_i32 = arith.constant 0 : i32
    return %arg0, %arg2 : i32, i32
  }
  func.func @transform_1(%arg0: i32, %arg1: i32, %arg2: i32) -> (i32, i32) {
    %c0_i32 = arith.constant 0 : i32
    %c0_i32_0 = arith.constant 0 : i32
    return %c0_i32, %arg2 : i32, i32
  }
  func.func @transform_2(%arg0: i32, %arg1: i32, %arg2: i32) -> (i32, i32) {
    %c0_i32 = arith.constant 0 : i32
    %c0_i32_0 = arith.constant 0 : i32
    return %c0_i32, %arg2 : i32, i32
  }
  func.func @transform_3(%arg0: i32, %arg1: i32, %arg2: i32) -> (i32, i32) {
    %c0_i32 = arith.constant 0 : i32
    return %arg2, %arg1 : i32, i32
  }
  func.func @transform_4(%arg0: i32, %arg1: i32, %arg2: i32) -> (i32, i32) {
    %c0_i32 = arith.constant 0 : i32
    %c0_i32_0 = arith.constant 0 : i32
    return %c0_i32, %arg1 : i32, i32
  }
  func.func @transform_5(%arg0: i32, %arg1: i32, %arg2: i32) -> (i32, i32) {
    %c0_i32 = arith.constant 0 : i32
    return %arg0, %arg1 : i32, i32
  }
}

module attributes {stable_mosaic.version = 11 : i64} {
  func.func @_fused_matmul_kernel(%arg0: i32, %arg1: i32, %arg2: i32, %arg3: memref<16x32xf32, #tpu.memory_space<vmem>>, %arg4: memref<1x32xf32, #tpu.memory_space<vmem>>, %arg5: memref<1x32xf32, #tpu.memory_space<vmem>>, %arg6: memref<32x64xbf16, #tpu.memory_space<vmem>>, %arg7: memref<1x64xf32, #tpu.memory_space<vmem>>, %arg8: memref<16x64xf32, #tpu.memory_space<vmem>>, %arg9: memref<16x64xf32, #tpu.memory_space<vmem>>, %arg10: memref<16x32xbf16, #tpu.memory_space<vmem>>) attributes {dimension_semantics = [#tpu.dimension_semantics<parallel>, #tpu.dimension_semantics<arbitrary>, #tpu.dimension_semantics<arbitrary>], iteration_bounds = array<i64: 1, 1, 1>, scalar_prefetch = 0 : i64, scratch_operands = 2 : i64, tpu.core_type = #tpu.core_type<tc>, window_params = [{transform_indices = @transform_0, window_bounds = array<i64: 16, 32>}, {transform_indices = @transform_1, window_bounds = array<i64: 1, 32>}, {transform_indices = @transform_2, window_bounds = array<i64: 1, 32>}, {transform_indices = @transform_3, window_bounds = array<i64: 32, 64>}, {transform_indices = @transform_4, window_bounds = array<i64: 1, 64>}, {transform_indices = @transform_5, window_bounds = array<i64: 16, 64>}]} {
    %c0_i32 = arith.constant 0 : i32
    %0 = arith.cmpi eq, %arg2, %c0_i32 : i32
    %1 = arith.extui %0 : i1 to i32
    %c0_i32_0 = arith.constant 0 : i32
    %2 = arith.cmpi ne, %1, %c0_i32_0 : i32
    scf.if %2 {
      %cst_12 = arith.constant 0.000000e+00 : f32
      %15 = vector.broadcast %cst_12 : f32 to vector<16x64xf32>
      %c0_13 = arith.constant 0 : index
      %c0_14 = arith.constant 0 : index
      %16 = vector.load %arg9[%c0_13, %c0_14] : memref<16x64xf32, #tpu.memory_space<vmem>>, vector<16x64xf32>
      tpu.vector_store %arg9[%c0_13, %c0_14], %15 {strides = array<i32>} : memref<16x64xf32, #tpu.memory_space<vmem>>, vector<16x64xf32>,
    } else {
    }
    %c0_i32_1 = arith.constant 0 : i32
    %3 = arith.cmpi eq, %arg1, %c0_i32_1 : i32
    %4 = arith.extui %3 : i1 to i32
    %c0_i32_2 = arith.constant 0 : i32
    %5 = arith.cmpi ne, %4, %c0_i32_2 : i32
    scf.if %5 {
      %c0_12 = arith.constant 0 : index
      %c0_13 = arith.constant 0 : index
      %15 = vector.load %arg3[%c0_12, %c0_13] : memref<16x32xf32, #tpu.memory_space<vmem>>, vector<16x32xf32>
      %cst_14 = arith.constant dense<0.000000e+00> : vector<16xf32>
      %16 = vector.multi_reduction <add>, %15, %cst_14 [1] : vector<16x32xf32> to vector<16xf32>
      %17 = vector.shape_cast %16 : vector<16xf32> to vector<16x1xf32>
      %cst_15 = arith.constant 3.200000e+01 : f32
      %18 = vector.broadcast %cst_15 : f32 to vector<16x1xf32>
      %19 = arith.divf %17, %18 : vector<16x1xf32>
      %20 = vector.broadcast %19 : vector<16x1xf32> to vector<16x32xf32>
      %21 = arith.subf %15, %20 : vector<16x32xf32>
      %22 = arith.mulf %21, %21 : vector<16x32xf32>
      %cst_16 = arith.constant dense<0.000000e+00> : vector<16xf32>
      %23 = vector.multi_reduction <add>, %22, %cst_16 [1] : vector<16x32xf32> to vector<16xf32>
      %24 = vector.shape_cast %23 : vector<16xf32> to vector<16x1xf32>
      %cst_17 = arith.constant 3.200000e+01 : f32
      %25 = vector.broadcast %cst_17 : f32 to vector<16x1xf32>
      %26 = arith.divf %24, %25 : vector<16x1xf32>
      %cst_18 = arith.constant 9.99999974E-6 : f32
      %27 = vector.broadcast %cst_18 : f32 to vector<16x1xf32>
      %28 = arith.addf %26, %27 : vector<16x1xf32>
      %29 = math.rsqrt %28 : vector<16x1xf32>
      %30 = vector.broadcast %29 : vector<16x1xf32> to vector<16x32xf32>
      %31 = arith.mulf %21, %30 : vector<16x32xf32>
      %c0_19 = arith.constant 0 : index
      %c0_20 = arith.constant 0 : index
      %32 = vector.load %arg4[%c0_19, %c0_20] : memref<1x32xf32, #tpu.memory_space<vmem>>, vector<1x32xf32>
      %33 = vector.broadcast %32 : vector<1x32xf32> to vector<16x32xf32>
      %34 = arith.mulf %31, %33 : vector<16x32xf32>
      %c0_21 = arith.constant 0 : index
      %c0_22 = arith.constant 0 : index
      %35 = vector.load %arg5[%c0_21, %c0_22] : memref<1x32xf32, #tpu.memory_space<vmem>>, vector<1x32xf32>
      %36 = vector.broadcast %35 : vector<1x32xf32> to vector<16x32xf32>
      %37 = arith.addf %34, %36 : vector<16x32xf32>
      %38 = arith.truncf %37 : vector<16x32xf32> to vector<16x32xbf16>
      %c0_23 = arith.constant 0 : index
      %c0_24 = arith.constant 0 : index
      %39 = vector.load %arg10[%c0_23, %c0_24] : memref<16x32xbf16, #tpu.memory_space<vmem>>, vector<16x32xbf16>
      tpu.vector_store %arg10[%c0_23, %c0_24], %38 {strides = array<i32>} : memref<16x32xbf16, #tpu.memory_space<vmem>>, vector<16x32xbf16>,
    } else {
    }
    %c0 = arith.constant 0 : index
    %c0_3 = arith.constant 0 : index
    %6 = vector.load %arg10[%c0, %c0_3] : memref<16x32xbf16, #tpu.memory_space<vmem>>, vector<16x32xbf16>
    %c0_4 = arith.constant 0 : index
    %c0_5 = arith.constant 0 : index
    %7 = vector.load %arg9[%c0_4, %c0_5] : memref<16x64xf32, #tpu.memory_space<vmem>>, vector<16x64xf32>
    %c0_6 = arith.constant 0 : index
    %c0_7 = arith.constant 0 : index
    %8 = vector.load %arg6[%c0_6, %c0_7] : memref<32x64xbf16, #tpu.memory_space<vmem>>, vector<32x64xbf16>
    %cst = arith.constant dense<0.000000e+00> : vector<16x64xf32>
    %9 = tpu.matmul %6, %8, %cst {dimension_numbers = #tpu.dot_dimension_numbers<[1], [0], [0], [1], [0, 0, 1, 1], [], []>} : vector<16x32xbf16>, vector<32x64xbf16>, vector<16x64xf32> -> vector<16x64xf32>
    %10 = arith.addf %7, %9 : vector<16x64xf32>
    %c0_8 = arith.constant 0 : index
    %c0_9 = arith.constant 0 : index
    %11 = vector.load %arg9[%c0_8, %c0_9] : memref<16x64xf32, #tpu.memory_space<vmem>>, vector<16x64xf32>
    tpu.vector_store %arg9[%c0_8, %c0_9], %10 {strides = array<i32>} : memref<16x64xf32, #tpu.memory_space<vmem>>, vector<16x64xf32>,
    %c0_i32_10 = arith.constant 0 : i32
    %12 = arith.cmpi eq, %arg2, %c0_i32_10 : i32
    %13 = arith.extui %12 : i1 to i32
    %c0_i32_11 = arith.constant 0 : i32
    %14 = arith.cmpi ne, %13, %c0_i32_11 : i32
    scf.if %14 {
      %c0_12 = arith.constant 0 : index
      %c0_13 = arith.constant 0 : index
      %15 = vector.load %arg9[%c0_12, %c0_13] : memref<16x64xf32, #tpu.memory_space<vmem>>, vector<16x64xf32>
      %c0_14 = arith.constant 0 : index
      %c0_15 = arith.constant 0 : index
      %16 = vector.load %arg7[%c0_14, %c0_15] : memref<1x64xf32, #tpu.memory_space<vmem>>, vector<1x64xf32>
      %17 = vector.broadcast %16 : vector<1x64xf32> to vector<16x64xf32>
      %18 = arith.addf %15, %17 : vector<16x64xf32>
      %c0_16 = arith.constant 0 : index
      %c0_17 = arith.constant 0 : index
      %19 = vector.load %arg8[%c0_16, %c0_17] : memref<16x64xf32, #tpu.memory_space<vmem>>, vector<16x64xf32>
      tpu.vector_store %arg8[%c0_16, %c0_17], %18 {strides = array<i32>} : memref<16x64xf32, #tpu.memory_space<vmem>>, vector<16x64xf32>,
    } else {
    }
    return
  }
  func.func @transform_0(%arg0: i32, %arg1: i32, %arg2: i32) -> (i32, i32) {
    %c0_i32 = arith.constant 0 : i32
    return %arg0, %arg2 : i32, i32
  }
  func.func @transform_1(%arg0: i32, %arg1: i32, %arg2: i32) -> (i32, i32) {
    %c0_i32 = arith.constant 0 : i32
    %c0_i32_0 = arith.constant 0 : i32
    return %c0_i32, %arg2 : i32, i32
  }
  func.func @transform_2(%arg0: i32, %arg1: i32, %arg2: i32) -> (i32, i32) {
    %c0_i32 = arith.constant 0 : i32
    %c0_i32_0 = arith.constant 0 : i32
    return %c0_i32, %arg2 : i32, i32
  }
  func.func @transform_3(%arg0: i32, %arg1: i32, %arg2: i32) -> (i32, i32) {
    %c0_i32 = arith.constant 0 : i32
    return %arg2, %arg1 : i32, i32
  }
  func.func @transform_4(%arg0: i32, %arg1: i32, %arg2: i32) -> (i32, i32) {
    %c0_i32 = arith.constant 0 : i32
    %c0_i32_0 = arith.constant 0 : i32
    return %c0_i32, %arg1 : i32, i32
  }
  func.func @transform_5(%arg0: i32, %arg1: i32, %arg2: i32) -> (i32, i32) {
    %c0_i32 = arith.constant 0 : i32
    return %arg0, %arg1 : i32, i32
  }
}

</mosaic_0001>

<llo_original>
// kernel: text_decoder_forward.22
$region0: #{text_decoder_forward.22}
  #allocation0 [shape = 'u32[]', space=smem, size = 0x4, offset = 0x4, fixed_abs, tag = 'smem constant byte address 0x4 - core index']
  #allocation1 [shape = 'u32[72,128]{1,0:T(1,128)}', space=vmem, size = 0x9000, scoped, tag = 'internal scratch']
  #allocation2 [shape = 'f32[16,32]{1,0:T(8,128)}', space=vmem, size = 0x2000, scoped, tag = 'scratch operand']
  #allocation3 [shape = 'bf16[16,32]{1,0:T(8,128)(2,1)}', space=vmem, size = 0x1000, scoped, tag = 'scratch operand']
  %s0 = inlined_call_operand.vmem [shape: f32[16,32], index: 0, kind: input, shape index: {}]
  %s1 = inlined_call_operand.vmem [shape: f32[1,32], index: 1, kind: input, shape index: {}]
  %s2 = inlined_call_operand.vmem [shape: f32[1,32], index: 2, kind: input, shape index: {}]
  %s3 = inlined_call_operand.vmem [shape: bf16[32,32], index: 3, kind: input, shape index: {}]
  %s4 = inlined_call_operand.vmem [shape: f32[1,32], index: 4, kind: input, shape index: {}]
  %s5 = inlined_call_operand.vmem [shape: bf16[16,32], index: 5, kind: output, shape index: {}]
  %s6 = sld [smem:[#allocation0]]
  $region42: #{text_decoder_forward.22} parent=0
    _
  %s8 = ssub.s32 1, %s6
  %s9 = scalar_select 0, %s8, %s6
  // Predicated region
  $region2: #{text_decoder_forward.22} parent=0 // pred_check
    _
  $region3: #{text_decoder_forward.22} parent=0 // pred_check_branch
    %11 = sbr.rel (0) target = $region5
  $region4: #{text_decoder_forward.22} parent=0 // pred_region
    _
  $region5: #{text_decoder_forward.22} parent=0 // pred_fallthru
    _
  // Predicated region
  $region6: #{text_decoder_forward.22} parent=0 // pred_check
    _
  $region7: #{text_decoder_forward.22} parent=0 // pred_check_branch
    %13 = sbr.rel (0) target = $region9
  $region8: #{text_decoder_forward.22} parent=0 // pred_region
    _
  $region9: #{text_decoder_forward.22} parent=0 // pred_fallthru
    _
  // Predicated region
  $region10: #{text_decoder_forward.22} parent=0 // pred_check
    _
  $region11: #{text_decoder_forward.22} parent=0 // pred_check_branch
    %15 = sbr.rel (0) target = $region13
  $region12: #{text_decoder_forward.22} parent=0 // pred_region
    _
  $region13: #{text_decoder_forward.22} parent=0 // pred_fallthru
    _
  // Predicated region
  $region14: #{text_decoder_forward.22} parent=0 // pred_check
    _
  $region15: #{text_decoder_forward.22} parent=0 // pred_check_branch
    %17 = sbr.rel (0) target = $region17
  $region16: #{text_decoder_forward.22} parent=0 // pred_region
    _
  $region17: #{text_decoder_forward.22} parent=0 // pred_fallthru
    _
  // Predicated region
  $region18: #{text_decoder_forward.22} parent=0 // pred_check
    _
  $region19: #{text_decoder_forward.22} parent=0 // pred_check_branch
    %19 = sbr.rel (0) target = $region21
  $region20: #{text_decoder_forward.22} parent=0 // pred_region
    _
  $region21: #{text_decoder_forward.22} parent=0 // pred_fallthru
    _
  %p21 = scmp.eq.s32.totalorder 0, 0
  // Predicated region
  $region22: #{text_decoder_forward.22} parent=0 // pred_check
    %p22 = pneg %p21
  $region23: #{text_decoder_forward.22} parent=0 // pred_check_branch
    %24 = sbr.rel (%p22) target = $region25
  $region24: #{text_decoder_forward.22} parent=0 // pred_region
    %vm25 = vcmask 261120
    %26 = vst.msk [vmem:[#allocation2] sm:$0xff] %vm25, 0.0
    %27 = vst.msk [vmem:[#allocation2 + $0x8] sm:$0xff] %vm25, 0.0
  $region25: #{text_decoder_forward.22} parent=0 // pred_fallthru
    _
  %p28 = scmp.eq.s32.totalorder 0, 0
  // Predicated region
  $region26: #{text_decoder_forward.22} parent=0 // pred_check
    %p29 = pneg %p28
  $region27: #{text_decoder_forward.22} parent=0 // pred_check_branch
    %31 = sbr.rel (%p29) target = $region29
  $region28: #{text_decoder_forward.22} parent=0 // pred_region
    %v32 = vld [vmem:[%s0] sm:$0xff]
    %v33 = vld [vmem:[%s0 + $0x8] sm:$0xff]
    %vm34 = vcmask 261120
    %v35 = vsel %vm34, %v32, 0.0
    %36 = vadd.xlane.f32.xlu0 %v35
    %v37 = vpop.xlane.xlu0 %36
    %v38 = vsel %vm34, %v33, 0.0
    %39 = vadd.xlane.f32.xlu0 %v38
    %v40 = vpop.xlane.xlu0 %39
    %v41 = vrcp.pop 32.0
    %v42 = vmul.f32 32.0, %v41
    %v43 = vsub.f32 1.0, %v42
    %v44 = vmul.f32 %v41, %v43
    %v45 = vadd.f32 %v41, %v44
    %vm46 = vweird.f32 %v41
    %v47 = vsel %vm46, %v41, %v45
    %v48 = vmul.f32 %v37, %v47
    %v49 = vmul.f32 %v40, %v47
    %v50 = vsub.f32 %v32, %v48
    %v51 = vsub.f32 %v33, %v49
    %v52 = vmul.f32 %v50, %v50
    %v53 = vmul.f32 %v51, %v51
    %v54 = vsel %vm34, %v52, 0.0
    %55 = vadd.xlane.f32.xlu0 %v54
    %v56 = vpop.xlane.xlu0 %55
    %v57 = vsel %vm34, %v53, 0.0
    %58 = vadd.xlane.f32.xlu0 %v57
    %v59 = vpop.xlane.xlu0 %58
    %v60 = vmul.f32 %v56, %v47
    %v61 = vmul.f32 %v59, %v47
    %v62 = vadd.f32 %v60, 1e-05
    %v63 = vadd.f32 %v61, 1e-05
    %v64 = vrsqrt.pop %v62
    %v65 = vmul.f32 %v64, %v62
    %v66 = vmul.f32 %v65, %v64
    %v67 = vmul.f32 0.5, %v66
    %v68 = vsub.f32 1.5, %v67
    %v69 = vmul.f32 %v64, %v68
    %vm70 = vweird.f32 %v62
    %vm71 = vweird.f32 %v64
    %vm72 = vmor %vm70, %vm71
    %v73 = vsel %vm72, %v64, %v69
    %v74 = vrsqrt.pop %v63
    %v75 = vmul.f32 %v74, %v63
    %v76 = vmul.f32 %v75, %v74
    %v77 = vmul.f32 0.5, %v76
    %v78 = vsub.f32 1.5, %v77
    %v79 = vmul.f32 %v74, %v78
    %vm80 = vweird.f32 %v63
    %vm81 = vweird.f32 %v74
    %vm82 = vmor %vm80, %vm81
    %v83 = vsel %vm82, %v74, %v79
    %v84 = vmul.f32 %v50, %v73
    %v85 = vmul.f32 %v51, %v83
    %v86 = vld [vmem:[%s1] sm:$0x1]
    %v88 = vperm.slane %v86, 0
    %v90 = vmul.f32 %v84, %v88
    %v91 = vmul.f32 %v85, %v88
    %v92 = vld [vmem:[%s2] sm:$0x1]
    %v94 = vperm.slane %v92, 0
    %v96 = vadd.f32 %v90, %v94
    %v97 = vadd.f32 %v91, %v94
    %v98 = vpack.c.bf16 %v96, %v96
    %v99 = vpack.c.bf16 %v97, %v97
    %vm100 = vcmask 257024
    %101 = vst.msk [vmem:[#allocation3] sm:$0xf] %vm100, %v98
    %102 = vst.msk [vmem:[#allocation3 + $0x4] sm:$0xf] %vm100, %v99
  $region29: #{text_decoder_forward.22} parent=0 // pred_fallthru
    _
  %v103 = vld [vmem:[#allocation3] sm:$0xf]
  %v104 = vld [vmem:[#allocation3 + $0x4] sm:$0xf]
  %v105 = vld [vmem:[#allocation2] sm:$0xff]
  %v106 = vld [vmem:[#allocation2 + $0x8] sm:$0xff]
  %v107 = vld [vmem:[%s3] sm:$0xf]
  %v108 = vld [vmem:[%s3 + $0x4] sm:$0xf]
  %v109 = vld [vmem:[%s3 + $0x8] sm:$0xf]
  %v110 = vld [vmem:[%s3 + $0xc] sm:$0xf]
  %v113 = vunpack.c.l.b16 %v103
  %v114 = vunpack.c.l.b16 %v104
  %v115 = vpack.c.b16 %v114, %v113
  %v120 = vunpack.c.l.b16 %v107
  %v121 = vunpack.c.l.b16 %v108
  %v122 = vunpack.c.l.b16 %v109
  %v123 = vunpack.c.l.b16 %v110
  %v124 = vpack.c.b16 %v121, %v120
  %v125 = vpack.c.b16 %v123, %v122
  %vm128 = vcmask 261120
  %v130 = vsel %vm128, %v115, 0
  %132 = vmatpush.bf16.msra.mxu0 0
  %133 = vmatpush.bf16.msra.mxu0 0
  %134 = vmatpush.bf16.msra.mxu0 0
  %135 = vmatpush.bf16.msra.mxu0 0
  %136 = vmatpush.bf16.msra.mxu0 0
  %137 = vmatpush.bf16.msra.mxu0 0
  %138 = vmatpush.bf16.msra.mxu0 %v125
  %139 = vmatpush.bf16.msra.mxu0 %v124
  %140 = vmatmul.bf16.gmra.mxu0 %v130
  %v141 = vpop.f32.mrf.mxu0
  %v142 = vadd.f32 0.0, %v141
  %v143 = vpop.f32.mrf.mxu0
  %v144 = vadd.f32 0.0, %v143
  %145 = vdwg.mxu0
  %v146 = vadd.f32 %v105, %v142
  %v147 = vadd.f32 %v106, %v144
  %148 = vst.msk [vmem:[#allocation2] sm:$0xff] %vm128, %v146
  %149 = vst.msk [vmem:[#allocation2 + $0x8] sm:$0xff] %vm128, %v147
  // Predicated region
  $region30: #{text_decoder_forward.22} parent=0 // pred_check
    %p150 = pneg %p21
  $region31: #{text_decoder_forward.22} parent=0 // pred_check_branch
    %152 = sbr.rel (%p150) target = $region33
  $region32: #{text_decoder_forward.22} parent=0 // pred_region
    %v153 = vld [vmem:[#allocation2] sm:$0xff]
    %v154 = vld [vmem:[#allocation2 + $0x8] sm:$0xff]
    %v155 = vld [vmem:[%s4] sm:$0x1]
    %v157 = vperm.slane %v155, 0
    %v159 = vadd.f32 %v153, %v157
    %v160 = vadd.f32 %v154, %v157
    %v161 = vpack.c.bf16 %v159, %v159
    %v162 = vpack.c.bf16 %v160, %v160
    %vm163 = vcmask 257024
    %164 = vst.msk [vmem:[%s5] sm:$0xf] %vm163, %v161
    %165 = vst.msk [vmem:[%s5 + $0x4] sm:$0xf] %vm163, %v162
  $region33: #{text_decoder_forward.22} parent=0 // pred_fallthru
    _
  // Predicated region
  $region34: #{text_decoder_forward.22} parent=0 // pred_check
    _
  $region35: #{text_decoder_forward.22} parent=0 // pred_check_branch
    %167 = sbr.rel (0) target = $region37
  $region36: #{text_decoder_forward.22} parent=0 // pred_region
    _
  $region37: #{text_decoder_forward.22} parent=0 // pred_fallthru
    _
  // Predicated region
  $region38: #{text_decoder_forward.22} parent=0 // pred_check
    _
  $region39: #{text_decoder_forward.22} parent=0 // pred_check_branch
    %169 = sbr.rel (0) target = $region41
  $region40: #{text_decoder_forward.22} parent=0 // pred_region
    _
  $region41: #{text_decoder_forward.22} parent=0 // pred_fallthru
    _

// kernel: text_decoder_forward.19
$region0: #{text_decoder_forward.19}
  #allocation0 [shape = 'u32[]', space=smem, size = 0x4, offset = 0x4, fixed_abs, tag = 'smem constant byte address 0x4 - core index']
  #allocation1 [shape = 'u32[72,128]{1,0:T(1,128)}', space=vmem, size = 0x9000, scoped, tag = 'internal scratch']
  #allocation2 [shape = 'f32[16,96]{1,0:T(8,128)}', space=vmem, size = 0x2000, scoped, tag = 'scratch operand']
  #allocation3 [shape = 'bf16[16,32]{1,0:T(8,128)(2,1)}', space=vmem, size = 0x1000, scoped, tag = 'scratch operand']
  %s0 = inlined_call_operand.vmem [shape: f32[16,32], index: 0, kind: input, shape index: {}]
  %s1 = inlined_call_operand.vmem [shape: f32[1,32], index: 1, kind: input, shape index: {}]
  %s2 = inlined_call_operand.vmem [shape: f32[1,32], index: 2, kind: input, shape index: {}]
  %s3 = inlined_call_operand.vmem [shape: bf16[32,96], index: 3, kind: input, shape index: {}]
  %s4 = inlined_call_operand.vmem [shape: f32[1,96], index: 4, kind: input, shape index: {}]
  %s5 = inlined_call_operand.vmem [shape: bf16[16,96], index: 5, kind: output, shape index: {}]
  %s6 = sld [smem:[#allocation0]]
  $region42: #{text_decoder_forward.19} parent=0
    _
  %s8 = ssub.s32 1, %s6
  %s9 = scalar_select 0, %s8, %s6
  // Predicated region
  $region2: #{text_decoder_forward.19} parent=0 // pred_check
    _
  $region3: #{text_decoder_forward.19} parent=0 // pred_check_branch
    %11 = sbr.rel (0) target = $region5
  $region4: #{text_decoder_forward.19} parent=0 // pred_region
    _
  $region5: #{text_decoder_forward.19} parent=0 // pred_fallthru
    _
  // Predicated region
  $region6: #{text_decoder_forward.19} parent=0 // pred_check
    _
  $region7: #{text_decoder_forward.19} parent=0 // pred_check_branch
    %13 = sbr.rel (0) target = $region9
  $region8: #{text_decoder_forward.19} parent=0 // pred_region
    _
  $region9: #{text_decoder_forward.19} parent=0 // pred_fallthru
    _
  // Predicated region
  $region10: #{text_decoder_forward.19} parent=0 // pred_check
    _
  $region11: #{text_decoder_forward.19} parent=0 // pred_check_branch
    %15 = sbr.rel (0) target = $region13
  $region12: #{text_decoder_forward.19} parent=0 // pred_region
    _
  $region13: #{text_decoder_forward.19} parent=0 // pred_fallthru
    _
  // Predicated region
  $region14: #{text_decoder_forward.19} parent=0 // pred_check
    _
  $region15: #{text_decoder_forward.19} parent=0 // pred_check_branch
    %17 = sbr.rel (0) target = $region17
  $region16: #{text_decoder_forward.19} parent=0 // pred_region
    _
  $region17: #{text_decoder_forward.19} parent=0 // pred_fallthru
    _
  // Predicated region
  $region18: #{text_decoder_forward.19} parent=0 // pred_check
    _
  $region19: #{text_decoder_forward.19} parent=0 // pred_check_branch
    %19 = sbr.rel (0) target = $region21
  $region20: #{text_decoder_forward.19} parent=0 // pred_region
    _
  $region21: #{text_decoder_forward.19} parent=0 // pred_fallthru
    _
  %p21 = scmp.eq.s32.totalorder 0, 0
  // Predicated region
  $region22: #{text_decoder_forward.19} parent=0 // pred_check
    %p22 = pneg %p21
  $region23: #{text_decoder_forward.19} parent=0 // pred_check_branch
    %24 = sbr.rel (%p22) target = $region25
  $region24: #{text_decoder_forward.19} parent=0 // pred_region
    %vm25 = vcmask 785408
    %26 = vst.msk [vmem:[#allocation2] sm:$0xff] %vm25, 0.0
    %27 = vst.msk [vmem:[#allocation2 + $0x8] sm:$0xff] %vm25, 0.0
  $region25: #{text_decoder_forward.19} parent=0 // pred_fallthru
    _
  %p28 = scmp.eq.s32.totalorder 0, 0
  // Predicated region
  $region26: #{text_decoder_forward.19} parent=0 // pred_check
    %p29 = pneg %p28
  $region27: #{text_decoder_forward.19} parent=0 // pred_check_branch
    %31 = sbr.rel (%p29) target = $region29
  $region28: #{text_decoder_forward.19} parent=0 // pred_region
    %v32 = vld [vmem:[%s0] sm:$0xff]
    %v33 = vld [vmem:[%s0 + $0x8] sm:$0xff]
    %vm34 = vcmask 261120
    %v35 = vsel %vm34, %v32, 0.0
    %36 = vadd.xlane.f32.xlu0 %v35
    %v37 = vpop.xlane.xlu0 %36
    %v38 = vsel %vm34, %v33, 0.0
    %39 = vadd.xlane.f32.xlu0 %v38
    %v40 = vpop.xlane.xlu0 %39
    %v41 = vrcp.pop 32.0
    %v42 = vmul.f32 32.0, %v41
    %v43 = vsub.f32 1.0, %v42
    %v44 = vmul.f32 %v41, %v43
    %v45 = vadd.f32 %v41, %v44
    %vm46 = vweird.f32 %v41
    %v47 = vsel %vm46, %v41, %v45
    %v48 = vmul.f32 %v37, %v47
    %v49 = vmul.f32 %v40, %v47
    %v50 = vsub.f32 %v32, %v48
    %v51 = vsub.f32 %v33, %v49
    %v52 = vmul.f32 %v50, %v50
    %v53 = vmul.f32 %v51, %v51
    %v54 = vsel %vm34, %v52, 0.0
    %55 = vadd.xlane.f32.xlu0 %v54
    %v56 = vpop.xlane.xlu0 %55
    %v57 = vsel %vm34, %v53, 0.0
    %58 = vadd.xlane.f32.xlu0 %v57
    %v59 = vpop.xlane.xlu0 %58
    %v60 = vmul.f32 %v56, %v47
    %v61 = vmul.f32 %v59, %v47
    %v62 = vadd.f32 %v60, 1e-05
    %v63 = vadd.f32 %v61, 1e-05
    %v64 = vrsqrt.pop %v62
    %v65 = vmul.f32 %v64, %v62
    %v66 = vmul.f32 %v65, %v64
    %v67 = vmul.f32 0.5, %v66
    %v68 = vsub.f32 1.5, %v67
    %v69 = vmul.f32 %v64, %v68
    %vm70 = vweird.f32 %v62
    %vm71 = vweird.f32 %v64
    %vm72 = vmor %vm70, %vm71
    %v73 = vsel %vm72, %v64, %v69
    %v74 = vrsqrt.pop %v63
    %v75 = vmul.f32 %v74, %v63
    %v76 = vmul.f32 %v75, %v74
    %v77 = vmul.f32 0.5, %v76
    %v78 = vsub.f32 1.5, %v77
    %v79 = vmul.f32 %v74, %v78
    %vm80 = vweird.f32 %v63
    %vm81 = vweird.f32 %v74
    %vm82 = vmor %vm80, %vm81
    %v83 = vsel %vm82, %v74, %v79
    %v84 = vmul.f32 %v50, %v73
    %v85 = vmul.f32 %v51, %v83
    %v86 = vld [vmem:[%s1] sm:$0x1]
    %v88 = vperm.slane %v86, 0
    %v90 = vmul.f32 %v84, %v88
    %v91 = vmul.f32 %v85, %v88
    %v92 = vld [vmem:[%s2] sm:$0x1]
    %v94 = vperm.slane %v92, 0
    %v96 = vadd.f32 %v90, %v94
    %v97 = vadd.f32 %v91, %v94
    %v98 = vpack.c.bf16 %v96, %v96
    %v99 = vpack.c.bf16 %v97, %v97
    %vm100 = vcmask 257024
    %101 = vst.msk [vmem:[#allocation3] sm:$0xf] %vm100, %v98
    %102 = vst.msk [vmem:[#allocation3 + $0x4] sm:$0xf] %vm100, %v99
  $region29: #{text_decoder_forward.19} parent=0 // pred_fallthru
    _
  %v103 = vld [vmem:[#allocation3] sm:$0xf]
  %v104 = vld [vmem:[#allocation3 + $0x4] sm:$0xf]
  %v105 = vld [vmem:[#allocation2] sm:$0xff]
  %v106 = vld [vmem:[#allocation2 + $0x8] sm:$0xff]
  %v107 = vld [vmem:[%s3] sm:$0xf]
  %v108 = vld [vmem:[%s3 + $0x4] sm:$0xf]
  %v109 = vld [vmem:[%s3 + $0x8] sm:$0xf]
  %v110 = vld [vmem:[%s3 + $0xc] sm:$0xf]
  %v113 = vunpack.c.l.b16 %v103
  %v114 = vunpack.c.l.b16 %v104
  %v115 = vpack.c.b16 %v114, %v113
  %v120 = vunpack.c.l.b16 %v107
  %v121 = vunpack.c.l.b16 %v108
  %v122 = vunpack.c.l.b16 %v109
  %v123 = vunpack.c.l.b16 %v110
  %v124 = vpack.c.b16 %v121, %v120
  %v125 = vpack.c.b16 %v123, %v122
  %vm128 = vcmask 261120
  %v130 = vsel %vm128, %v115, 0
  %132 = vmatpush.bf16.msra.mxu0 0
  %133 = vmatpush.bf16.msra.mxu0 0
  %134 = vmatpush.bf16.msra.mxu0 0
  %135 = vmatpush.bf16.msra.mxu0 0
  %136 = vmatpush.bf16.msra.mxu0 0
  %137 = vmatpush.bf16.msra.mxu0 0
  %138 = vmatpush.bf16.msra.mxu0 %v125
  %139 = vmatpush.bf16.msra.mxu0 %v124
  %140 = vmatmul.bf16.gmra.mxu0 %v130
  %v141 = vpop.f32.mrf.mxu0
  %v142 = vadd.f32 0.0, %v141
  %v143 = vpop.f32.mrf.mxu0
  %v144 = vadd.f32 0.0, %v143
  %145 = vdwg.mxu0
  %v146 = vadd.f32 %v105, %v142
  %v147 = vadd.f32 %v106, %v144
  %vm148 = vcmask 785408
  %149 = vst.msk [vmem:[#allocation2] sm:$0xff] %vm148, %v146
  %150 = vst.msk [vmem:[#allocation2 + $0x8] sm:$0xff] %vm148, %v147
  // Predicated region
  $region30: #{text_decoder_forward.19} parent=0 // pred_check
    %p151 = pneg %p21
  $region31: #{text_decoder_forward.19} parent=0 // pred_check_branch
    %153 = sbr.rel (%p151) target = $region33
  $region32: #{text_decoder_forward.19} parent=0 // pred_region
    %v154 = vld [vmem:[#allocation2] sm:$0xff]
    %v155 = vld [vmem:[#allocation2 + $0x8] sm:$0xff]
    %v156 = vld [vmem:[%s4] sm:$0x1]
    %v158 = vperm.slane %v156, 0
    %v160 = vadd.f32 %v154, %v158
    %v161 = vadd.f32 %v155, %v158
    %v162 = vpack.c.bf16 %v160, %v160
    %v163 = vpack.c.bf16 %v161, %v161
    %vm164 = vcmask 781312
    %165 = vst.msk [vmem:[%s5] sm:$0xf] %vm164, %v162
    %166 = vst.msk [vmem:[%s5 + $0x4] sm:$0xf] %vm164, %v163
  $region33: #{text_decoder_forward.19} parent=0 // pred_fallthru
    _
  // Predicated region
  $region34: #{text_decoder_forward.19} parent=0 // pred_check
    _
  $region35: #{text_decoder_forward.19} parent=0 // pred_check_branch
    %168 = sbr.rel (0) target = $region37
  $region36: #{text_decoder_forward.19} parent=0 // pred_region
    _
  $region37: #{text_decoder_forward.19} parent=0 // pred_fallthru
    _
  // Predicated region
  $region38: #{text_decoder_forward.19} parent=0 // pred_check
    _
  $region39: #{text_decoder_forward.19} parent=0 // pred_check_branch
    %170 = sbr.rel (0) target = $region41
  $region40: #{text_decoder_forward.19} parent=0 // pred_region
    _
  $region41: #{text_decoder_forward.19} parent=0 // pred_fallthru
    _

// kernel: text_decoder_forward.21
$region0: #{text_decoder_forward.21}
  #allocation0 [shape = 'u32[]', space=smem, size = 0x4, offset = 0x4, fixed_abs, tag = 'smem constant byte address 0x4 - core index']
  #allocation1 [shape = 'u32[72,128]{1,0:T(1,128)}', space=vmem, size = 0x9000, scoped, tag = 'internal scratch']
  #allocation2 [shape = 'f32[16,32]{1,0:T(8,128)}', space=vmem, size = 0x2000, scoped, tag = 'scratch operand']
  %s0 = inlined_call_operand.vmem [shape: bf16[16,32], index: 0, kind: input, shape index: {}]
  %s1 = inlined_call_operand.vmem [shape: bf16[32,32], index: 1, kind: input, shape index: {}]
  %s2 = inlined_call_operand.vmem [shape: f32[1,32], index: 2, kind: input, shape index: {}]
  %s3 = inlined_call_operand.vmem [shape: f32[16,32], index: 3, kind: input, shape index: {}]
  %s4 = inlined_call_operand.vmem [shape: f32[16,32], index: 4, kind: output, shape index: {}]
  %s5 = sld [smem:[#allocation0]]
  $region34: #{text_decoder_forward.21} parent=0
    _
  %s7 = ssub.s32 1, %s5
  %s8 = scalar_select 0, %s7, %s5
  // Predicated region
  $region2: #{text_decoder_forward.21} parent=0 // pred_check
    _
  $region3: #{text_decoder_forward.21} parent=0 // pred_check_branch
    %10 = sbr.rel (0) target = $region5
  $region4: #{text_decoder_forward.21} parent=0 // pred_region
    _
  $region5: #{text_decoder_forward.21} parent=0 // pred_fallthru
    _
  // Predicated region
  $region6: #{text_decoder_forward.21} parent=0 // pred_check
    _
  $region7: #{text_decoder_forward.21} parent=0 // pred_check_branch
    %12 = sbr.rel (0) target = $region9
  $region8: #{text_decoder_forward.21} parent=0 // pred_region
    _
  $region9: #{text_decoder_forward.21} parent=0 // pred_fallthru
    _
  // Predicated region
  $region10: #{text_decoder_forward.21} parent=0 // pred_check
    _
  $region11: #{text_decoder_forward.21} parent=0 // pred_check_branch
    %14 = sbr.rel (0) target = $region13
  $region12: #{text_decoder_forward.21} parent=0 // pred_region
    _
  $region13: #{text_decoder_forward.21} parent=0 // pred_fallthru
    _
  // Predicated region
  $region14: #{text_decoder_forward.21} parent=0 // pred_check
    _
  $region15: #{text_decoder_forward.21} parent=0 // pred_check_branch
    %16 = sbr.rel (0) target = $region17
  $region16: #{text_decoder_forward.21} parent=0 // pred_region
    _
  $region17: #{text_decoder_forward.21} parent=0 // pred_fallthru
    _
  %p18 = scmp.eq.s32.totalorder 0, 0
  // Predicated region
  $region18: #{text_decoder_forward.21} parent=0 // pred_check
    %p19 = pneg %p18
  $region19: #{text_decoder_forward.21} parent=0 // pred_check_branch
    %21 = sbr.rel (%p19) target = $region21
  $region20: #{text_decoder_forward.21} parent=0 // pred_region
    %vm22 = vcmask 261120
    %23 = vst.msk [vmem:[#allocation2] sm:$0xff] %vm22, 0.0
    %24 = vst.msk [vmem:[#allocation2 + $0x8] sm:$0xff] %vm22, 0.0
  $region21: #{text_decoder_forward.21} parent=0 // pred_fallthru
    _
  %v25 = vld [vmem:[%s0] sm:$0xf]
  %v26 = vld [vmem:[%s0 + $0x4] sm:$0xf]
  %v27 = vld [vmem:[#allocation2] sm:$0xff]
  %v28 = vld [vmem:[#allocation2 + $0x8] sm:$0xff]
  %v29 = vld [vmem:[%s1] sm:$0xf]
  %v30 = vld [vmem:[%s1 + $0x4] sm:$0xf]
  %v31 = vld [vmem:[%s1 + $0x8] sm:$0xf]
  %v32 = vld [vmem:[%s1 + $0xc] sm:$0xf]
  %v35 = vunpack.c.l.b16 %v25
  %v36 = vunpack.c.l.b16 %v26
  %v37 = vpack.c.b16 %v36, %v35
  %v42 = vunpack.c.l.b16 %v29
  %v43 = vunpack.c.l.b16 %v30
  %v44 = vunpack.c.l.b16 %v31
  %v45 = vunpack.c.l.b16 %v32
  %v46 = vpack.c.b16 %v43, %v42
  %v47 = vpack.c.b16 %v45, %v44
  %vm50 = vcmask 261120
  %v52 = vsel %vm50, %v37, 0
  %54 = vmatpush.bf16.msra.mxu0 0
  %55 = vmatpush.bf16.msra.mxu0 0
  %56 = vmatpush.bf16.msra.mxu0 0
  %57 = vmatpush.bf16.msra.mxu0 0
  %58 = vmatpush.bf16.msra.mxu0 0
  %59 = vmatpush.bf16.msra.mxu0 0
  %60 = vmatpush.bf16.msra.mxu0 %v47
  %61 = vmatpush.bf16.msra.mxu0 %v46
  %62 = vmatmul.bf16.gmra.mxu0 %v52
  %v63 = vpop.f32.mrf.mxu0
  %v64 = vadd.f32 0.0, %v63
  %v65 = vpop.f32.mrf.mxu0
  %v66 = vadd.f32 0.0, %v65
  %67 = vdwg.mxu0
  %v68 = vadd.f32 %v27, %v64
  %v69 = vadd.f32 %v28, %v66
  %70 = vst.msk [vmem:[#allocation2] sm:$0xff] %vm50, %v68
  %71 = vst.msk [vmem:[#allocation2 + $0x8] sm:$0xff] %vm50, %v69
  // Predicated region
  $region22: #{text_decoder_forward.21} parent=0 // pred_check
    %p72 = pneg %p18
  $region23: #{text_decoder_forward.21} parent=0 // pred_check_branch
    %74 = sbr.rel (%p72) target = $region25
  $region24: #{text_decoder_forward.21} parent=0 // pred_region
    %v75 = vld [vmem:[#allocation2] sm:$0xff]
    %v76 = vld [vmem:[#allocation2 + $0x8] sm:$0xff]
    %v77 = vld [vmem:[%s2] sm:$0x1]
    %v79 = vperm.slane %v77, 0
    %v81 = vadd.f32 %v75, %v79
    %v82 = vadd.f32 %v76, %v79
    %v83 = vld [vmem:[%s3] sm:$0xff]
    %v84 = vld [vmem:[%s3 + $0x8] sm:$0xff]
    %v85 = vadd.f32 %v81, %v83
    %v86 = vadd.f32 %v82, %v84
    %87 = vst.msk [vmem:[%s4] sm:$0xff] %vm50, %v85
    %88 = vst.msk [vmem:[%s4 + $0x8] sm:$0xff] %vm50, %v86
  $region25: #{text_decoder_forward.21} parent=0 // pred_fallthru
    _
  // Predicated region
  $region26: #{text_decoder_forward.21} parent=0 // pred_check
    _
  $region27: #{text_decoder_forward.21} parent=0 // pred_check_branch
    %90 = sbr.rel (0) target = $region29
  $region28: #{text_decoder_forward.21} parent=0 // pred_region
    _
  $region29: #{text_decoder_forward.21} parent=0 // pred_fallthru
    _
  // Predicated region
  $region30: #{text_decoder_forward.21} parent=0 // pred_check
    _
  $region31: #{text_decoder_forward.21} parent=0 // pred_check_branch
    %92 = sbr.rel (0) target = $region33
  $region32: #{text_decoder_forward.21} parent=0 // pred_region
    _
  $region33: #{text_decoder_forward.21} parent=0 // pred_fallthru
    _

// kernel: text_decoder_forward.20
$region0: #{text_decoder_forward.20}
  #allocation0 [shape = 'u32[]', space=smem, size = 0x4, offset = 0x4, fixed_abs, tag = 'smem constant byte address 0x4 - core index']
  #allocation1 [shape = 'u32[72,128]{1,0:T(1,128)}', space=vmem, size = 0x9000, scoped, tag = 'internal scratch']
  #allocation2 [shape = 'f32[4,8,1]{2,1,0:T(8,128)}', space=vmem, size = 0x4000, scoped, tag = 'scratch operand']
  #allocation3 [shape = 'f32[4,8,1]{2,1,0:T(8,128)}', space=vmem, size = 0x4000, scoped, tag = 'scratch operand']
  #allocation4 [shape = 'f32[8,32]{1,0:T(8,128)}', space=vmem, size = 0x1000, scoped, tag = 'scratch operand']
  %s0 = inlined_call_operand.vmem [shape: bf16[2,8,96], index: 0, kind: input, shape index: {}, may-alias: {0,1,2}]
  %s1 = inlined_call_operand.vmem [shape: bf16[2,8,96], index: 1, kind: input, shape index: {}, may-alias: {0,1,2}]
  %s2 = inlined_call_operand.vmem [shape: bf16[2,8,96], index: 2, kind: input, shape index: {}, may-alias: {0,1,2}]
  %s3 = inlined_call_operand.vmem [shape: f32[2,1,8], index: 3, kind: input, shape index: {}]
  %s4 = inlined_call_operand.vmem [shape: bf16[2,8,32], index: 4, kind: output, shape index: {}]
  %s5 = sld [smem:[#allocation0]]
  $region57: #{text_decoder_forward.20} parent=0
    _
  %s7 = ssub.s32 1, %s5
  %s8 = scalar_select 0, %s7, %s5
  loop: start=0, step=1, limit=4
  $region2: #{text_decoder_forward.20} parent=0 // loop_pre_header
    _
  $region3: #{text_decoder_forward.20} parent=0 // loop_header
    %s10 = sphi 0, %s14
    %p11 = scmp.ge.s32.totalorder %s10, 4
    %s17 = sphi 0, %s36
    %s18 = sphi 0, %s32
    %s19 = sphi 0, %s28
    %s20 = sphi 0, %s17
    %s21 = sphi 0, %s18
    %s22 = sphi 0, %s19
    %s23 = sphi 0, %s20
    %s24 = sphi 0, %s21
    %s25 = sphi 0, %s22
    %s39 = sphi 0, %s41
    %s42 = sphi 0, %s39
    %s43 = sphi 0, %s42
    %s59 = sphi 0, %s43
    %s67 = sphi 0, %s69
    %s70 = sphi 0, %s67
    %s71 = sphi 0, %s70
    %s87 = sphi 0, %s71
    %s95 = sphi 0, %s97
    %s98 = sphi 0, %s95
    %s99 = sphi 0, %s98
    %s115 = sphi 0, %s99
    %s123 = sphi 0, %s125
    %s126 = sphi 0, %s123
    %s127 = sphi 0, %s126
    %s143 = sphi 0, %s127
    %s151 = sphi 0, %s153
    %s154 = sphi 0, %s151
    %s155 = sphi 0, %s154
    %s171 = sphi 0, %s155
  $region4: #{text_decoder_forward.20} parent=0 // loop_header_branch
    %13 = sbr.rel (%p11) target = $region8
  $region5: #{text_decoder_forward.20} parent=0 // loop_body
    %s15 = ssub.s32 %s10, 1
    %s16 = ssub.s32 %s10, 2
    %s26 = sadd.s32 1, %s19
    %p27 = scmp.ge.s32.totalorder %s26, 1
    %s28 = scalar_select %p27, 0, %s26
    %s29 = sadd.s32 1, %s18
    %s30 = scalar_select %p27, %s29, %s18
    %p31 = scmp.ge.s32.totalorder %s30, 1
    %s32 = scalar_select %p31, 0, %s30
    %s33 = sadd.s32 1, %s17
    %s34 = scalar_select %p31, %s33, %s17
    %p35 = scmp.ge.s32.totalorder %s34, 2
    %s36 = scalar_select %p35, 0, %s34
    %s37 = ssub.s32 %s17, %s36
    %p38 = scmp.eq.s32.totalorder %s37, 0
    %s40 = sadd.s32 %s39, 1
    %s41 = scalar_select %p38, %s39, %s40
    %p44 = pneg %p38
    %p45 = scmp.eq.s32.totalorder %s10, 1
    %p46 = por %p44, %p45
    %p47 = scmp.ne.s32.totalorder %s39, %s42
    %p48 = scmp.eq.s32.totalorder %s10, 0
    %p49 = por %p47, %p48
    %p50 = scmp.ne.s32.totalorder %s39, %s42
    %p51 = scmp.eq.s32.totalorder %s15, 1
    %p52 = por %p50, %p51
    %p53 = scmp.ne.s32.totalorder %s42, %s43
    %p54 = scmp.eq.s32.totalorder %s15, 0
    %p55 = por %p53, %p54
    %p56 = scmp.ne.s32.totalorder %s42, %s43
    %p57 = scmp.eq.s32.totalorder %s16, 1
    %p58 = por %p56, %p57
    %p60 = scmp.ne.s32.totalorder %s43, %s59
    %p61 = scmp.eq.s32.totalorder %s16, 0
    %p62 = por %p60, %p61
    %s63 = ssub.s32 %s17, %s36
    %s64 = ssub.s32 %s19, %s28
    %s65 = sor.u32 %s63, %s64
    %p66 = scmp.eq.s32.totalorder %s65, 0
    %s68 = sadd.s32 %s67, 1
    %s69 = scalar_select %p66, %s67, %s68
    %p72 = pneg %p66
    %p73 = scmp.eq.s32.totalorder %s10, 1
    %p74 = por %p72, %p73
    %p75 = scmp.ne.s32.totalorder %s67, %s70
    %p76 = scmp.eq.s32.totalorder %s10, 0
    %p77 = por %p75, %p76
    %p78 = scmp.ne.s32.totalorder %s67, %s70
    %p79 = scmp.eq.s32.totalorder %s15, 1
    %p80 = por %p78, %p79
    %p81 = scmp.ne.s32.totalorder %s70, %s71
    %p82 = scmp.eq.s32.totalorder %s15, 0
    %p83 = por %p81, %p82
    %p84 = scmp.ne.s32.totalorder %s70, %s71
    %p85 = scmp.eq.s32.totalorder %s16, 1
    %p86 = por %p84, %p85
    %p88 = scmp.ne.s32.totalorder %s71, %s87
    %p89 = scmp.eq.s32.totalorder %s16, 0
    %p90 = por %p88, %p89
    %s91 = ssub.s32 %s17, %s36
    %s92 = ssub.s32 %s19, %s28
    %s93 = sor.u32 %s91, %s92
    %p94 = scmp.eq.s32.totalorder %s93, 0
    %s96 = sadd.s32 %s95, 1
    %s97 = scalar_select %p94, %s95, %s96
    %p100 = pneg %p94
    %p101 = scmp.eq.s32.totalorder %s10, 1
    %p102 = por %p100, %p101
    %p103 = scmp.ne.s32.totalorder %s95, %s98
    %p104 = scmp.eq.s32.totalorder %s10, 0
    %p105 = por %p103, %p104
    %p106 = scmp.ne.s32.totalorder %s95, %s98
    %p107 = scmp.eq.s32.totalorder %s15, 1
    %p108 = por %p106, %p107
    %p109 = scmp.ne.s32.totalorder %s98, %s99
    %p110 = scmp.eq.s32.totalorder %s15, 0
    %p111 = por %p109, %p110
    %p112 = scmp.ne.s32.totalorder %s98, %s99
    %p113 = scmp.eq.s32.totalorder %s16, 1
    %p114 = por %p112, %p113
    %p116 = scmp.ne.s32.totalorder %s99, %s115
    %p117 = scmp.eq.s32.totalorder %s16, 0
    %p118 = por %p116, %p117
    %s119 = ssub.s32 %s17, %s36
    %s120 = ssub.s32 %s19, %s28
    %s121 = sor.u32 %s119, %s120
    %p122 = scmp.eq.s32.totalorder %s121, 0
    %s124 = sadd.s32 %s123, 1
    %s125 = scalar_select %p122, %s123, %s124
    %p128 = pneg %p122
    %p129 = scmp.eq.s32.totalorder %s10, 1
    %p130 = por %p128, %p129
    %p131 = scmp.ne.s32.totalorder %s123, %s126
    %p132 = scmp.eq.s32.totalorder %s10, 0
    %p133 = por %p131, %p132
    %p134 = scmp.ne.s32.totalorder %s123, %s126
    %p135 = scmp.eq.s32.totalorder %s15, 1
    %p136 = por %p134, %p135
    %p137 = scmp.ne.s32.totalorder %s126, %s127
    %p138 = scmp.eq.s32.totalorder %s15, 0
    %p139 = por %p137, %p138
    %p140 = scmp.ne.s32.totalorder %s126, %s127
    %p141 = scmp.eq.s32.totalorder %s16, 1
    %p142 = por %p140, %p141
    %p144 = scmp.ne.s32.totalorder %s127, %s143
    %p145 = scmp.eq.s32.totalorder %s16, 0
    %p146 = por %p144, %p145
    %s147 = ssub.s32 %s17, %s36
    %s148 = ssub.s32 %s18, %s32
    %s149 = sor.u32 %s147, %s148
    %p150 = scmp.eq.s32.totalorder %s149, 0
    %s152 = sadd.s32 %s151, 1
    %s153 = scalar_select %p150, %s151, %s152
    %p156 = pneg %p150
    %p157 = scmp.eq.s32.totalorder %s10, 1
    %p158 = por %p156, %p157
    %p159 = scmp.ne.s32.totalorder %s151, %s154
    %p160 = scmp.eq.s32.totalorder %s10, 0
    %p161 = por %p159, %p160
    %p162 = scmp.ne.s32.totalorder %s151, %s154
    %p163 = scmp.eq.s32.totalorder %s15, 1
    %p164 = por %p162, %p163
    %p165 = scmp.ne.s32.totalorder %s154, %s155
    %p166 = scmp.eq.s32.totalorder %s15, 0
    %p167 = por %p165, %p166
    %p168 = scmp.ne.s32.totalorder %s154, %s155
    %p169 = scmp.eq.s32.totalorder %s16, 1
    %p170 = por %p168, %p169
    %p172 = scmp.ne.s32.totalorder %s155, %s171
    %p173 = scmp.eq.s32.totalorder %s16, 0
    %p174 = por %p172, %p173
    %p175 = scmp.le.s32.totalorder 1, %s10
    %p176 = scmp.lt.s32.totalorder %s10, 3
    %p177 = pnand %p175, %p176
    %p178 = pneg %p177
    // Predicated region
    $region9: #{text_decoder_forward.20} parent=5 // pred_check
      _
    $region10: #{text_decoder_forward.20} parent=5 // pred_check_branch
      %180 = sbr.rel (%p177) target = $region12
    $region11: #{text_decoder_forward.20} parent=5 // pred_region
      %s181 = ssub.s32 %s10, 1
    $region12: #{text_decoder_forward.20} parent=5 // pred_fallthru
      _
    %p182 = scmp.lt.s32.totalorder %s10, 2
    // Predicated region
    $region13: #{text_decoder_forward.20} parent=5 // pred_check
      %p183 = pneg %p182
    $region14: #{text_decoder_forward.20} parent=5 // pred_check_branch
      %185 = sbr.rel (%p183) target = $region16
    $region15: #{text_decoder_forward.20} parent=5 // pred_region
      // Predicated region
      $region17: #{text_decoder_forward.20} parent=15 // pred_check
        %p186 = pneg %p49
      $region18: #{text_decoder_forward.20} parent=15 // pred_check_branch
        %188 = sbr.rel (%p186) target = $region20
      $region19: #{text_decoder_forward.20} parent=15 // pred_region
        %p189 = scmp.lt.s32.totalorder %s17, 1
        %s190 = scalar_select %p189, %s17, 1
        %s191 = smul.addr %s190, 4
        %s192 = scalar_lea.vmem %s0, %s191
      $region20: #{text_decoder_forward.20} parent=15 // pred_fallthru
        _
      // Predicated region
      $region21: #{text_decoder_forward.20} parent=15 // pred_check
        %p193 = pneg %p77
      $region22: #{text_decoder_forward.20} parent=15 // pred_check_branch
        %195 = sbr.rel (%p193) target = $region24
      $region23: #{text_decoder_forward.20} parent=15 // pred_region
        %p196 = scmp.lt.s32.totalorder %s17, 1
        %s197 = scalar_select %p196, %s17, 1
        %p198 = scmp.lt.s32.totalorder %s19, 0
        %s199 = scalar_select %p198, %s19, 0
        %s200 = sadd.s32 %s199, %s197
        %s201 = smul.addr %s200, 4
        %s202 = scalar_lea.vmem %s1, %s201
      $region24: #{text_decoder_forward.20} parent=15 // pred_fallthru
        _
      // Predicated region
      $region25: #{text_decoder_forward.20} parent=15 // pred_check
        %p203 = pneg %p105
      $region26: #{text_decoder_forward.20} parent=15 // pred_check_branch
        %205 = sbr.rel (%p203) target = $region28
      $region27: #{text_decoder_forward.20} parent=15 // pred_region
        %p206 = scmp.lt.s32.totalorder %s17, 1
        %s207 = scalar_select %p206, %s17, 1
        %p208 = scmp.lt.s32.totalorder %s19, 0
        %s209 = scalar_select %p208, %s19, 0
        %s210 = sadd.s32 %s209, %s207
        %s211 = smul.addr %s210, 4
        %s212 = scalar_lea.vmem %s2, %s211
      $region28: #{text_decoder_forward.20} parent=15 // pred_fallthru
        _
      // Predicated region
      $region29: #{text_decoder_forward.20} parent=15 // pred_check
        %p213 = pneg %p133
      $region30: #{text_decoder_forward.20} parent=15 // pred_check_branch
        %215 = sbr.rel (%p213) target = $region32
      $region31: #{text_decoder_forward.20} parent=15 // pred_region
        %p216 = scmp.lt.s32.totalorder %s17, 1
        %s217 = scalar_select %p216, %s17, 1
        %p218 = scmp.lt.s32.totalorder %s19, 0
        %s219 = scalar_select %p218, %s19, 0
        %s220 = sadd.s32 %s219, %s217
        %s221 = scalar_lea.vmem %s3, %s220
      $region32: #{text_decoder_forward.20} parent=15 // pred_fallthru
        _
    $region16: #{text_decoder_forward.20} parent=5 // pred_fallthru
      _
    %p222 = scmp.le.s32.totalorder 1, %s10
    %p223 = scmp.lt.s32.totalorder %s10, 3
    %p224 = pnand %p222, %p223
    %p225 = pneg %p224
    // Predicated region
    $region33: #{text_decoder_forward.20} parent=5 // pred_check
      _
    $region34: #{text_decoder_forward.20} parent=5 // pred_check_branch
      %227 = sbr.rel (%p224) target = $region36
    $region35: #{text_decoder_forward.20} parent=5 // pred_region
      %s228 = ssub.s32 %s10, 1
      %p229 = scmp.lt.s32.totalorder %s20, 1
      %s230 = scalar_select %p229, %s20, 1
      %s231 = smul.addr %s230, 4
      %s232 = scalar_lea.vmem %s0, %s231
      %p233 = pneg %p55
      %p234 = pneg %p52
      %p235 = scmp.lt.s32.totalorder %s20, 1
      %s236 = scalar_select %p235, %s20, 1
      %p237 = scmp.lt.s32.totalorder %s22, 0
      %s238 = scalar_select %p237, %s22, 0
      %s239 = sadd.s32 %s238, %s236
      %s240 = smul.addr %s239, 4
      %s241 = scalar_lea.vmem %s1, %s240
      %p242 = pneg %p83
      %p243 = pneg %p80
      %p244 = scmp.lt.s32.totalorder %s20, 1
      %s245 = scalar_select %p244, %s20, 1
      %p246 = scmp.lt.s32.totalorder %s22, 0
      %s247 = scalar_select %p246, %s22, 0
      %s248 = sadd.s32 %s247, %s245
      %s249 = smul.addr %s248, 4
      %s250 = scalar_lea.vmem %s2, %s249
      %p251 = pneg %p111
      %p252 = pneg %p108
      %p253 = scmp.lt.s32.totalorder %s20, 1
      %s254 = scalar_select %p253, %s20, 1
      %p255 = scmp.lt.s32.totalorder %s22, 0
      %s256 = scalar_select %p255, %s22, 0
      %s257 = sadd.s32 %s256, %s254
      %s258 = scalar_lea.vmem %s3, %s257
      %p259 = pneg %p139
      %p260 = pneg %p136
      %p261 = pneg %p167
      %p262 = pneg %p164
      %p263 = scmp.lt.s32.totalorder %s20, 1
      %s264 = scalar_select %p263, %s20, 1
      %p265 = scmp.lt.s32.totalorder %s21, 0
      %s266 = scalar_select %p265, %s21, 0
      %s267 = sadd.s32 %s266, %s264
      %s268 = smul.addr %s267, 4
      %s269 = scalar_lea.vmem %s4, %s268
      %p270 = scmp.lt.s32.totalorder %s20, 1
      %s271 = scalar_select %p270, %s20, 1
      %s272 = smul.addr %s271, 4
      %s273 = scalar_lea.vmem %s0, %s272
      %p274 = scmp.lt.s32.totalorder %s20, 1
      %s275 = scalar_select %p274, %s20, 1
      %p276 = scmp.lt.s32.totalorder %s22, 0
      %s277 = scalar_select %p276, %s22, 0
      %s278 = sadd.s32 %s277, %s275
      %s279 = smul.addr %s278, 4
      %s280 = scalar_lea.vmem %s1, %s279
      %p281 = scmp.lt.s32.totalorder %s20, 1
      %s282 = scalar_select %p281, %s20, 1
      %p283 = scmp.lt.s32.totalorder %s22, 0
      %s284 = scalar_select %p283, %s22, 0
      %s285 = sadd.s32 %s284, %s282
      %s286 = smul.addr %s285, 4
      %s287 = scalar_lea.vmem %s2, %s286
      %p288 = scmp.lt.s32.totalorder %s20, 1
      %s289 = scalar_select %p288, %s20, 1
      %p290 = scmp.lt.s32.totalorder %s22, 0
      %s291 = scalar_select %p290, %s22, 0
      %s292 = sadd.s32 %s291, %s289
      %s293 = scalar_lea.vmem %s3, %s292
      %p294 = scmp.lt.s32.totalorder %s20, 1
      %s295 = scalar_select %p294, %s20, 1
      %p296 = scmp.lt.s32.totalorder %s21, 0
      %s297 = scalar_select %p296, %s21, 0
      %s298 = sadd.s32 %s297, %s295
      %s299 = smul.addr %s298, 4
      %s300 = scalar_lea.vmem %s4, %s299
      %p302 = scmp.eq.s32.totalorder %s22, 0
      // Predicated region
      $region37: #{text_decoder_forward.20} parent=35 // pred_check
        %p303 = pneg %p302
      $region38: #{text_decoder_forward.20} parent=35 // pred_check_branch
        %305 = sbr.rel (%p303) target = $region40
      $region39: #{text_decoder_forward.20} parent=35 // pred_region
        %vm306 = vcmask 7168
        %307 = vst.msk [vmem:[#allocation2] sm:$0xff] %vm306, -1e+30
        %308 = vst.msk [vmem:[#allocation2 + $0x8] sm:$0xff] %vm306, -1e+30
        %309 = vst.msk [vmem:[#allocation2 + $0x10] sm:$0xff] %vm306, -1e+30
        %310 = vst.msk [vmem:[#allocation2 + $0x18] sm:$0xff] %vm306, -1e+30
        %311 = vst.msk [vmem:[#allocation3] sm:$0xff] %vm306, 0.0
        %312 = vst.msk [vmem:[#allocation3 + $0x8] sm:$0xff] %vm306, 0.0
        %313 = vst.msk [vmem:[#allocation3 + $0x10] sm:$0xff] %vm306, 0.0
        %314 = vst.msk [vmem:[#allocation3 + $0x18] sm:$0xff] %vm306, 0.0
        %vm315 = vcmask 261120
        %316 = vst.msk [vmem:[#allocation4] sm:$0xff] %vm315, 0.0
      $region40: #{text_decoder_forward.20} parent=35 // pred_fallthru
        _
      %v317 = vld [vmem:[%s273] sm:$0xf]
      %v318 = vld [vmem:[%s280] sm:$0xf]
      %v319 = vld [vmem:[%s287] sm:$0xf]
      %v320 = vld [vmem:[%s293] sm:$0x1]
      %v321 = vlaneseq
      %v322 = vshrl.u32 %v321, 7
      %s323 = smul.u32 %s22, 8
      %v324 = vlaneseq
      %v325 = vand.u32 %v324, 127
      %v326 = vstv %s323
      %v327 = vadd.s32 %v326, %v325
      %vm328 = vcmp.ge.s32.totalorder %v322, %v327
      %v329 = vsel %vm328, 0.0, -1e+09
      %v331 = vperm.slane %v320, 0
      %v333 = vadd.f32 %v331, %v329
      %v334 = vunpack.c.l.bf16 %v317
      %v335 = vmul.f32 %v334, 0.35351563
      %v336 = vpack.c.bf16 %v335, %v335
      %v338 = vunpack.c.l.b16 %v318
      %v339 = vpack.c.b16 %v338, %v338
      %340 = vrot.lane.b32.xlu0 %v339, 96
      %v341 = vpop.permute.xlu0 %340
      %vm342 = vcmask 64512
      %v344 = vsel %vm342, %v336, 0
      %v347 = vsel %vm342, %v341, 0
      %349 = vmatpush.bf16.xpose.msra.mxu0 0
      %350 = vmatpush.bf16.xpose.msra.mxu0 0
      %351 = vmatpush.bf16.xpose.msra.mxu0 0
      %352 = vmatpush.bf16.xpose.msra.mxu0 0
      %353 = vmatpush.bf16.xpose.msra.mxu0 0
      %354 = vmatpush.bf16.xpose.msra.mxu0 0
      %355 = vmatpush.bf16.xpose.msra.mxu0 0
      %356 = vmatpush.bf16.xpose.msra.mxu0 %v347
      %357 = vmatmul.bf16.gmra.mxu0 %v344
      %v358 = vpop.f32.mrf.mxu0
      %v359 = vadd.f32 %v333, %v358
      %v360 = vpop.f32.mrf.mxu0
      %361 = vdwg.mxu0
      %v362 = vld [vmem:[#allocation2] sm:$0xff]
      %v363 = vsel %vm342, %v359, -inf
      %364 = vmax.xlane.f32.xlu0 %v363
      %v365 = vpop.xlane.xlu0 %364
      %v366 = vmax.f32 %v362, %v365
      %v367 = vsub.f32 %v362, %v366
      %v368 = vmul.f32 %v367, 1.442695
      %v369 = vpow.pop %v368
      %371 = vset.pattern.permute.xlu0 0
      %372 = vperm.xlu0 %371, %v366
      %v373 = vpop.permute.xlu0 %372
      %v375 = vsub.f32 %v359, %v373
      %v376 = vmul.f32 %v375, 1.442695
      %v377 = vpow.pop %v376
      %v378 = vld [vmem:[#allocation3] sm:$0xff]
      %v379 = vmul.f32 %v369, %v378
      %v380 = vsel %vm342, %v377, 0.0
      %381 = vadd.xlane.f32.xlu0 %v380
      %v382 = vpop.xlane.xlu0 %381
      %v383 = vadd.f32 %v379, %v382
      %vm384 = vcmask 7168
      %385 = vst.msk [vmem:[#allocation3] sm:$0xff] %vm384, %v383
      %v386 = vld [vmem:[#allocation4] sm:$0xff]
      %388 = vset.pattern.permute.xlu0 0
      %389 = vperm.xlu0 %388, %v369
      %v390 = vpop.permute.xlu0 %389
      %v392 = vmul.f32 %v390, %v386
      %v393 = vpack.c.bf16 %v377, %v377
      %v395 = vunpack.c.l.b16 %v319
      %v396 = vpack.c.b16 %v395, %v395
      %397 = vrot.lane.b32.xlu0 %v396, 64
      %v398 = vpop.permute.xlu0 %397
      %v400 = vsel %vm342, %v393, 0
      %vm402 = vcmask 1043456
      %v404 = vsel %vm402, %v398, 0
      %406 = vmatpush.bf16.msra.mxu0 0
      %407 = vmatpush.bf16.msra.mxu0 0
      %408 = vmatpush.bf16.msra.mxu0 0
      %409 = vmatpush.bf16.msra.mxu0 0
      %410 = vmatpush.bf16.msra.mxu0 0
      %411 = vmatpush.bf16.msra.mxu0 0
      %412 = vmatpush.bf16.msra.mxu0 0
      %413 = vmatpush.bf16.msra.mxu0 %v404
      %414 = vmatmul.bf16.gmra.mxu0 %v400
      %v415 = vpop.f32.mrf.mxu0
      %v416 = vadd.f32 0.0, %v415
      %v417 = vpop.f32.mrf.mxu0
      %418 = vdwg.mxu0
      %v419 = vadd.f32 %v392, %v416
      %420 = vst.msk [vmem:[#allocation4] sm:$0xff] %vm342, %v419
      %421 = vst.msk [vmem:[#allocation2] sm:$0xff] %vm384, %v366
      %423 = vrot.lane.b32.xlu0 %v336, 120
      %v424 = vpop.permute.xlu0 %423
      %425 = vrot.lane.b32.xlu0 %v339, 88
      %v426 = vpop.permute.xlu0 %425
      %v428 = vsel %vm342, %v424, 0
      %v431 = vsel %vm342, %v426, 0
      %433 = vmatpush.bf16.xpose.msra.mxu0 0
      %434 = vmatpush.bf16.xpose.msra.mxu0 0
      %435 = vmatpush.bf16.xpose.msra.mxu0 0
      %436 = vmatpush.bf16.xpose.msra.mxu0 0
      %437 = vmatpush.bf16.xpose.msra.mxu0 0
      %438 = vmatpush.bf16.xpose.msra.mxu0 0
      %439 = vmatpush.bf16.xpose.msra.mxu0 0
      %440 = vmatpush.bf16.xpose.msra.mxu0 %v431
      %441 = vmatmul.bf16.gmra.mxu0 %v428
      %v442 = vpop.f32.mrf.mxu0
      %v443 = vadd.f32 %v333, %v442
      %v444 = vpop.f32.mrf.mxu0
      %445 = vdwg.mxu0
      %s446 = scalar_lea.vmem [#allocation2], 8
      %v447 = vld [vmem:[%s446] sm:$0xff]
      %v448 = vsel %vm342, %v443, -inf
      %449 = vmax.xlane.f32.xlu0 %v448
      %v450 = vpop.xlane.xlu0 %449
      %v451 = vmax.f32 %v447, %v450
      %v452 = vsub.f32 %v447, %v451
      %v453 = vmul.f32 %v452, 1.442695
      %v454 = vpow.pop %v453
      %456 = vset.pattern.permute.xlu0 0
      %457 = vperm.xlu0 %456, %v451
      %v458 = vpop.permute.xlu0 %457
      %v460 = vsub.f32 %v443, %v458
      %v461 = vmul.f32 %v460, 1.442695
      %v462 = vpow.pop %v461
      %s463 = scalar_lea.vmem [#allocation3], 8
      %v464 = vld [vmem:[%s463] sm:$0xff]
      %v465 = vmul.f32 %v454, %v464
      %v466 = vsel %vm342, %v462, 0.0
      %467 = vadd.xlane.f32.xlu0 %v466
      %v468 = vpop.xlane.xlu0 %467
      %v469 = vadd.f32 %v465, %v468
      %470 = vst.msk [vmem:[%s463] sm:$0xff] %vm384, %v469
      %v471 = vld [vmem:[#allocation4] sm:$0xff]
      %473 = vset.pattern.permute.xlu0 0
      %474 = vperm.xlu0 %473, %v454
      %v475 = vpop.permute.xlu0 %474
      %v477 = vmul.f32 %v475, %v471
      %v478 = vpack.c.bf16 %v462, %v462
      %479 = vrot.lane.b32.xlu0 %v396, 56
      %v480 = vpop.permute.xlu0 %479
      %v482 = vsel %vm342, %v478, 0
      %v485 = vsel %vm402, %v480, 0
      %487 = vmatpush.bf16.msra.mxu0 0
      %488 = vmatpush.bf16.msra.mxu0 0
      %489 = vmatpush.bf16.msra.mxu0 0
      %490 = vmatpush.bf16.msra.mxu0 0
      %491 = vmatpush.bf16.msra.mxu0 0
      %492 = vmatpush.bf16.msra.mxu0 0
      %493 = vmatpush.bf16.msra.mxu0 0
      %494 = vmatpush.bf16.msra.mxu0 %v485
      %495 = vmatmul.bf16.gmra.mxu0 %v482
      %v496 = vpop.f32.mrf.mxu0
      %v497 = vadd.f32 0.0, %v496
      %v498 = vpop.f32.mrf.mxu0
      %499 = vdwg.mxu0
      %501 = vrot.lane.b32.xlu0 %v497, 8
      %v502 = vpop.permute.xlu0 %501
      %v504 = vadd.f32 %v477, %v502
      %vm505 = vcmask 130112
      %506 = vst.msk [vmem:[#allocation4] sm:$0xff] %vm505, %v504
      %507 = vst.msk [vmem:[%s446] sm:$0xff] %vm384, %v451
      %508 = vrot.lane.b32.xlu0 %v336, 112
      %v509 = vpop.permute.xlu0 %508
      %510 = vrot.lane.b32.xlu0 %v339, 80
      %v511 = vpop.permute.xlu0 %510
      %v513 = vsel %vm342, %v509, 0
      %v516 = vsel %vm342, %v511, 0
      %518 = vmatpush.bf16.xpose.msra.mxu0 0
      %519 = vmatpush.bf16.xpose.msra.mxu0 0
      %520 = vmatpush.bf16.xpose.msra.mxu0 0
      %521 = vmatpush.bf16.xpose.msra.mxu0 0
      %522 = vmatpush.bf16.xpose.msra.mxu0 0
      %523 = vmatpush.bf16.xpose.msra.mxu0 0
      %524 = vmatpush.bf16.xpose.msra.mxu0 0
      %525 = vmatpush.bf16.xpose.msra.mxu0 %v516
      %526 = vmatmul.bf16.gmra.mxu0 %v513
      %v527 = vpop.f32.mrf.mxu0
      %v528 = vadd.f32 %v333, %v527
      %v529 = vpop.f32.mrf.mxu0
      %530 = vdwg.mxu0
      %s531 = scalar_lea.vmem [#allocation2], 16
      %v532 = vld [vmem:[%s531] sm:$0xff]
      %v533 = vsel %vm342, %v528, -inf
      %534 = vmax.xlane.f32.xlu0 %v533
      %v535 = vpop.xlane.xlu0 %534
      %v536 = vmax.f32 %v532, %v535
      %v537 = vsub.f32 %v532, %v536
      %v538 = vmul.f32 %v537, 1.442695
      %v539 = vpow.pop %v538
      %541 = vset.pattern.permute.xlu0 0
      %542 = vperm.xlu0 %541, %v536
      %v543 = vpop.permute.xlu0 %542
      %v545 = vsub.f32 %v528, %v543
      %v546 = vmul.f32 %v545, 1.442695
      %v547 = vpow.pop %v546
      %s548 = scalar_lea.vmem [#allocation3], 16
      %v549 = vld [vmem:[%s548] sm:$0xff]
      %v550 = vmul.f32 %v539, %v549
      %v551 = vsel %vm342, %v547, 0.0
      %552 = vadd.xlane.f32.xlu0 %v551
      %v553 = vpop.xlane.xlu0 %552
      %v554 = vadd.f32 %v550, %v553
      %555 = vst.msk [vmem:[%s548] sm:$0xff] %vm384, %v554
      %v556 = vld [vmem:[#allocation4] sm:$0xff]
      %558 = vset.pattern.permute.xlu0 0
      %559 = vperm.xlu0 %558, %v539
      %v560 = vpop.permute.xlu0 %559
      %v562 = vmul.f32 %v560, %v556
      %v563 = vpack.c.bf16 %v547, %v547
      %564 = vrot.lane.b32.xlu0 %v396, 48
      %v565 = vpop.permute.xlu0 %564
      %v567 = vsel %vm342, %v563, 0
      %v570 = vsel %vm402, %v565, 0
      %572 = vmatpush.bf16.msra.mxu0 0
      %573 = vmatpush.bf16.msra.mxu0 0
      %574 = vmatpush.bf16.msra.mxu0 0
      %575 = vmatpush.bf16.msra.mxu0 0
      %576 = vmatpush.bf16.msra.mxu0 0
      %577 = vmatpush.bf16.msra.mxu0 0
      %578 = vmatpush.bf16.msra.mxu0 0
      %579 = vmatpush.bf16.msra.mxu0 %v570
      %580 = vmatmul.bf16.gmra.mxu0 %v567
      %v581 = vpop.f32.mrf.mxu0
      %v582 = vadd.f32 0.0, %v581
      %v583 = vpop.f32.mrf.mxu0
      %584 = vdwg.mxu0
      %586 = vrot.lane.b32.xlu0 %v582, 16
      %v587 = vpop.permute.xlu0 %586
      %v589 = vadd.f32 %v562, %v587
      %vm590 = vcmask 195712
      %591 = vst.msk [vmem:[#allocation4] sm:$0xff] %vm590, %v589
      %592 = vst.msk [vmem:[%s531] sm:$0xff] %vm384, %v536
      %593 = vrot.lane.b32.xlu0 %v336, 104
      %v594 = vpop.permute.xlu0 %593
      %595 = vrot.lane.b32.xlu0 %v339, 72
      %v596 = vpop.permute.xlu0 %595
      %v598 = vsel %vm342, %v594, 0
      %v601 = vsel %vm342, %v596, 0
      %603 = vmatpush.bf16.xpose.msra.mxu0 0
      %604 = vmatpush.bf16.xpose.msra.mxu0 0
      %605 = vmatpush.bf16.xpose.msra.mxu0 0
      %606 = vmatpush.bf16.xpose.msra.mxu0 0
      %607 = vmatpush.bf16.xpose.msra.mxu0 0
      %608 = vmatpush.bf16.xpose.msra.mxu0 0
      %609 = vmatpush.bf16.xpose.msra.mxu0 0
      %610 = vmatpush.bf16.xpose.msra.mxu0 %v601
      %611 = vmatmul.bf16.gmra.mxu0 %v598
      %v612 = vpop.f32.mrf.mxu0
      %v613 = vadd.f32 %v333, %v612
      %v614 = vpop.f32.mrf.mxu0
      %615 = vdwg.mxu0
      %s616 = scalar_lea.vmem [#allocation2], 24
      %v617 = vld [vmem:[%s616] sm:$0xff]
      %v618 = vsel %vm342, %v613, -inf
      %619 = vmax.xlane.f32.xlu0 %v618
      %v620 = vpop.xlane.xlu0 %619
      %v621 = vmax.f32 %v617, %v620
      %v622 = vsub.f32 %v617, %v621
      %v623 = vmul.f32 %v622, 1.442695
      %v624 = vpow.pop %v623
      %626 = vset.pattern.permute.xlu0 0
      %627 = vperm.xlu0 %626, %v621
      %v628 = vpop.permute.xlu0 %627
      %v630 = vsub.f32 %v613, %v628
      %v631 = vmul.f32 %v630, 1.442695
      %v632 = vpow.pop %v631
      %s633 = scalar_lea.vmem [#allocation3], 24
      %v634 = vld [vmem:[%s633] sm:$0xff]
      %v635 = vmul.f32 %v624, %v634
      %v636 = vsel %vm342, %v632, 0.0
      %637 = vadd.xlane.f32.xlu0 %v636
      %v638 = vpop.xlane.xlu0 %637
      %v639 = vadd.f32 %v635, %v638
      %640 = vst.msk [vmem:[%s633] sm:$0xff] %vm384, %v639
      %v641 = vld [vmem:[#allocation4] sm:$0xff]
      %643 = vset.pattern.permute.xlu0 0
      %644 = vperm.xlu0 %643, %v624
      %v645 = vpop.permute.xlu0 %644
      %v647 = vmul.f32 %v645, %v641
      %v648 = vpack.c.bf16 %v632, %v632
      %649 = vrot.lane.b32.xlu0 %v396, 40
      %v650 = vpop.permute.xlu0 %649
      %v652 = vsel %vm342, %v648, 0
      %v655 = vsel %vm402, %v650, 0
      %657 = vmatpush.bf16.msra.mxu0 0
      %658 = vmatpush.bf16.msra.mxu0 0
      %659 = vmatpush.bf16.msra.mxu0 0
      %660 = vmatpush.bf16.msra.mxu0 0
      %661 = vmatpush.bf16.msra.mxu0 0
      %662 = vmatpush.bf16.msra.mxu0 0
      %663 = vmatpush.bf16.msra.mxu0 0
      %664 = vmatpush.bf16.msra.mxu0 %v655
      %665 = vmatmul.bf16.gmra.mxu0 %v652
      %v666 = vpop.f32.mrf.mxu0
      %v667 = vadd.f32 0.0, %v666
      %v668 = vpop.f32.mrf.mxu0
      %669 = vdwg.mxu0
      %671 = vrot.lane.b32.xlu0 %v667, 24
      %v672 = vpop.permute.xlu0 %671
      %v674 = vadd.f32 %v647, %v672
      %vm675 = vcmask 261312
      %676 = vst.msk [vmem:[#allocation4] sm:$0xff] %vm675, %v674
      %677 = vst.msk [vmem:[%s616] sm:$0xff] %vm384, %v621
      // Predicated region
      $region41: #{text_decoder_forward.20} parent=35 // pred_check
        %p678 = pneg %p302
      $region42: #{text_decoder_forward.20} parent=35 // pred_check_branch
        %680 = sbr.rel (%p678) target = $region44
      $region43: #{text_decoder_forward.20} parent=35 // pred_region
        %v681 = vld [vmem:[#allocation4] sm:$0xff]
        %v682 = vld [vmem:[#allocation3] sm:$0xff]
        %v683 = vrcp.pop %v682
        %v684 = vmul.f32 %v682, %v683
        %v685 = vsub.f32 1.0, %v684
        %v686 = vmul.f32 %v683, %v685
        %v687 = vadd.f32 %v683, %v686
        %vm688 = vweird.f32 %v682
        %vm689 = vweird.f32 %v683
        %vm690 = vmor %vm688, %vm689
        %v691 = vsel %vm690, %v683, %v687
        %v692 = vand.u32 2147483647, %v682
        %vm693 = vcmp.eq.f32.partialorder %v692, 8.507059e+37
        %v694 = vand.u32 %v682, 2147483648
        %v695 = vor.u32 1.1754944e-38, %v694
        %v696 = vsel %vm693, %v695, %v691
        %v697 = vmul.f32 1.0, %v696
        %699 = vset.pattern.permute.xlu0 0
        %700 = vperm.xlu0 %699, %v697
        %v701 = vpop.permute.xlu0 %700
        %v703 = vmul.f32 %v681, %v701
        %v704 = vld [vmem:[%s463] sm:$0xff]
        %v705 = vrcp.pop %v704
        %v706 = vmul.f32 %v704, %v705
        %v707 = vsub.f32 1.0, %v706
        %v708 = vmul.f32 %v705, %v707
        %v709 = vadd.f32 %v705, %v708
        %vm710 = vweird.f32 %v704
        %vm711 = vweird.f32 %v705
        %vm712 = vmor %vm710, %vm711
        %v713 = vsel %vm712, %v705, %v709
        %v714 = vand.u32 2147483647, %v704
        %vm715 = vcmp.eq.f32.partialorder %v714, 8.507059e+37
        %v716 = vand.u32 %v704, 2147483648
        %v717 = vor.u32 1.1754944e-38, %v716
        %v718 = vsel %vm715, %v717, %v713
        %v719 = vmul.f32 1.0, %v718
        %721 = vset.pattern.permute.xlu0 0
        %722 = vperm.xlu0 %721, %v719
        %v723 = vpop.permute.xlu0 %722
        %v725 = vmul.f32 %v681, %v723
        %v726 = vld [vmem:[%s548] sm:$0xff]
        %v727 = vrcp.pop %v726
        %v728 = vmul.f32 %v726, %v727
        %v729 = vsub.f32 1.0, %v728
        %v730 = vmul.f32 %v727, %v729
        %v731 = vadd.f32 %v727, %v730
        %vm732 = vweird.f32 %v726
        %vm733 = vweird.f32 %v727
        %vm734 = vmor %vm732, %vm733
        %v735 = vsel %vm734, %v727, %v731
        %v736 = vand.u32 2147483647, %v726
        %vm737 = vcmp.eq.f32.partialorder %v736, 8.507059e+37
        %v738 = vand.u32 %v726, 2147483648
        %v739 = vor.u32 1.1754944e-38, %v738
        %v740 = vsel %vm737, %v739, %v735
        %v741 = vmul.f32 1.0, %v740
        %743 = vset.pattern.permute.xlu0 0
        %744 = vperm.xlu0 %743, %v741
        %v745 = vpop.permute.xlu0 %744
        %v747 = vmul.f32 %v681, %v745
        %v748 = vld [vmem:[%s633] sm:$0xff]
        %v749 = vrcp.pop %v748
        %v750 = vmul.f32 %v748, %v749
        %v751 = vsub.f32 1.0, %v750
        %v752 = vmul.f32 %v749, %v751
        %v753 = vadd.f32 %v749, %v752
        %vm754 = vweird.f32 %v748
        %vm755 = vweird.f32 %v749
        %vm756 = vmor %vm754, %vm755
        %v757 = vsel %vm756, %v749, %v753
        %v758 = vand.u32 2147483647, %v748
        %vm759 = vcmp.eq.f32.partialorder %v758, 8.507059e+37
        %v760 = vand.u32 %v748, 2147483648
        %v761 = vor.u32 1.1754944e-38, %v760
        %v762 = vsel %vm759, %v761, %v757
        %v763 = vmul.f32 1.0, %v762
        %765 = vset.pattern.permute.xlu0 0
        %766 = vperm.xlu0 %765, %v763
        %v767 = vpop.permute.xlu0 %766
        %v769 = vmul.f32 %v681, %v767
        %v770 = vsel %vm342, %v703, %v725
        %vm771 = vcmask 130048
        %v772 = vsel %vm771, %v770, %v747
        %vm773 = vcmask 195584
        %v774 = vsel %vm773, %v772, %v769
        %v775 = vpack.c.bf16 %v774, %v774
        %vm776 = vcmask 257024
        %777 = vst.msk [vmem:[%s300] sm:$0xf] %vm776, %v775
      $region44: #{text_decoder_forward.20} parent=35 // pred_fallthru
        _
      %p778 = scmp.lt.s32.totalorder %s20, 1
      %s779 = scalar_select %p778, %s20, 1
      %p780 = scmp.lt.s32.totalorder %s21, 0
      %s781 = scalar_select %p780, %s21, 0
      %s782 = sadd.s32 %s781, %s779
      %s783 = smul.addr %s782, 4
      %s784 = scalar_lea.vmem %s4, %s783
      // Predicated region
      $region45: #{text_decoder_forward.20} parent=35 // pred_check
        %p785 = pneg %p164
      $region46: #{text_decoder_forward.20} parent=35 // pred_check_branch
        %787 = sbr.rel (%p785) target = $region48
      $region47: #{text_decoder_forward.20} parent=35 // pred_region
        _
      $region48: #{text_decoder_forward.20} parent=35 // pred_fallthru
        _
    $region36: #{text_decoder_forward.20} parent=5 // pred_fallthru
      _
    %p788 = scmp.le.s32.totalorder 2, %s10
    // Predicated region
    $region49: #{text_decoder_forward.20} parent=5 // pred_check
      %p789 = pneg %p788
    $region50: #{text_decoder_forward.20} parent=5 // pred_check_branch
      %791 = sbr.rel (%p789) target = $region52
    $region51: #{text_decoder_forward.20} parent=5 // pred_region
      %s792 = ssub.s32 %s10, 2
      // Predicated region
      $region53: #{text_decoder_forward.20} parent=51 // pred_check
        %p793 = pneg %p170
      $region54: #{text_decoder_forward.20} parent=51 // pred_check_branch
        %795 = sbr.rel (%p793) target = $region56
      $region55: #{text_decoder_forward.20} parent=51 // pred_region
        %p796 = scmp.lt.s32.totalorder %s23, 1
        %s797 = scalar_select %p796, %s23, 1
        %p798 = scmp.lt.s32.totalorder %s24, 0
        %s799 = scalar_select %p798, %s24, 0
        %s800 = sadd.s32 %s799, %s797
        %s801 = smul.addr %s800, 4
        %s802 = scalar_lea.vmem %s4, %s801
      $region56: #{text_decoder_forward.20} parent=51 // pred_fallthru
        _
    $region52: #{text_decoder_forward.20} parent=5 // pred_fallthru
      _
  $region6: #{text_decoder_forward.20} parent=0 // loop_footer
    %s14 = sadd.s32 1, %s10
  $region7: #{text_decoder_forward.20} parent=0 // loop_footer_branch
    %9 = sbr.rel target = $region3
  $region8: #{text_decoder_forward.20} parent=0 // loop_exit
    _

// kernel: text_decoder_forward.23
$region0: #{text_decoder_forward.23}
  #allocation0 [shape = 'u32[]', space=smem, size = 0x4, offset = 0x4, fixed_abs, tag = 'smem constant byte address 0x4 - core index']
  #allocation1 [shape = 'u32[72,128]{1,0:T(1,128)}', space=vmem, size = 0x9000, scoped, tag = 'internal scratch']
  #allocation2 [shape = 'f32[32,64]{1,0:T(8,128)}', space=vmem, size = 0x4000, scoped, tag = 'scratch operand']
  %s0 = inlined_call_operand.vmem [shape: f32[32,32], index: 0, kind: input, shape index: {}]
  %s1 = inlined_call_operand.vmem [shape: bf16[32,64], index: 1, kind: input, shape index: {}]
  %s2 = inlined_call_operand.vmem [shape: f32[1,64], index: 2, kind: input, shape index: {}]
  %s3 = inlined_call_operand.vmem [shape: bf16[32,64], index: 3, kind: output, shape index: {}]
  %s4 = sld [smem:[#allocation0]]
  $region30: #{text_decoder_forward.23} parent=0
    _
  %s6 = ssub.s32 1, %s4
  %s7 = scalar_select 0, %s6, %s4
  // Predicated region
  $region2: #{text_decoder_forward.23} parent=0 // pred_check
    _
  $region3: #{text_decoder_forward.23} parent=0 // pred_check_branch
    %9 = sbr.rel (0) target = $region5
  $region4: #{text_decoder_forward.23} parent=0 // pred_region
    _
  $region5: #{text_decoder_forward.23} parent=0 // pred_fallthru
    _
  // Predicated region
  $region6: #{text_decoder_forward.23} parent=0 // pred_check
    _
  $region7: #{text_decoder_forward.23} parent=0 // pred_check_branch
    %11 = sbr.rel (0) target = $region9
  $region8: #{text_decoder_forward.23} parent=0 // pred_region
    _
  $region9: #{text_decoder_forward.23} parent=0 // pred_fallthru
    _
  // Predicated region
  $region10: #{text_decoder_forward.23} parent=0 // pred_check
    _
  $region11: #{text_decoder_forward.23} parent=0 // pred_check_branch
    %13 = sbr.rel (0) target = $region13
  $region12: #{text_decoder_forward.23} parent=0 // pred_region
    _
  $region13: #{text_decoder_forward.23} parent=0 // pred_fallthru
    _
  %p15 = scmp.eq.s32.totalorder 0, 0
  // Predicated region
  $region14: #{text_decoder_forward.23} parent=0 // pred_check
    %p16 = pneg %p15
  $region15: #{text_decoder_forward.23} parent=0 // pred_check_branch
    %18 = sbr.rel (%p16) target = $region17
  $region16: #{text_decoder_forward.23} parent=0 // pred_region
    %vm19 = vcmask 523264
    %20 = vst.msk [vmem:[#allocation2] sm:$0xff] %vm19, 0.0
    %21 = vst.msk [vmem:[#allocation2 + $0x8] sm:$0xff] %vm19, 0.0
    %22 = vst.msk [vmem:[#allocation2 + $0x10] sm:$0xff] %vm19, 0.0
    %23 = vst.msk [vmem:[#allocation2 + $0x18] sm:$0xff] %vm19, 0.0
  $region17: #{text_decoder_forward.23} parent=0 // pred_fallthru
    _
  %v24 = vld [vmem:[%s0] sm:$0xff]
  %v25 = vld [vmem:[%s0 + $0x8] sm:$0xff]
  %v26 = vld [vmem:[%s0 + $0x10] sm:$0xff]
  %v27 = vld [vmem:[%s0 + $0x18] sm:$0xff]
  %v28 = vpack.c.bf16 %v25, %v24
  %v29 = vpack.c.bf16 %v27, %v26
  %v30 = vld [vmem:[#allocation2] sm:$0xff]
  %v31 = vld [vmem:[#allocation2 + $0x8] sm:$0xff]
  %v32 = vld [vmem:[#allocation2 + $0x10] sm:$0xff]
  %v33 = vld [vmem:[#allocation2 + $0x18] sm:$0xff]
  %v34 = vld [vmem:[%s1] sm:$0xf]
  %v35 = vld [vmem:[%s1 + $0x4] sm:$0xf]
  %v36 = vld [vmem:[%s1 + $0x8] sm:$0xf]
  %v37 = vld [vmem:[%s1 + $0xc] sm:$0xf]
  %v42 = vunpack.c.l.b16 %v34
  %v43 = vunpack.c.l.b16 %v35
  %v44 = vunpack.c.l.b16 %v36
  %v45 = vunpack.c.l.b16 %v37
  %v46 = vpack.c.b16 %v43, %v42
  %v47 = vpack.c.b16 %v45, %v44
  %vm50 = vcmask 261120
  %v52 = vsel %vm50, %v28, 0
  %v55 = vsel %vm50, %v29, 0
  %57 = vmatpush.bf16.msra.mxu0 0
  %58 = vmatpush.bf16.msra.mxu0 0
  %59 = vmatpush.bf16.msra.mxu0 0
  %60 = vmatpush.bf16.msra.mxu0 0
  %61 = vmatpush.bf16.msra.mxu0 0
  %62 = vmatpush.bf16.msra.mxu0 0
  %63 = vmatpush.bf16.msra.mxu0 %v47
  %64 = vmatpush.bf16.msra.mxu0 %v46
  %65 = vmatmul.bf16.gmra.mxu0 %v52
  %v66 = vpop.f32.mrf.mxu0
  %v67 = vadd.f32 0.0, %v66
  %v68 = vpop.f32.mrf.mxu0
  %v69 = vadd.f32 0.0, %v68
  %70 = vmatmul.bf16.gmra.mxu0 %v55
  %v71 = vpop.f32.mrf.mxu0
  %v72 = vadd.f32 0.0, %v71
  %v73 = vpop.f32.mrf.mxu0
  %v74 = vadd.f32 0.0, %v73
  %75 = vdwg.mxu0
  %v76 = vadd.f32 %v30, %v67
  %v77 = vadd.f32 %v31, %v69
  %v78 = vadd.f32 %v32, %v72
  %v79 = vadd.f32 %v33, %v74
  %vm80 = vcmask 523264
  %81 = vst.msk [vmem:[#allocation2] sm:$0xff] %vm80, %v76
  %82 = vst.msk [vmem:[#allocation2 + $0x8] sm:$0xff] %vm80, %v77
  %83 = vst.msk [vmem:[#allocation2 + $0x10] sm:$0xff] %vm80, %v78
  %84 = vst.msk [vmem:[#allocation2 + $0x18] sm:$0xff] %vm80, %v79
  // Predicated region
  $region18: #{text_decoder_forward.23} parent=0 // pred_check
    %p85 = pneg %p15
  $region19: #{text_decoder_forward.23} parent=0 // pred_check_branch
    %87 = sbr.rel (%p85) target = $region21
  $region20: #{text_decoder_forward.23} parent=0 // pred_region
    %v88 = vld [vmem:[#allocation2] sm:$0xff]
    %v89 = vld [vmem:[#allocation2 + $0x8] sm:$0xff]
    %v90 = vld [vmem:[#allocation2 + $0x10] sm:$0xff]
    %v91 = vld [vmem:[#allocation2 + $0x18] sm:$0xff]
    %v92 = vld [vmem:[%s2] sm:$0x1]
    %v94 = vperm.slane %v92, 0
    %v96 = vadd.f32 %v88, %v94
    %v97 = vadd.f32 %v89, %v94
    %v98 = vadd.f32 %v90, %v94
    %v99 = vadd.f32 %v91, %v94
    %v100 = vpack.c.bf16 %v96, %v96
    %v101 = vpack.c.bf16 %v97, %v97
    %v102 = vpack.c.bf16 %v98, %v98
    %v103 = vpack.c.bf16 %v99, %v99
    %vm104 = vcmask 519168
    %105 = vst.msk [vmem:[%s3] sm:$0xf] %vm104, %v100
    %106 = vst.msk [vmem:[%s3 + $0x4] sm:$0xf] %vm104, %v101
    %107 = vst.msk [vmem:[%s3 + $0x8] sm:$0xf] %vm104, %v102
    %108 = vst.msk [vmem:[%s3 + $0xc] sm:$0xf] %vm104, %v103
  $region21: #{text_decoder_forward.23} parent=0 // pred_fallthru
    _
  // Predicated region
  $region22: #{text_decoder_forward.23} parent=0 // pred_check
    _
  $region23: #{text_decoder_forward.23} parent=0 // pred_check_branch
    %110 = sbr.rel (0) target = $region25
  $region24: #{text_decoder_forward.23} parent=0 // pred_region
    _
  $region25: #{text_decoder_forward.23} parent=0 // pred_fallthru
    _
  // Predicated region
  $region26: #{text_decoder_forward.23} parent=0 // pred_check
    _
  $region27: #{text_decoder_forward.23} parent=0 // pred_check_branch
    %112 = sbr.rel (0) target = $region29
  $region28: #{text_decoder_forward.23} parent=0 // pred_region
    _
  $region29: #{text_decoder_forward.23} parent=0 // pred_fallthru
    _

// kernel: text_decoder_forward.27
$region0: #{text_decoder_forward.27}
  #allocation0 [shape = 'u32[]', space=smem, size = 0x4, offset = 0x4, fixed_abs, tag = 'smem constant byte address 0x4 - core index']
  #allocation1 [shape = 'u32[72,128]{1,0:T(1,128)}', space=vmem, size = 0x9000, scoped, tag = 'internal scratch']
  #allocation2 [shape = 'f32[16,32]{1,0:T(8,128)}', space=vmem, size = 0x2000, scoped, tag = 'scratch operand']
  %s0 = inlined_call_operand.vmem [shape: bf16[16,128], index: 0, kind: input, shape index: {}]
  %s1 = inlined_call_operand.vmem [shape: bf16[128,32], index: 1, kind: input, shape index: {}]
  %s2 = inlined_call_operand.vmem [shape: f32[1,32], index: 2, kind: input, shape index: {}]
  %s3 = inlined_call_operand.vmem [shape: f32[16,32], index: 3, kind: input, shape index: {}]
  %s4 = inlined_call_operand.vmem [shape: f32[16,32], index: 4, kind: output, shape index: {}]
  %s5 = sld [smem:[#allocation0]]
  $region34: #{text_decoder_forward.27} parent=0
    _
  %s7 = ssub.s32 1, %s5
  %s8 = scalar_select 0, %s7, %s5
  // Predicated region
  $region2: #{text_decoder_forward.27} parent=0 // pred_check
    _
  $region3: #{text_decoder_forward.27} parent=0 // pred_check_branch
    %10 = sbr.rel (0) target = $region5
  $region4: #{text_decoder_forward.27} parent=0 // pred_region
    _
  $region5: #{text_decoder_forward.27} parent=0 // pred_fallthru
    _
  // Predicated region
  $region6: #{text_decoder_forward.27} parent=0 // pred_check
    _
  $region7: #{text_decoder_forward.27} parent=0 // pred_check_branch
    %12 = sbr.rel (0) target = $region9
  $region8: #{text_decoder_forward.27} parent=0 // pred_region
    _
  $region9: #{text_decoder_forward.27} parent=0 // pred_fallthru
    _
  // Predicated region
  $region10: #{text_decoder_forward.27} parent=0 // pred_check
    _
  $region11: #{text_decoder_forward.27} parent=0 // pred_check_branch
    %14 = sbr.rel (0) target = $region13
  $region12: #{text_decoder_forward.27} parent=0 // pred_region
    _
  $region13: #{text_decoder_forward.27} parent=0 // pred_fallthru
    _
  // Predicated region
  $region14: #{text_decoder_forward.27} parent=0 // pred_check
    _
  $region15: #{text_decoder_forward.27} parent=0 // pred_check_branch
    %16 = sbr.rel (0) target = $region17
  $region16: #{text_decoder_forward.27} parent=0 // pred_region
    _
  $region17: #{text_decoder_forward.27} parent=0 // pred_fallthru
    _
  %p17 = scmp.eq.s32.totalorder 0, 0
  // Predicated region
  $region18: #{text_decoder_forward.27} parent=0 // pred_check
    %p18 = pneg %p17
  $region19: #{text_decoder_forward.27} parent=0 // pred_check_branch
    %20 = sbr.rel (%p18) target = $region21
  $region20: #{text_decoder_forward.27} parent=0 // pred_region
    %vm21 = vcmask 261120
    %22 = vst.msk [vmem:[#allocation2] sm:$0xff] %vm21, 0.0
    %23 = vst.msk [vmem:[#allocation2 + $0x8] sm:$0xff] %vm21, 0.0
  $region21: #{text_decoder_forward.27} parent=0 // pred_fallthru
    _
  %v24 = vld [vmem:[%s0] sm:$0xf]
  %v25 = vld [vmem:[%s0 + $0x4] sm:$0xf]
  %v26 = vld [vmem:[#allocation2] sm:$0xff]
  %v27 = vld [vmem:[#allocation2 + $0x8] sm:$0xff]
  %v28 = vld [vmem:[%s1] sm:$0xf]
  %v29 = vld [vmem:[%s1 + $0x4] sm:$0xf]
  %v30 = vld [vmem:[%s1 + $0x8] sm:$0xf]
  %v31 = vld [vmem:[%s1 + $0xc] sm:$0xf]
  %v32 = vld [vmem:[%s1 + $0x10] sm:$0xf]
  %v33 = vld [vmem:[%s1 + $0x14] sm:$0xf]
  %v34 = vld [vmem:[%s1 + $0x18] sm:$0xf]
  %v35 = vld [vmem:[%s1 + $0x1c] sm:$0xf]
  %v36 = vld [vmem:[%s1 + $0x20] sm:$0xf]
  %v37 = vld [vmem:[%s1 + $0x24] sm:$0xf]
  %v38 = vld [vmem:[%s1 + $0x28] sm:$0xf]
  %v39 = vld [vmem:[%s1 + $0x2c] sm:$0xf]
  %v40 = vld [vmem:[%s1 + $0x30] sm:$0xf]
  %v41 = vld [vmem:[%s1 + $0x34] sm:$0xf]
  %v42 = vld [vmem:[%s1 + $0x38] sm:$0xf]
  %v43 = vld [vmem:[%s1 + $0x3c] sm:$0xf]
  %v46 = vunpack.c.l.b16 %v24
  %v47 = vunpack.c.l.b16 %v25
  %v48 = vpack.c.b16 %v47, %v46
  %v66 = vunpack.c.l.b16 %v28
  %v67 = vunpack.c.l.b16 %v29
  %v68 = vunpack.c.l.b16 %v30
  %v69 = vunpack.c.l.b16 %v31
  %v70 = vunpack.c.l.b16 %v32
  %v71 = vunpack.c.l.b16 %v33
  %v72 = vunpack.c.l.b16 %v34
  %v73 = vunpack.c.l.b16 %v35
  %v74 = vunpack.c.l.b16 %v36
  %v75 = vunpack.c.l.b16 %v37
  %v76 = vunpack.c.l.b16 %v38
  %v77 = vunpack.c.l.b16 %v39
  %v78 = vunpack.c.l.b16 %v40
  %v79 = vunpack.c.l.b16 %v41
  %v80 = vunpack.c.l.b16 %v42
  %v81 = vunpack.c.l.b16 %v43
  %v82 = vpack.c.b16 %v67, %v66
  %v83 = vpack.c.b16 %v69, %v68
  %v84 = vpack.c.b16 %v71, %v70
  %v85 = vpack.c.b16 %v73, %v72
  %v86 = vpack.c.b16 %v75, %v74
  %v87 = vpack.c.b16 %v77, %v76
  %v88 = vpack.c.b16 %v79, %v78
  %v89 = vpack.c.b16 %v81, %v80
  %98 = vmatpush.bf16.msra.mxu0 %v89
  %99 = vmatpush.bf16.msra.mxu0 %v88
  %100 = vmatpush.bf16.msra.mxu0 %v87
  %101 = vmatpush.bf16.msra.mxu0 %v86
  %102 = vmatpush.bf16.msra.mxu0 %v85
  %103 = vmatpush.bf16.msra.mxu0 %v84
  %104 = vmatpush.bf16.msra.mxu0 %v83
  %105 = vmatpush.bf16.msra.mxu0 %v82
  %106 = vmatmul.bf16.gmra.mxu0 %v48
  %v107 = vpop.f32.mrf.mxu0
  %v108 = vadd.f32 0.0, %v107
  %v109 = vpop.f32.mrf.mxu0
  %v110 = vadd.f32 0.0, %v109
  %111 = vdwg.mxu0
  %v112 = vadd.f32 %v26, %v108
  %v113 = vadd.f32 %v27, %v110
  %vm114 = vcmask 261120
  %115 = vst.msk [vmem:[#allocation2] sm:$0xff] %vm114, %v112
  %116 = vst.msk [vmem:[#allocation2 + $0x8] sm:$0xff] %vm114, %v113
  // Predicated region
  $region22: #{text_decoder_forward.27} parent=0 // pred_check
    %p117 = pneg %p17
  $region23: #{text_decoder_forward.27} parent=0 // pred_check_branch
    %119 = sbr.rel (%p117) target = $region25
  $region24: #{text_decoder_forward.27} parent=0 // pred_region
    %v120 = vld [vmem:[#allocation2] sm:$0xff]
    %v121 = vld [vmem:[#allocation2 + $0x8] sm:$0xff]
    %v122 = vld [vmem:[%s2] sm:$0x1]
    %v124 = vperm.slane %v122, 0
    %v126 = vadd.f32 %v120, %v124
    %v127 = vadd.f32 %v121, %v124
    %v128 = vld [vmem:[%s3] sm:$0xff]
    %v129 = vld [vmem:[%s3 + $0x8] sm:$0xff]
    %v130 = vadd.f32 %v126, %v128
    %v131 = vadd.f32 %v127, %v129
    %132 = vst.msk [vmem:[%s4] sm:$0xff] %vm114, %v130
    %133 = vst.msk [vmem:[%s4 + $0x8] sm:$0xff] %vm114, %v131
  $region25: #{text_decoder_forward.27} parent=0 // pred_fallthru
    _
  // Predicated region
  $region26: #{text_decoder_forward.27} parent=0 // pred_check
    _
  $region27: #{text_decoder_forward.27} parent=0 // pred_check_branch
    %135 = sbr.rel (0) target = $region29
  $region28: #{text_decoder_forward.27} parent=0 // pred_region
    _
  $region29: #{text_decoder_forward.27} parent=0 // pred_fallthru
    _
  // Predicated region
  $region30: #{text_decoder_forward.27} parent=0 // pred_check
    _
  $region31: #{text_decoder_forward.27} parent=0 // pred_check_branch
    %137 = sbr.rel (0) target = $region33
  $region32: #{text_decoder_forward.27} parent=0 // pred_region
    _
  $region33: #{text_decoder_forward.27} parent=0 // pred_fallthru
    _

// kernel: text_decoder_forward.24
$region0: #{text_decoder_forward.24}
  #allocation0 [shape = 'u32[]', space=smem, size = 0x4, offset = 0x4, fixed_abs, tag = 'smem constant byte address 0x4 - core index']
  #allocation1 [shape = 'u32[72,128]{1,0:T(1,128)}', space=vmem, size = 0x9000, scoped, tag = 'internal scratch']
  #allocation2 [shape = 'f32[4,8,1]{2,1,0:T(8,128)}', space=vmem, size = 0x4000, scoped, tag = 'scratch operand']
  #allocation3 [shape = 'f32[4,8,1]{2,1,0:T(8,128)}', space=vmem, size = 0x4000, scoped, tag = 'scratch operand']
  #allocation4 [shape = 'f32[8,32]{1,0:T(8,128)}', space=vmem, size = 0x1000, scoped, tag = 'scratch operand']
  %s0 = inlined_call_operand.vmem [shape: bf16[2,8,32], index: 0, kind: input, shape index: {}]
  %s1 = inlined_call_operand.vmem [shape: bf16[2,16,64], index: 1, kind: input, shape index: {}, may-alias: {1,2}]
  %s2 = inlined_call_operand.vmem [shape: bf16[2,16,64], index: 2, kind: input, shape index: {}, may-alias: {1,2}]
  %s3 = inlined_call_operand.vmem [shape: bf16[2,8,32], index: 3, kind: output, shape index: {}]
  %s4 = sld [smem:[#allocation0]]
  $region53: #{text_decoder_forward.24} parent=0
    _
  %s6 = ssub.s32 1, %s4
  %s7 = scalar_select 0, %s6, %s4
  loop: start=0, step=1, limit=4
  $region2: #{text_decoder_forward.24} parent=0 // loop_pre_header
    _
  $region3: #{text_decoder_forward.24} parent=0 // loop_header
    %s9 = sphi 0, %s13
    %p10 = scmp.ge.s32.totalorder %s9, 4
    %s16 = sphi 0, %s35
    %s17 = sphi 0, %s31
    %s18 = sphi 0, %s27
    %s19 = sphi 0, %s16
    %s20 = sphi 0, %s17
    %s21 = sphi 0, %s18
    %s22 = sphi 0, %s19
    %s23 = sphi 0, %s20
    %s24 = sphi 0, %s21
    %s38 = sphi 0, %s40
    %s41 = sphi 0, %s38
    %s42 = sphi 0, %s41
    %s58 = sphi 0, %s42
    %s66 = sphi 0, %s68
    %s69 = sphi 0, %s66
    %s70 = sphi 0, %s69
    %s86 = sphi 0, %s70
    %s94 = sphi 0, %s96
    %s97 = sphi 0, %s94
    %s98 = sphi 0, %s97
    %s114 = sphi 0, %s98
    %s122 = sphi 0, %s124
    %s125 = sphi 0, %s122
    %s126 = sphi 0, %s125
    %s142 = sphi 0, %s126
  $region4: #{text_decoder_forward.24} parent=0 // loop_header_branch
    %12 = sbr.rel (%p10) target = $region8
  $region5: #{text_decoder_forward.24} parent=0 // loop_body
    %s14 = ssub.s32 %s9, 1
    %s15 = ssub.s32 %s9, 2
    %s25 = sadd.s32 1, %s18
    %p26 = scmp.ge.s32.totalorder %s25, 1
    %s27 = scalar_select %p26, 0, %s25
    %s28 = sadd.s32 1, %s17
    %s29 = scalar_select %p26, %s28, %s17
    %p30 = scmp.ge.s32.totalorder %s29, 1
    %s31 = scalar_select %p30, 0, %s29
    %s32 = sadd.s32 1, %s16
    %s33 = scalar_select %p30, %s32, %s16
    %p34 = scmp.ge.s32.totalorder %s33, 2
    %s35 = scalar_select %p34, 0, %s33
    %s36 = ssub.s32 %s16, %s35
    %p37 = scmp.eq.s32.totalorder %s36, 0
    %s39 = sadd.s32 %s38, 1
    %s40 = scalar_select %p37, %s38, %s39
    %p43 = pneg %p37
    %p44 = scmp.eq.s32.totalorder %s9, 1
    %p45 = por %p43, %p44
    %p46 = scmp.ne.s32.totalorder %s38, %s41
    %p47 = scmp.eq.s32.totalorder %s9, 0
    %p48 = por %p46, %p47
    %p49 = scmp.ne.s32.totalorder %s38, %s41
    %p50 = scmp.eq.s32.totalorder %s14, 1
    %p51 = por %p49, %p50
    %p52 = scmp.ne.s32.totalorder %s41, %s42
    %p53 = scmp.eq.s32.totalorder %s14, 0
    %p54 = por %p52, %p53
    %p55 = scmp.ne.s32.totalorder %s41, %s42
    %p56 = scmp.eq.s32.totalorder %s15, 1
    %p57 = por %p55, %p56
    %p59 = scmp.ne.s32.totalorder %s42, %s58
    %p60 = scmp.eq.s32.totalorder %s15, 0
    %p61 = por %p59, %p60
    %s62 = ssub.s32 %s16, %s35
    %s63 = ssub.s32 %s18, %s27
    %s64 = sor.u32 %s62, %s63
    %p65 = scmp.eq.s32.totalorder %s64, 0
    %s67 = sadd.s32 %s66, 1
    %s68 = scalar_select %p65, %s66, %s67
    %p71 = pneg %p65
    %p72 = scmp.eq.s32.totalorder %s9, 1
    %p73 = por %p71, %p72
    %p74 = scmp.ne.s32.totalorder %s66, %s69
    %p75 = scmp.eq.s32.totalorder %s9, 0
    %p76 = por %p74, %p75
    %p77 = scmp.ne.s32.totalorder %s66, %s69
    %p78 = scmp.eq.s32.totalorder %s14, 1
    %p79 = por %p77, %p78
    %p80 = scmp.ne.s32.totalorder %s69, %s70
    %p81 = scmp.eq.s32.totalorder %s14, 0
    %p82 = por %p80, %p81
    %p83 = scmp.ne.s32.totalorder %s69, %s70
    %p84 = scmp.eq.s32.totalorder %s15, 1
    %p85 = por %p83, %p84
    %p87 = scmp.ne.s32.totalorder %s70, %s86
    %p88 = scmp.eq.s32.totalorder %s15, 0
    %p89 = por %p87, %p88
    %s90 = ssub.s32 %s16, %s35
    %s91 = ssub.s32 %s18, %s27
    %s92 = sor.u32 %s90, %s91
    %p93 = scmp.eq.s32.totalorder %s92, 0
    %s95 = sadd.s32 %s94, 1
    %s96 = scalar_select %p93, %s94, %s95
    %p99 = pneg %p93
    %p100 = scmp.eq.s32.totalorder %s9, 1
    %p101 = por %p99, %p100
    %p102 = scmp.ne.s32.totalorder %s94, %s97
    %p103 = scmp.eq.s32.totalorder %s9, 0
    %p104 = por %p102, %p103
    %p105 = scmp.ne.s32.totalorder %s94, %s97
    %p106 = scmp.eq.s32.totalorder %s14, 1
    %p107 = por %p105, %p106
    %p108 = scmp.ne.s32.totalorder %s97, %s98
    %p109 = scmp.eq.s32.totalorder %s14, 0
    %p110 = por %p108, %p109
    %p111 = scmp.ne.s32.totalorder %s97, %s98
    %p112 = scmp.eq.s32.totalorder %s15, 1
    %p113 = por %p111, %p112
    %p115 = scmp.ne.s32.totalorder %s98, %s114
    %p116 = scmp.eq.s32.totalorder %s15, 0
    %p117 = por %p115, %p116
    %s118 = ssub.s32 %s16, %s35
    %s119 = ssub.s32 %s17, %s31
    %s120 = sor.u32 %s118, %s119
    %p121 = scmp.eq.s32.totalorder %s120, 0
    %s123 = sadd.s32 %s122, 1
    %s124 = scalar_select %p121, %s122, %s123
    %p127 = pneg %p121
    %p128 = scmp.eq.s32.totalorder %s9, 1
    %p129 = por %p127, %p128
    %p130 = scmp.ne.s32.totalorder %s122, %s125
    %p131 = scmp.eq.s32.totalorder %s9, 0
    %p132 = por %p130, %p131
    %p133 = scmp.ne.s32.totalorder %s122, %s125
    %p134 = scmp.eq.s32.totalorder %s14, 1
    %p135 = por %p133, %p134
    %p136 = scmp.ne.s32.totalorder %s125, %s126
    %p137 = scmp.eq.s32.totalorder %s14, 0
    %p138 = por %p136, %p137
    %p139 = scmp.ne.s32.totalorder %s125, %s126
    %p140 = scmp.eq.s32.totalorder %s15, 1
    %p141 = por %p139, %p140
    %p143 = scmp.ne.s32.totalorder %s126, %s142
    %p144 = scmp.eq.s32.totalorder %s15, 0
    %p145 = por %p143, %p144
    %p146 = scmp.le.s32.totalorder 1, %s9
    %p147 = scmp.lt.s32.totalorder %s9, 3
    %p148 = pnand %p146, %p147
    %p149 = pneg %p148
    // Predicated region
    $region9: #{text_decoder_forward.24} parent=5 // pred_check
      _
    $region10: #{text_decoder_forward.24} parent=5 // pred_check_branch
      %151 = sbr.rel (%p148) target = $region12
    $region11: #{text_decoder_forward.24} parent=5 // pred_region
      %s152 = ssub.s32 %s9, 1
    $region12: #{text_decoder_forward.24} parent=5 // pred_fallthru
      _
    %p153 = scmp.lt.s32.totalorder %s9, 2
    // Predicated region
    $region13: #{text_decoder_forward.24} parent=5 // pred_check
      %p154 = pneg %p153
    $region14: #{text_decoder_forward.24} parent=5 // pred_check_branch
      %156 = sbr.rel (%p154) target = $region16
    $region15: #{text_decoder_forward.24} parent=5 // pred_region
      // Predicated region
      $region17: #{text_decoder_forward.24} parent=15 // pred_check
        %p157 = pneg %p48
      $region18: #{text_decoder_forward.24} parent=15 // pred_check_branch
        %159 = sbr.rel (%p157) target = $region20
      $region19: #{text_decoder_forward.24} parent=15 // pred_region
        %p160 = scmp.lt.s32.totalorder %s16, 1
        %s161 = scalar_select %p160, %s16, 1
        %s162 = smul.addr %s161, 4
        %s163 = scalar_lea.vmem %s0, %s162
      $region20: #{text_decoder_forward.24} parent=15 // pred_fallthru
        _
      // Predicated region
      $region21: #{text_decoder_forward.24} parent=15 // pred_check
        %p164 = pneg %p76
      $region22: #{text_decoder_forward.24} parent=15 // pred_check_branch
        %166 = sbr.rel (%p164) target = $region24
      $region23: #{text_decoder_forward.24} parent=15 // pred_region
        %s167 = smul.u32 2, %s18
        %p168 = scmp.lt.s32.totalorder %s16, 1
        %s169 = scalar_select %p168, %s16, 1
        %p170 = scmp.lt.s32.totalorder %s167, 1
        %s171 = scalar_select %p170, %s167, 1
        %s172 = smul.addr %s169, 2
        %s173 = sadd.s32 %s171, %s172
        %s174 = smul.addr %s173, 4
        %s175 = scalar_lea.vmem %s1, %s174
        %s176 = smul.u32 2, %s18
      $region24: #{text_decoder_forward.24} parent=15 // pred_fallthru
        _
      // Predicated region
      $region25: #{text_decoder_forward.24} parent=15 // pred_check
        %p177 = pneg %p104
      $region26: #{text_decoder_forward.24} parent=15 // pred_check_branch
        %179 = sbr.rel (%p177) target = $region28
      $region27: #{text_decoder_forward.24} parent=15 // pred_region
        %s180 = smul.u32 2, %s18
        %p181 = scmp.lt.s32.totalorder %s16, 1
        %s182 = scalar_select %p181, %s16, 1
        %p183 = scmp.lt.s32.totalorder %s180, 1
        %s184 = scalar_select %p183, %s180, 1
        %s185 = smul.addr %s182, 2
        %s186 = sadd.s32 %s184, %s185
        %s187 = smul.addr %s186, 4
        %s188 = scalar_lea.vmem %s2, %s187
        %s189 = smul.u32 2, %s18
      $region28: #{text_decoder_forward.24} parent=15 // pred_fallthru
        _
    $region16: #{text_decoder_forward.24} parent=5 // pred_fallthru
      _
    %p190 = scmp.le.s32.totalorder 1, %s9
    %p191 = scmp.lt.s32.totalorder %s9, 3
    %p192 = pnand %p190, %p191
    %p193 = pneg %p192
    // Predicated region
    $region29: #{text_decoder_forward.24} parent=5 // pred_check
      _
    $region30: #{text_decoder_forward.24} parent=5 // pred_check_branch
      %195 = sbr.rel (%p192) target = $region32
    $region31: #{text_decoder_forward.24} parent=5 // pred_region
      %s196 = ssub.s32 %s9, 1
      %p197 = scmp.lt.s32.totalorder %s19, 1
      %s198 = scalar_select %p197, %s19, 1
      %s199 = smul.addr %s198, 4
      %s200 = scalar_lea.vmem %s0, %s199
      %p201 = pneg %p54
      %p202 = pneg %p51
      %s203 = smul.u32 2, %s21
      %p204 = scmp.lt.s32.totalorder %s19, 1
      %s205 = scalar_select %p204, %s19, 1
      %p206 = scmp.lt.s32.totalorder %s203, 1
      %s207 = scalar_select %p206, %s203, 1
      %s208 = smul.addr %s205, 2
      %s209 = sadd.s32 %s207, %s208
      %s210 = smul.addr %s209, 4
      %s211 = scalar_lea.vmem %s1, %s210
      %p212 = pneg %p82
      %p213 = pneg %p79
      %s214 = smul.u32 2, %s21
      %p215 = scmp.lt.s32.totalorder %s19, 1
      %s216 = scalar_select %p215, %s19, 1
      %p217 = scmp.lt.s32.totalorder %s214, 1
      %s218 = scalar_select %p217, %s214, 1
      %s219 = smul.addr %s216, 2
      %s220 = sadd.s32 %s218, %s219
      %s221 = smul.addr %s220, 4
      %s222 = scalar_lea.vmem %s2, %s221
      %p223 = pneg %p110
      %p224 = pneg %p107
      %p225 = pneg %p138
      %p226 = pneg %p135
      %p227 = scmp.lt.s32.totalorder %s19, 1
      %s228 = scalar_select %p227, %s19, 1
      %p229 = scmp.lt.s32.totalorder %s20, 0
      %s230 = scalar_select %p229, %s20, 0
      %s231 = sadd.s32 %s230, %s228
      %s232 = smul.addr %s231, 4
      %s233 = scalar_lea.vmem %s3, %s232
      %p234 = scmp.lt.s32.totalorder %s19, 1
      %s235 = scalar_select %p234, %s19, 1
      %s236 = smul.addr %s235, 4
      %s237 = scalar_lea.vmem %s0, %s236
      %s238 = smul.u32 2, %s21
      %p239 = scmp.lt.s32.totalorder %s19, 1
      %s240 = scalar_select %p239, %s19, 1
      %p241 = scmp.lt.s32.totalorder %s238, 1
      %s242 = scalar_select %p241, %s238, 1
      %s243 = smul.addr %s240, 2
      %s244 = sadd.s32 %s242, %s243
      %s245 = smul.addr %s244, 4
      %s246 = scalar_lea.vmem %s1, %s245
      %s247 = smul.u32 2, %s21
      %s248 = smul.u32 2, %s21
      %p249 = scmp.lt.s32.totalorder %s19, 1
      %s250 = scalar_select %p249, %s19, 1
      %p251 = scmp.lt.s32.totalorder %s248, 1
      %s252 = scalar_select %p251, %s248, 1
      %s253 = smul.addr %s250, 2
      %s254 = sadd.s32 %s252, %s253
      %s255 = smul.addr %s254, 4
      %s256 = scalar_lea.vmem %s2, %s255
      %s257 = smul.u32 2, %s21
      %p258 = scmp.lt.s32.totalorder %s19, 1
      %s259 = scalar_select %p258, %s19, 1
      %p260 = scmp.lt.s32.totalorder %s20, 0
      %s261 = scalar_select %p260, %s20, 0
      %s262 = sadd.s32 %s261, %s259
      %s263 = smul.addr %s262, 4
      %s264 = scalar_lea.vmem %s3, %s263
      %p266 = scmp.eq.s32.totalorder %s21, 0
      // Predicated region
      $region33: #{text_decoder_forward.24} parent=31 // pred_check
        %p267 = pneg %p266
      $region34: #{text_decoder_forward.24} parent=31 // pred_check_branch
        %269 = sbr.rel (%p267) target = $region36
      $region35: #{text_decoder_forward.24} parent=31 // pred_region
        %vm270 = vcmask 7168
        %271 = vst.msk [vmem:[#allocation2] sm:$0xff] %vm270, -1e+30
        %272 = vst.msk [vmem:[#allocation2 + $0x8] sm:$0xff] %vm270, -1e+30
        %273 = vst.msk [vmem:[#allocation2 + $0x10] sm:$0xff] %vm270, -1e+30
        %274 = vst.msk [vmem:[#allocation2 + $0x18] sm:$0xff] %vm270, -1e+30
        %275 = vst.msk [vmem:[#allocation3] sm:$0xff] %vm270, 0.0
        %276 = vst.msk [vmem:[#allocation3 + $0x8] sm:$0xff] %vm270, 0.0
        %277 = vst.msk [vmem:[#allocation3 + $0x10] sm:$0xff] %vm270, 0.0
        %278 = vst.msk [vmem:[#allocation3 + $0x18] sm:$0xff] %vm270, 0.0
        %vm279 = vcmask 261120
        %280 = vst.msk [vmem:[#allocation4] sm:$0xff] %vm279, 0.0
      $region36: #{text_decoder_forward.24} parent=31 // pred_fallthru
        _
      %v281 = vld [vmem:[%s237] sm:$0xf]
      %v282 = vld [vmem:[%s246] sm:$0xf]
      %v283 = vld [vmem:[%s246 + $0x4] sm:$0xf]
      %v284 = vld [vmem:[%s256] sm:$0xf]
      %v285 = vld [vmem:[%s256 + $0x4] sm:$0xf]
      %v286 = vunpack.c.l.bf16 %v281
      %v287 = vmul.f32 %v286, 0.35351563
      %v288 = vpack.c.bf16 %v287, %v287
      %v291 = vunpack.c.l.b16 %v282
      %v292 = vunpack.c.l.b16 %v283
      %v293 = vpack.c.b16 %v292, %v291
      %vm294 = vcmask 64512
      %v296 = vsel %vm294, %v288, 0
      %v299 = vsel %vm294, %v293, 0
      %301 = vmatpush.bf16.xpose.msra.mxu0 0
      %302 = vmatpush.bf16.xpose.msra.mxu0 0
      %303 = vmatpush.bf16.xpose.msra.mxu0 0
      %304 = vmatpush.bf16.xpose.msra.mxu0 0
      %305 = vmatpush.bf16.xpose.msra.mxu0 0
      %306 = vmatpush.bf16.xpose.msra.mxu0 0
      %307 = vmatpush.bf16.xpose.msra.mxu0 0
      %308 = vmatpush.bf16.xpose.msra.mxu0 %v299
      %309 = vmatmul.bf16.gmra.mxu0 %v296
      %v310 = vpop.f32.mrf.mxu0
      %v311 = vadd.f32 0.0, %v310
      %v312 = vpop.f32.mrf.mxu0
      %313 = vdwg.mxu0
      %v314 = vld [vmem:[#allocation2] sm:$0xff]
      %vm315 = vcmask 130048
      %v316 = vsel %vm315, %v311, -inf
      %317 = vmax.xlane.f32.xlu0 %v316
      %v318 = vpop.xlane.xlu0 %317
      %v319 = vmax.f32 %v314, %v318
      %v320 = vsub.f32 %v314, %v319
      %v321 = vmul.f32 %v320, 1.442695
      %v322 = vpow.pop %v321
      %324 = vset.pattern.permute.xlu0 0
      %325 = vperm.xlu0 %324, %v319
      %v326 = vpop.permute.xlu0 %325
      %v328 = vsub.f32 %v311, %v326
      %v329 = vmul.f32 %v328, 1.442695
      %v330 = vpow.pop %v329
      %v331 = vld [vmem:[#allocation3] sm:$0xff]
      %v332 = vmul.f32 %v322, %v331
      %v333 = vsel %vm315, %v330, 0.0
      %334 = vadd.xlane.f32.xlu0 %v333
      %v335 = vpop.xlane.xlu0 %334
      %v336 = vadd.f32 %v332, %v335
      %vm337 = vcmask 7168
      %338 = vst.msk [vmem:[#allocation3] sm:$0xff] %vm337, %v336
      %v339 = vld [vmem:[#allocation4] sm:$0xff]
      %341 = vset.pattern.permute.xlu0 0
      %342 = vperm.xlu0 %341, %v322
      %v343 = vpop.permute.xlu0 %342
      %v345 = vmul.f32 %v343, %v339
      %v346 = vpack.c.bf16 %v330, %v330
      %v349 = vunpack.c.l.b16 %v284
      %v350 = vunpack.c.l.b16 %v285
      %v351 = vpack.c.b16 %v350, %v349
      %352 = vrot.lane.b32.xlu0 %v351, 96
      %v353 = vpop.permute.xlu0 %352
      %v356 = vsel %vm315, %v346, 0
      %358 = vmatpush.bf16.msra.mxu0 0
      %359 = vmatpush.bf16.msra.mxu0 0
      %360 = vmatpush.bf16.msra.mxu0 0
      %361 = vmatpush.bf16.msra.mxu0 0
      %362 = vmatpush.bf16.msra.mxu0 0
      %363 = vmatpush.bf16.msra.mxu0 0
      %364 = vmatpush.bf16.msra.mxu0 0
      %365 = vmatpush.bf16.msra.mxu0 %v353
      %366 = vmatmul.bf16.gmra.mxu0 %v356
      %v367 = vpop.f32.mrf.mxu0
      %v368 = vadd.f32 0.0, %v367
      %v369 = vpop.f32.mrf.mxu0
      %370 = vdwg.mxu0
      %v371 = vadd.f32 %v345, %v368
      %372 = vst.msk [vmem:[#allocation4] sm:$0xff] %vm294, %v371
      %373 = vst.msk [vmem:[#allocation2] sm:$0xff] %vm337, %v319
      %375 = vrot.lane.b32.xlu0 %v288, 120
      %v376 = vpop.permute.xlu0 %375
      %377 = vrot.lane.b32.xlu0 %v293, 120
      %v378 = vpop.permute.xlu0 %377
      %v380 = vsel %vm294, %v376, 0
      %v383 = vsel %vm294, %v378, 0
      %385 = vmatpush.bf16.xpose.msra.mxu0 0
      %386 = vmatpush.bf16.xpose.msra.mxu0 0
      %387 = vmatpush.bf16.xpose.msra.mxu0 0
      %388 = vmatpush.bf16.xpose.msra.mxu0 0
      %389 = vmatpush.bf16.xpose.msra.mxu0 0
      %390 = vmatpush.bf16.xpose.msra.mxu0 0
      %391 = vmatpush.bf16.xpose.msra.mxu0 0
      %392 = vmatpush.bf16.xpose.msra.mxu0 %v383
      %393 = vmatmul.bf16.gmra.mxu0 %v380
      %v394 = vpop.f32.mrf.mxu0
      %v395 = vadd.f32 0.0, %v394
      %v396 = vpop.f32.mrf.mxu0
      %397 = vdwg.mxu0
      %s398 = scalar_lea.vmem [#allocation2], 8
      %v399 = vld [vmem:[%s398] sm:$0xff]
      %v400 = vsel %vm315, %v395, -inf
      %401 = vmax.xlane.f32.xlu0 %v400
      %v402 = vpop.xlane.xlu0 %401
      %v403 = vmax.f32 %v399, %v402
      %v404 = vsub.f32 %v399, %v403
      %v405 = vmul.f32 %v404, 1.442695
      %v406 = vpow.pop %v405
      %408 = vset.pattern.permute.xlu0 0
      %409 = vperm.xlu0 %408, %v403
      %v410 = vpop.permute.xlu0 %409
      %v412 = vsub.f32 %v395, %v410
      %v413 = vmul.f32 %v412, 1.442695
      %v414 = vpow.pop %v413
      %s415 = scalar_lea.vmem [#allocation3], 8
      %v416 = vld [vmem:[%s415] sm:$0xff]
      %v417 = vmul.f32 %v406, %v416
      %v418 = vsel %vm315, %v414, 0.0
      %419 = vadd.xlane.f32.xlu0 %v418
      %v420 = vpop.xlane.xlu0 %419
      %v421 = vadd.f32 %v417, %v420
      %422 = vst.msk [vmem:[%s415] sm:$0xff] %vm337, %v421
      %v423 = vld [vmem:[#allocation4] sm:$0xff]
      %425 = vset.pattern.permute.xlu0 0
      %426 = vperm.xlu0 %425, %v406
      %v427 = vpop.permute.xlu0 %426
      %v429 = vmul.f32 %v427, %v423
      %v430 = vpack.c.bf16 %v414, %v414
      %431 = vrot.lane.b32.xlu0 %v351, 88
      %v432 = vpop.permute.xlu0 %431
      %v435 = vsel %vm315, %v430, 0
      %437 = vmatpush.bf16.msra.mxu0 0
      %438 = vmatpush.bf16.msra.mxu0 0
      %439 = vmatpush.bf16.msra.mxu0 0
      %440 = vmatpush.bf16.msra.mxu0 0
      %441 = vmatpush.bf16.msra.mxu0 0
      %442 = vmatpush.bf16.msra.mxu0 0
      %443 = vmatpush.bf16.msra.mxu0 0
      %444 = vmatpush.bf16.msra.mxu0 %v432
      %445 = vmatmul.bf16.gmra.mxu0 %v435
      %v446 = vpop.f32.mrf.mxu0
      %v447 = vadd.f32 0.0, %v446
      %v448 = vpop.f32.mrf.mxu0
      %449 = vdwg.mxu0
      %451 = vrot.lane.b32.xlu0 %v447, 8
      %v452 = vpop.permute.xlu0 %451
      %v454 = vadd.f32 %v429, %v452
      %vm455 = vcmask 130112
      %456 = vst.msk [vmem:[#allocation4] sm:$0xff] %vm455, %v454
      %457 = vst.msk [vmem:[%s398] sm:$0xff] %vm337, %v403
      %458 = vrot.lane.b32.xlu0 %v288, 112
      %v459 = vpop.permute.xlu0 %458
      %460 = vrot.lane.b32.xlu0 %v293, 112
      %v461 = vpop.permute.xlu0 %460
      %v463 = vsel %vm294, %v459, 0
      %v466 = vsel %vm294, %v461, 0
      %468 = vmatpush.bf16.xpose.msra.mxu0 0
      %469 = vmatpush.bf16.xpose.msra.mxu0 0
      %470 = vmatpush.bf16.xpose.msra.mxu0 0
      %471 = vmatpush.bf16.xpose.msra.mxu0 0
      %472 = vmatpush.bf16.xpose.msra.mxu0 0
      %473 = vmatpush.bf16.xpose.msra.mxu0 0
      %474 = vmatpush.bf16.xpose.msra.mxu0 0
      %475 = vmatpush.bf16.xpose.msra.mxu0 %v466
      %476 = vmatmul.bf16.gmra.mxu0 %v463
      %v477 = vpop.f32.mrf.mxu0
      %v478 = vadd.f32 0.0, %v477
      %v479 = vpop.f32.mrf.mxu0
      %480 = vdwg.mxu0
      %s481 = scalar_lea.vmem [#allocation2], 16
      %v482 = vld [vmem:[%s481] sm:$0xff]
      %v483 = vsel %vm315, %v478, -inf
      %484 = vmax.xlane.f32.xlu0 %v483
      %v485 = vpop.xlane.xlu0 %484
      %v486 = vmax.f32 %v482, %v485
      %v487 = vsub.f32 %v482, %v486
      %v488 = vmul.f32 %v487, 1.442695
      %v489 = vpow.pop %v488
      %491 = vset.pattern.permute.xlu0 0
      %492 = vperm.xlu0 %491, %v486
      %v493 = vpop.permute.xlu0 %492
      %v495 = vsub.f32 %v478, %v493
      %v496 = vmul.f32 %v495, 1.442695
      %v497 = vpow.pop %v496
      %s498 = scalar_lea.vmem [#allocation3], 16
      %v499 = vld [vmem:[%s498] sm:$0xff]
      %v500 = vmul.f32 %v489, %v499
      %v501 = vsel %vm315, %v497, 0.0
      %502 = vadd.xlane.f32.xlu0 %v501
      %v503 = vpop.xlane.xlu0 %502
      %v504 = vadd.f32 %v500, %v503
      %505 = vst.msk [vmem:[%s498] sm:$0xff] %vm337, %v504
      %v506 = vld [vmem:[#allocation4] sm:$0xff]
      %508 = vset.pattern.permute.xlu0 0
      %509 = vperm.xlu0 %508, %v489
      %v510 = vpop.permute.xlu0 %509
      %v512 = vmul.f32 %v510, %v506
      %v513 = vpack.c.bf16 %v497, %v497
      %514 = vrot.lane.b32.xlu0 %v351, 80
      %v515 = vpop.permute.xlu0 %514
      %v518 = vsel %vm315, %v513, 0
      %520 = vmatpush.bf16.msra.mxu0 0
      %521 = vmatpush.bf16.msra.mxu0 0
      %522 = vmatpush.bf16.msra.mxu0 0
      %523 = vmatpush.bf16.msra.mxu0 0
      %524 = vmatpush.bf16.msra.mxu0 0
      %525 = vmatpush.bf16.msra.mxu0 0
      %526 = vmatpush.bf16.msra.mxu0 0
      %527 = vmatpush.bf16.msra.mxu0 %v515
      %528 = vmatmul.bf16.gmra.mxu0 %v518
      %v529 = vpop.f32.mrf.mxu0
      %v530 = vadd.f32 0.0, %v529
      %v531 = vpop.f32.mrf.mxu0
      %532 = vdwg.mxu0
      %534 = vrot.lane.b32.xlu0 %v530, 16
      %v535 = vpop.permute.xlu0 %534
      %v537 = vadd.f32 %v512, %v535
      %vm538 = vcmask 195712
      %539 = vst.msk [vmem:[#allocation4] sm:$0xff] %vm538, %v537
      %540 = vst.msk [vmem:[%s481] sm:$0xff] %vm337, %v486
      %541 = vrot.lane.b32.xlu0 %v288, 104
      %v542 = vpop.permute.xlu0 %541
      %543 = vrot.lane.b32.xlu0 %v293, 104
      %v544 = vpop.permute.xlu0 %543
      %v546 = vsel %vm294, %v542, 0
      %v549 = vsel %vm294, %v544, 0
      %551 = vmatpush.bf16.xpose.msra.mxu0 0
      %552 = vmatpush.bf16.xpose.msra.mxu0 0
      %553 = vmatpush.bf16.xpose.msra.mxu0 0
      %554 = vmatpush.bf16.xpose.msra.mxu0 0
      %555 = vmatpush.bf16.xpose.msra.mxu0 0
      %556 = vmatpush.bf16.xpose.msra.mxu0 0
      %557 = vmatpush.bf16.xpose.msra.mxu0 0
      %558 = vmatpush.bf16.xpose.msra.mxu0 %v549
      %559 = vmatmul.bf16.gmra.mxu0 %v546
      %v560 = vpop.f32.mrf.mxu0
      %v561 = vadd.f32 0.0, %v560
      %v562 = vpop.f32.mrf.mxu0
      %563 = vdwg.mxu0
      %s564 = scalar_lea.vmem [#allocation2], 24
      %v565 = vld [vmem:[%s564] sm:$0xff]
      %v566 = vsel %vm315, %v561, -inf
      %567 = vmax.xlane.f32.xlu0 %v566
      %v568 = vpop.xlane.xlu0 %567
      %v569 = vmax.f32 %v565, %v568
      %v570 = vsub.f32 %v565, %v569
      %v571 = vmul.f32 %v570, 1.442695
      %v572 = vpow.pop %v571
      %574 = vset.pattern.permute.xlu0 0
      %575 = vperm.xlu0 %574, %v569
      %v576 = vpop.permute.xlu0 %575
      %v578 = vsub.f32 %v561, %v576
      %v579 = vmul.f32 %v578, 1.442695
      %v580 = vpow.pop %v579
      %s581 = scalar_lea.vmem [#allocation3], 24
      %v582 = vld [vmem:[%s581] sm:$0xff]
      %v583 = vmul.f32 %v572, %v582
      %v584 = vsel %vm315, %v580, 0.0
      %585 = vadd.xlane.f32.xlu0 %v584
      %v586 = vpop.xlane.xlu0 %585
      %v587 = vadd.f32 %v583, %v586
      %588 = vst.msk [vmem:[%s581] sm:$0xff] %vm337, %v587
      %v589 = vld [vmem:[#allocation4] sm:$0xff]
      %591 = vset.pattern.permute.xlu0 0
      %592 = vperm.xlu0 %591, %v572
      %v593 = vpop.permute.xlu0 %592
      %v595 = vmul.f32 %v593, %v589
      %v596 = vpack.c.bf16 %v580, %v580
      %597 = vrot.lane.b32.xlu0 %v351, 72
      %v598 = vpop.permute.xlu0 %597
      %v601 = vsel %vm315, %v596, 0
      %603 = vmatpush.bf16.msra.mxu0 0
      %604 = vmatpush.bf16.msra.mxu0 0
      %605 = vmatpush.bf16.msra.mxu0 0
      %606 = vmatpush.bf16.msra.mxu0 0
      %607 = vmatpush.bf16.msra.mxu0 0
      %608 = vmatpush.bf16.msra.mxu0 0
      %609 = vmatpush.bf16.msra.mxu0 0
      %610 = vmatpush.bf16.msra.mxu0 %v598
      %611 = vmatmul.bf16.gmra.mxu0 %v601
      %v612 = vpop.f32.mrf.mxu0
      %v613 = vadd.f32 0.0, %v612
      %v614 = vpop.f32.mrf.mxu0
      %615 = vdwg.mxu0
      %617 = vrot.lane.b32.xlu0 %v613, 24
      %v618 = vpop.permute.xlu0 %617
      %v620 = vadd.f32 %v595, %v618
      %vm621 = vcmask 261312
      %622 = vst.msk [vmem:[#allocation4] sm:$0xff] %vm621, %v620
      %623 = vst.msk [vmem:[%s564] sm:$0xff] %vm337, %v569
      // Predicated region
      $region37: #{text_decoder_forward.24} parent=31 // pred_check
        %p624 = pneg %p266
      $region38: #{text_decoder_forward.24} parent=31 // pred_check_branch
        %626 = sbr.rel (%p624) target = $region40
      $region39: #{text_decoder_forward.24} parent=31 // pred_region
        %v627 = vld [vmem:[#allocation4] sm:$0xff]
        %v628 = vld [vmem:[#allocation3] sm:$0xff]
        %v629 = vrcp.pop %v628
        %v630 = vmul.f32 %v628, %v629
        %v631 = vsub.f32 1.0, %v630
        %v632 = vmul.f32 %v629, %v631
        %v633 = vadd.f32 %v629, %v632
        %vm634 = vweird.f32 %v628
        %vm635 = vweird.f32 %v629
        %vm636 = vmor %vm634, %vm635
        %v637 = vsel %vm636, %v629, %v633
        %v638 = vand.u32 2147483647, %v628
        %vm639 = vcmp.eq.f32.partialorder %v638, 8.507059e+37
        %v640 = vand.u32 %v628, 2147483648
        %v641 = vor.u32 1.1754944e-38, %v640
        %v642 = vsel %vm639, %v641, %v637
        %v643 = vmul.f32 1.0, %v642
        %645 = vset.pattern.permute.xlu0 0
        %646 = vperm.xlu0 %645, %v643
        %v647 = vpop.permute.xlu0 %646
        %v649 = vmul.f32 %v627, %v647
        %v650 = vld [vmem:[%s415] sm:$0xff]
        %v651 = vrcp.pop %v650
        %v652 = vmul.f32 %v650, %v651
        %v653 = vsub.f32 1.0, %v652
        %v654 = vmul.f32 %v651, %v653
        %v655 = vadd.f32 %v651, %v654
        %vm656 = vweird.f32 %v650
        %vm657 = vweird.f32 %v651
        %vm658 = vmor %vm656, %vm657
        %v659 = vsel %vm658, %v651, %v655
        %v660 = vand.u32 2147483647, %v650
        %vm661 = vcmp.eq.f32.partialorder %v660, 8.507059e+37
        %v662 = vand.u32 %v650, 2147483648
        %v663 = vor.u32 1.1754944e-38, %v662
        %v664 = vsel %vm661, %v663, %v659
        %v665 = vmul.f32 1.0, %v664
        %667 = vset.pattern.permute.xlu0 0
        %668 = vperm.xlu0 %667, %v665
        %v669 = vpop.permute.xlu0 %668
        %v671 = vmul.f32 %v627, %v669
        %v672 = vld [vmem:[%s498] sm:$0xff]
        %v673 = vrcp.pop %v672
        %v674 = vmul.f32 %v672, %v673
        %v675 = vsub.f32 1.0, %v674
        %v676 = vmul.f32 %v673, %v675
        %v677 = vadd.f32 %v673, %v676
        %vm678 = vweird.f32 %v672
        %vm679 = vweird.f32 %v673
        %vm680 = vmor %vm678, %vm679
        %v681 = vsel %vm680, %v673, %v677
        %v682 = vand.u32 2147483647, %v672
        %vm683 = vcmp.eq.f32.partialorder %v682, 8.507059e+37
        %v684 = vand.u32 %v672, 2147483648
        %v685 = vor.u32 1.1754944e-38, %v684
        %v686 = vsel %vm683, %v685, %v681
        %v687 = vmul.f32 1.0, %v686
        %689 = vset.pattern.permute.xlu0 0
        %690 = vperm.xlu0 %689, %v687
        %v691 = vpop.permute.xlu0 %690
        %v693 = vmul.f32 %v627, %v691
        %v694 = vld [vmem:[%s581] sm:$0xff]
        %v695 = vrcp.pop %v694
        %v696 = vmul.f32 %v694, %v695
        %v697 = vsub.f32 1.0, %v696
        %v698 = vmul.f32 %v695, %v697
        %v699 = vadd.f32 %v695, %v698
        %vm700 = vweird.f32 %v694
        %vm701 = vweird.f32 %v695
        %vm702 = vmor %vm700, %vm701
        %v703 = vsel %vm702, %v695, %v699
        %v704 = vand.u32 2147483647, %v694
        %vm705 = vcmp.eq.f32.partialorder %v704, 8.507059e+37
        %v706 = vand.u32 %v694, 2147483648
        %v707 = vor.u32 1.1754944e-38, %v706
        %v708 = vsel %vm705, %v707, %v703
        %v709 = vmul.f32 1.0, %v708
        %711 = vset.pattern.permute.xlu0 0
        %712 = vperm.xlu0 %711, %v709
        %v713 = vpop.permute.xlu0 %712
        %v715 = vmul.f32 %v627, %v713
        %v716 = vsel %vm294, %v649, %v671
        %v717 = vsel %vm315, %v716, %v693
        %vm718 = vcmask 195584
        %v719 = vsel %vm718, %v717, %v715
        %v720 = vpack.c.bf16 %v719, %v719
        %vm721 = vcmask 257024
        %722 = vst.msk [vmem:[%s264] sm:$0xf] %vm721, %v720
      $region40: #{text_decoder_forward.24} parent=31 // pred_fallthru
        _
      %p723 = scmp.lt.s32.totalorder %s19, 1
      %s724 = scalar_select %p723, %s19, 1
      %p725 = scmp.lt.s32.totalorder %s20, 0
      %s726 = scalar_select %p725, %s20, 0
      %s727 = sadd.s32 %s726, %s724
      %s728 = smul.addr %s727, 4
      %s729 = scalar_lea.vmem %s3, %s728
      // Predicated region
      $region41: #{text_decoder_forward.24} parent=31 // pred_check
        %p730 = pneg %p135
      $region42: #{text_decoder_forward.24} parent=31 // pred_check_branch
        %732 = sbr.rel (%p730) target = $region44
      $region43: #{text_decoder_forward.24} parent=31 // pred_region
        _
      $region44: #{text_decoder_forward.24} parent=31 // pred_fallthru
        _
    $region32: #{text_decoder_forward.24} parent=5 // pred_fallthru
      _
    %p733 = scmp.le.s32.totalorder 2, %s9
    // Predicated region
    $region45: #{text_decoder_forward.24} parent=5 // pred_check
      %p734 = pneg %p733
    $region46: #{text_decoder_forward.24} parent=5 // pred_check_branch
      %736 = sbr.rel (%p734) target = $region48
    $region47: #{text_decoder_forward.24} parent=5 // pred_region
      %s737 = ssub.s32 %s9, 2
      // Predicated region
      $region49: #{text_decoder_forward.24} parent=47 // pred_check
        %p738 = pneg %p141
      $region50: #{text_decoder_forward.24} parent=47 // pred_check_branch
        %740 = sbr.rel (%p738) target = $region52
      $region51: #{text_decoder_forward.24} parent=47 // pred_region
        %p741 = scmp.lt.s32.totalorder %s22, 1
        %s742 = scalar_select %p741, %s22, 1
        %p743 = scmp.lt.s32.totalorder %s23, 0
        %s744 = scalar_select %p743, %s23, 0
        %s745 = sadd.s32 %s744, %s742
        %s746 = smul.addr %s745, 4
        %s747 = scalar_lea.vmem %s3, %s746
      $region52: #{text_decoder_forward.24} parent=47 // pred_fallthru
        _
    $region48: #{text_decoder_forward.24} parent=5 // pred_fallthru
      _
  $region6: #{text_decoder_forward.24} parent=0 // loop_footer
    %s13 = sadd.s32 1, %s9
  $region7: #{text_decoder_forward.24} parent=0 // loop_footer_branch
    %8 = sbr.rel target = $region3
  $region8: #{text_decoder_forward.24} parent=0 // loop_exit
    _

// kernel: text_decoder_forward.26
$region0: #{text_decoder_forward.26}
  #allocation0 [shape = 'u32[]', space=smem, size = 0x4, offset = 0x4, fixed_abs, tag = 'smem constant byte address 0x4 - core index']
  #allocation1 [shape = 'u32[72,128]{1,0:T(1,128)}', space=vmem, size = 0x9000, scoped, tag = 'internal scratch']
  #allocation2 [shape = 'f32[16,128]{1,0:T(8,128)}', space=vmem, size = 0x2000, scoped, tag = 'scratch operand']
  #allocation3 [shape = 'bf16[16,32]{1,0:T(8,128)(2,1)}', space=vmem, size = 0x1000, scoped, tag = 'scratch operand']
  %s0 = inlined_call_operand.vmem [shape: f32[16,32], index: 0, kind: input, shape index: {}]
  %s1 = inlined_call_operand.vmem [shape: f32[1,32], index: 1, kind: input, shape index: {}]
  %s2 = inlined_call_operand.vmem [shape: f32[1,32], index: 2, kind: input, shape index: {}]
  %s3 = inlined_call_operand.vmem [shape: bf16[32,128], index: 3, kind: input, shape index: {}]
  %s4 = inlined_call_operand.vmem [shape: f32[1,128], index: 4, kind: input, shape index: {}]
  %s5 = inlined_call_operand.vmem [shape: bf16[16,128], index: 5, kind: output, shape index: {}]
  %s6 = sld [smem:[#allocation0]]
  $region42: #{text_decoder_forward.26} parent=0
    _
  %s8 = ssub.s32 1, %s6
  %s9 = scalar_select 0, %s8, %s6
  // Predicated region
  $region2: #{text_decoder_forward.26} parent=0 // pred_check
    _
  $region3: #{text_decoder_forward.26} parent=0 // pred_check_branch
    %11 = sbr.rel (0) target = $region5
  $region4: #{text_decoder_forward.26} parent=0 // pred_region
    _
  $region5: #{text_decoder_forward.26} parent=0 // pred_fallthru
    _
  // Predicated region
  $region6: #{text_decoder_forward.26} parent=0 // pred_check
    _
  $region7: #{text_decoder_forward.26} parent=0 // pred_check_branch
    %13 = sbr.rel (0) target = $region9
  $region8: #{text_decoder_forward.26} parent=0 // pred_region
    _
  $region9: #{text_decoder_forward.26} parent=0 // pred_fallthru
    _
  // Predicated region
  $region10: #{text_decoder_forward.26} parent=0 // pred_check
    _
  $region11: #{text_decoder_forward.26} parent=0 // pred_check_branch
    %15 = sbr.rel (0) target = $region13
  $region12: #{text_decoder_forward.26} parent=0 // pred_region
    _
  $region13: #{text_decoder_forward.26} parent=0 // pred_fallthru
    _
  // Predicated region
  $region14: #{text_decoder_forward.26} parent=0 // pred_check
    _
  $region15: #{text_decoder_forward.26} parent=0 // pred_check_branch
    %17 = sbr.rel (0) target = $region17
  $region16: #{text_decoder_forward.26} parent=0 // pred_region
    _
  $region17: #{text_decoder_forward.26} parent=0 // pred_fallthru
    _
  // Predicated region
  $region18: #{text_decoder_forward.26} parent=0 // pred_check
    _
  $region19: #{text_decoder_forward.26} parent=0 // pred_check_branch
    %19 = sbr.rel (0) target = $region21
  $region20: #{text_decoder_forward.26} parent=0 // pred_region
    _
  $region21: #{text_decoder_forward.26} parent=0 // pred_fallthru
    _
  %p21 = scmp.eq.s32.totalorder 0, 0
  // Predicated region
  $region22: #{text_decoder_forward.26} parent=0 // pred_check
    %p22 = pneg %p21
  $region23: #{text_decoder_forward.26} parent=0 // pred_check_branch
    %24 = sbr.rel (%p22) target = $region25
  $region24: #{text_decoder_forward.26} parent=0 // pred_region
    %25 = vst [vmem:[#allocation2] sm:$0xff] 0.0
    %26 = vst [vmem:[#allocation2 + $0x8] sm:$0xff] 0.0
  $region25: #{text_decoder_forward.26} parent=0 // pred_fallthru
    _
  %p27 = scmp.eq.s32.totalorder 0, 0
  // Predicated region
  $region26: #{text_decoder_forward.26} parent=0 // pred_check
    %p28 = pneg %p27
  $region27: #{text_decoder_forward.26} parent=0 // pred_check_branch
    %30 = sbr.rel (%p28) target = $region29
  $region28: #{text_decoder_forward.26} parent=0 // pred_region
    %v31 = vld [vmem:[%s0] sm:$0xff]
    %v32 = vld [vmem:[%s0 + $0x8] sm:$0xff]
    %vm33 = vcmask 261120
    %v34 = vsel %vm33, %v31, 0.0
    %35 = vadd.xlane.f32.xlu0 %v34
    %v36 = vpop.xlane.xlu0 %35
    %v37 = vsel %vm33, %v32, 0.0
    %38 = vadd.xlane.f32.xlu0 %v37
    %v39 = vpop.xlane.xlu0 %38
    %v40 = vrcp.pop 32.0
    %v41 = vmul.f32 32.0, %v40
    %v42 = vsub.f32 1.0, %v41
    %v43 = vmul.f32 %v40, %v42
    %v44 = vadd.f32 %v40, %v43
    %vm45 = vweird.f32 %v40
    %v46 = vsel %vm45, %v40, %v44
    %v47 = vmul.f32 %v36, %v46
    %v48 = vmul.f32 %v39, %v46
    %v49 = vsub.f32 %v31, %v47
    %v50 = vsub.f32 %v32, %v48
    %v51 = vmul.f32 %v49, %v49
    %v52 = vmul.f32 %v50, %v50
    %v53 = vsel %vm33, %v51, 0.0
    %54 = vadd.xlane.f32.xlu0 %v53
    %v55 = vpop.xlane.xlu0 %54
    %v56 = vsel %vm33, %v52, 0.0
    %57 = vadd.xlane.f32.xlu0 %v56
    %v58 = vpop.xlane.xlu0 %57
    %v59 = vmul.f32 %v55, %v46
    %v60 = vmul.f32 %v58, %v46
    %v61 = vadd.f32 %v59, 1e-05
    %v62 = vadd.f32 %v60, 1e-05
    %v63 = vrsqrt.pop %v61
    %v64 = vmul.f32 %v63, %v61
    %v65 = vmul.f32 %v64, %v63
    %v66 = vmul.f32 0.5, %v65
    %v67 = vsub.f32 1.5, %v66
    %v68 = vmul.f32 %v63, %v67
    %vm69 = vweird.f32 %v61
    %vm70 = vweird.f32 %v63
    %vm71 = vmor %vm69, %vm70
    %v72 = vsel %vm71, %v63, %v68
    %v73 = vrsqrt.pop %v62
    %v74 = vmul.f32 %v73, %v62
    %v75 = vmul.f32 %v74, %v73
    %v76 = vmul.f32 0.5, %v75
    %v77 = vsub.f32 1.5, %v76
    %v78 = vmul.f32 %v73, %v77
    %vm79 = vweird.f32 %v62
    %vm80 = vweird.f32 %v73
    %vm81 = vmor %vm79, %vm80
    %v82 = vsel %vm81, %v73, %v78
    %v83 = vmul.f32 %v49, %v72
    %v84 = vmul.f32 %v50, %v82
    %v85 = vld [vmem:[%s1] sm:$0x1]
    %v87 = vperm.slane %v85, 0
    %v89 = vmul.f32 %v83, %v87
    %v90 = vmul.f32 %v84, %v87
    %v91 = vld [vmem:[%s2] sm:$0x1]
    %v93 = vperm.slane %v91, 0
    %v95 = vadd.f32 %v89, %v93
    %v96 = vadd.f32 %v90, %v93
    %v97 = vpack.c.bf16 %v95, %v95
    %v98 = vpack.c.bf16 %v96, %v96
    %vm99 = vcmask 257024
    %100 = vst.msk [vmem:[#allocation3] sm:$0xf] %vm99, %v97
    %101 = vst.msk [vmem:[#allocation3 + $0x4] sm:$0xf] %vm99, %v98
  $region29: #{text_decoder_forward.26} parent=0 // pred_fallthru
    _
  %v102 = vld [vmem:[#allocation3] sm:$0xf]
  %v103 = vld [vmem:[#allocation3 + $0x4] sm:$0xf]
  %v104 = vld [vmem:[#allocation2] sm:$0xff]
  %v105 = vld [vmem:[#allocation2 + $0x8] sm:$0xff]
  %v106 = vld [vmem:[%s3] sm:$0xf]
  %v107 = vld [vmem:[%s3 + $0x4] sm:$0xf]
  %v108 = vld [vmem:[%s3 + $0x8] sm:$0xf]
  %v109 = vld [vmem:[%s3 + $0xc] sm:$0xf]
  %v112 = vunpack.c.l.b16 %v102
  %v113 = vunpack.c.l.b16 %v103
  %v114 = vpack.c.b16 %v113, %v112
  %v119 = vunpack.c.l.b16 %v106
  %v120 = vunpack.c.l.b16 %v107
  %v121 = vunpack.c.l.b16 %v108
  %v122 = vunpack.c.l.b16 %v109
  %v123 = vpack.c.b16 %v120, %v119
  %v124 = vpack.c.b16 %v122, %v121
  %vm127 = vcmask 261120
  %v129 = vsel %vm127, %v114, 0
  %131 = vmatpush.bf16.msra.mxu0 0
  %132 = vmatpush.bf16.msra.mxu0 0
  %133 = vmatpush.bf16.msra.mxu0 0
  %134 = vmatpush.bf16.msra.mxu0 0
  %135 = vmatpush.bf16.msra.mxu0 0
  %136 = vmatpush.bf16.msra.mxu0 0
  %137 = vmatpush.bf16.msra.mxu0 %v124
  %138 = vmatpush.bf16.msra.mxu0 %v123
  %139 = vmatmul.bf16.gmra.mxu0 %v129
  %v140 = vpop.f32.mrf.mxu0
  %v141 = vadd.f32 0.0, %v140
  %v142 = vpop.f32.mrf.mxu0
  %v143 = vadd.f32 0.0, %v142
  %144 = vdwg.mxu0
  %v145 = vadd.f32 %v104, %v141
  %v146 = vadd.f32 %v105, %v143
  %147 = vst [vmem:[#allocation2] sm:$0xff] %v145
  %148 = vst [vmem:[#allocation2 + $0x8] sm:$0xff] %v146
  // Predicated region
  $region30: #{text_decoder_forward.26} parent=0 // pred_check
    %p149 = pneg %p21
  $region31: #{text_decoder_forward.26} parent=0 // pred_check_branch
    %151 = sbr.rel (%p149) target = $region33
  $region32: #{text_decoder_forward.26} parent=0 // pred_region
    %v152 = vld [vmem:[#allocation2] sm:$0xff]
    %v153 = vld [vmem:[#allocation2 + $0x8] sm:$0xff]
    %v154 = vld [vmem:[%s4] sm:$0x1]
    %v156 = vperm.slane %v154, 0
    %v158 = vadd.f32 %v152, %v156
    %v159 = vadd.f32 %v153, %v156
    %v160 = vmul.f32 %v158, 0.5
    %v161 = vmul.f32 %v159, 0.5
    %v162 = vmul.f32 %v158, 0.70710677
    %v163 = vmul.f32 %v159, 0.70710677
    %v164 = vand.u32 2147483647, %v162
    %v165 = vand.u32 2147483647, %v163
    %v166 = vmul.f32 %v164, 0.3275911
    %v167 = vmul.f32 %v165, 0.3275911
    %v168 = vadd.f32 %v166, 1.0
    %v169 = vadd.f32 %v167, 1.0
    %v170 = vrcp.pop %v168
    %v171 = vmul.f32 %v168, %v170
    %v172 = vsub.f32 1.0, %v171
    %v173 = vmul.f32 %v170, %v172
    %v174 = vadd.f32 %v170, %v173
    %vm175 = vweird.f32 %v168
    %vm176 = vweird.f32 %v170
    %vm177 = vmor %vm175, %vm176
    %v178 = vsel %vm177, %v170, %v174
    %v179 = vand.u32 2147483647, %v168
    %vm180 = vcmp.eq.f32.partialorder %v179, 8.507059e+37
    %v181 = vand.u32 %v168, 2147483648
    %v182 = vor.u32 1.1754944e-38, %v181
    %v183 = vsel %vm180, %v182, %v178
    %v184 = vmul.f32 1.0, %v183
    %v185 = vrcp.pop %v169
    %v186 = vmul.f32 %v169, %v185
    %v187 = vsub.f32 1.0, %v186
    %v188 = vmul.f32 %v185, %v187
    %v189 = vadd.f32 %v185, %v188
    %vm190 = vweird.f32 %v169
    %vm191 = vweird.f32 %v185
    %vm192 = vmor %vm190, %vm191
    %v193 = vsel %vm192, %v185, %v189
    %v194 = vand.u32 2147483647, %v169
    %vm195 = vcmp.eq.f32.partialorder %v194, 8.507059e+37
    %v196 = vand.u32 %v169, 2147483648
    %v197 = vor.u32 1.1754944e-38, %v196
    %v198 = vsel %vm195, %v197, %v193
    %v199 = vmul.f32 1.0, %v198
    %v200 = vmul.f32 %v184, 1.0614054
    %v201 = vmul.f32 %v199, 1.0614054
    %v202 = vadd.f32 %v200, -1.4531521
    %v203 = vadd.f32 %v201, -1.4531521
    %v204 = vmul.f32 %v202, %v184
    %v205 = vmul.f32 %v203, %v199
    %v206 = vadd.f32 %v204, 1.4214138
    %v207 = vadd.f32 %v205, 1.4214138
    %v208 = vmul.f32 %v206, %v184
    %v209 = vmul.f32 %v207, %v199
    %v210 = vadd.f32 %v208, -0.28449672
    %v211 = vadd.f32 %v209, -0.28449672
    %v212 = vmul.f32 %v210, %v184
    %v213 = vmul.f32 %v211, %v199
    %v214 = vadd.f32 %v212, 0.2548296
    %v215 = vadd.f32 %v213, 0.2548296
    %v216 = vmul.f32 %v214, %v184
    %v217 = vmul.f32 %v215, %v199
    %v218 = vsub.f32 0.0, %v164
    %v219 = vsub.f32 0.0, %v165
    %v220 = vmul.f32 %v218, %v164
    %v221 = vmul.f32 %v219, %v165
    %v222 = vmul.f32 %v220, 1.442695
    %v223 = vpow.pop %v222
    %v224 = vmul.f32 %v221, 1.442695
    %v225 = vpow.pop %v224
    %v226 = vmul.f32 %v216, %v223
    %v227 = vmul.f32 %v217, %v225
    %v228 = vsub.f32 1.0, %v226
    %v229 = vsub.f32 1.0, %v227
    %vm230 = vcmp.ge.f32.partialorder %v162, 0.0
    %vm231 = vcmp.ge.f32.partialorder %v163, 0.0
    %v232 = vsub.f32 0.0, %v228
    %v233 = vsub.f32 0.0, %v229
    %v234 = vsel %vm230, %v228, %v232
    %v235 = vsel %vm231, %v229, %v233
    %v236 = vadd.f32 %v234, 1.0
    %v237 = vadd.f32 %v235, 1.0
    %v238 = vmul.f32 %v160, %v236
    %v239 = vmul.f32 %v161, %v237
    %v240 = vpack.c.bf16 %v238, %v238
    %v241 = vpack.c.bf16 %v239, %v239
    %242 = vst [vmem:[%s5] sm:$0xf] %v240
    %243 = vst [vmem:[%s5 + $0x4] sm:$0xf] %v241
  $region33: #{text_decoder_forward.26} parent=0 // pred_fallthru
    _
  // Predicated region
  $region34: #{text_decoder_forward.26} parent=0 // pred_check
    _
  $region35: #{text_decoder_forward.26} parent=0 // pred_check_branch
    %245 = sbr.rel (0) target = $region37
  $region36: #{text_decoder_forward.26} parent=0 // pred_region
    _
  $region37: #{text_decoder_forward.26} parent=0 // pred_fallthru
    _
  // Predicated region
  $region38: #{text_decoder_forward.26} parent=0 // pred_check
    _
  $region39: #{text_decoder_forward.26} parent=0 // pred_check_branch
    %247 = sbr.rel (0) target = $region41
  $region40: #{text_decoder_forward.26} parent=0 // pred_region
    _
  $region41: #{text_decoder_forward.26} parent=0 // pred_fallthru
    _

// kernel: text_decoder_forward.37
$region0: #{text_decoder_forward.37}
  #allocation0 [shape = 'u32[]', space=smem, size = 0x4, offset = 0x4, fixed_abs, tag = 'smem constant byte address 0x4 - core index']
  #allocation1 [shape = 'u32[72,128]{1,0:T(1,128)}', space=vmem, size = 0x9000, scoped, tag = 'internal scratch']
  #allocation2 [shape = 'f32[16,64]{1,0:T(8,128)}', space=vmem, size = 0x2000, scoped, tag = 'scratch operand']
  #allocation3 [shape = 'bf16[16,32]{1,0:T(8,128)(2,1)}', space=vmem, size = 0x1000, scoped, tag = 'scratch operand']
  %s0 = inlined_call_operand.vmem [shape: f32[16,32], index: 0, kind: input, shape index: {}]
  %s1 = inlined_call_operand.vmem [shape: f32[1,32], index: 1, kind: input, shape index: {}]
  %s2 = inlined_call_operand.vmem [shape: f32[1,32], index: 2, kind: input, shape index: {}]
  %s3 = inlined_call_operand.vmem [shape: bf16[32,64], index: 3, kind: input, shape index: {}]
  %s4 = inlined_call_operand.vmem [shape: f32[1,64], index: 4, kind: input, shape index: {}]
  %s5 = inlined_call_operand.hbm [shape: f32[16,64], index: 5, kind: output, shape index: {}]
  %s6 = sld [smem:[#allocation0]]
  $region42: #{text_decoder_forward.37} parent=0
    _
  %s8 = ssub.s32 1, %s6
  %s9 = scalar_select 0, %s8, %s6
  $region1: #{text_decoder_forward.37} parent=0
    #allocation4 [shape = 'u8[8192]{0}', space=vmem, size = 0x2000, scoped, tag = 'output window, operand 0, single buffered']
    #allocation5 [shape = 's32[1]{0}', space=sflag, size = 0x4, scoped, tag = 'scoped memory for text_decoder_forward.37']
    %10 = vsyncpa [#allocation5], 0
    // Predicated region
    $region2: #{text_decoder_forward.37} parent=1 // pred_check
      _
    $region3: #{text_decoder_forward.37} parent=1 // pred_check_branch
      %12 = sbr.rel (0) target = $region5
    $region4: #{text_decoder_forward.37} parent=1 // pred_region
      _
    $region5: #{text_decoder_forward.37} parent=1 // pred_fallthru
      _
    // Predicated region
    $region6: #{text_decoder_forward.37} parent=1 // pred_check
      _
    $region7: #{text_decoder_forward.37} parent=1 // pred_check_branch
      %14 = sbr.rel (0) target = $region9
    $region8: #{text_decoder_forward.37} parent=1 // pred_region
      _
    $region9: #{text_decoder_forward.37} parent=1 // pred_fallthru
      _
    // Predicated region
    $region10: #{text_decoder_forward.37} parent=1 // pred_check
      _
    $region11: #{text_decoder_forward.37} parent=1 // pred_check_branch
      %16 = sbr.rel (0) target = $region13
    $region12: #{text_decoder_forward.37} parent=1 // pred_region
      _
    $region13: #{text_decoder_forward.37} parent=1 // pred_fallthru
      _
    // Predicated region
    $region14: #{text_decoder_forward.37} parent=1 // pred_check
      _
    $region15: #{text_decoder_forward.37} parent=1 // pred_check_branch
      %18 = sbr.rel (0) target = $region17
    $region16: #{text_decoder_forward.37} parent=1 // pred_region
      _
    $region17: #{text_decoder_forward.37} parent=1 // pred_fallthru
      _
    // Predicated region
    $region18: #{text_decoder_forward.37} parent=1 // pred_check
      _
    $region19: #{text_decoder_forward.37} parent=1 // pred_check_branch
      %20 = sbr.rel (0) target = $region21
    $region20: #{text_decoder_forward.37} parent=1 // pred_region
      _
    $region21: #{text_decoder_forward.37} parent=1 // pred_fallthru
      _
    %p22 = scmp.eq.s32.totalorder 0, 0
    // Predicated region
    $region22: #{text_decoder_forward.37} parent=1 // pred_check
      %p23 = pneg %p22
    $region23: #{text_decoder_forward.37} parent=1 // pred_check_branch
      %25 = sbr.rel (%p23) target = $region25
    $region24: #{text_decoder_forward.37} parent=1 // pred_region
      %vm26 = vcmask 523264
      %27 = vst.msk [vmem:[#allocation2] sm:$0xff] %vm26, 0.0
      %28 = vst.msk [vmem:[#allocation2 + $0x8] sm:$0xff] %vm26, 0.0
    $region25: #{text_decoder_forward.37} parent=1 // pred_fallthru
      _
    %p29 = scmp.eq.s32.totalorder 0, 0
    // Predicated region
    $region26: #{text_decoder_forward.37} parent=1 // pred_check
      %p30 = pneg %p29
    $region27: #{text_decoder_forward.37} parent=1 // pred_check_branch
      %32 = sbr.rel (%p30) target = $region29
    $region28: #{text_decoder_forward.37} parent=1 // pred_region
      %v33 = vld [vmem:[%s0] sm:$0xff]
      %v34 = vld [vmem:[%s0 + $0x8] sm:$0xff]
      %vm35 = vcmask 261120
      %v36 = vsel %vm35, %v33, 0.0
      %37 = vadd.xlane.f32.xlu0 %v36
      %v38 = vpop.xlane.xlu0 %37
      %v39 = vsel %vm35, %v34, 0.0
      %40 = vadd.xlane.f32.xlu0 %v39
      %v41 = vpop.xlane.xlu0 %40
      %v42 = vrcp.pop 32.0
      %v43 = vmul.f32 32.0, %v42
      %v44 = vsub.f32 1.0, %v43
      %v45 = vmul.f32 %v42, %v44
      %v46 = vadd.f32 %v42, %v45
      %vm47 = vweird.f32 %v42
      %v48 = vsel %vm47, %v42, %v46
      %v49 = vmul.f32 %v38, %v48
      %v50 = vmul.f32 %v41, %v48
      %v51 = vsub.f32 %v33, %v49
      %v52 = vsub.f32 %v34, %v50
      %v53 = vmul.f32 %v51, %v51
      %v54 = vmul.f32 %v52, %v52
      %v55 = vsel %vm35, %v53, 0.0
      %56 = vadd.xlane.f32.xlu0 %v55
      %v57 = vpop.xlane.xlu0 %56
      %v58 = vsel %vm35, %v54, 0.0
      %59 = vadd.xlane.f32.xlu0 %v58
      %v60 = vpop.xlane.xlu0 %59
      %v61 = vmul.f32 %v57, %v48
      %v62 = vmul.f32 %v60, %v48
      %v63 = vadd.f32 %v61, 1e-05
      %v64 = vadd.f32 %v62, 1e-05
      %v65 = vrsqrt.pop %v63
      %v66 = vmul.f32 %v65, %v63
      %v67 = vmul.f32 %v66, %v65
      %v68 = vmul.f32 0.5, %v67
      %v69 = vsub.f32 1.5, %v68
      %v70 = vmul.f32 %v65, %v69
      %vm71 = vweird.f32 %v63
      %vm72 = vweird.f32 %v65
      %vm73 = vmor %vm71, %vm72
      %v74 = vsel %vm73, %v65, %v70
      %v75 = vrsqrt.pop %v64
      %v76 = vmul.f32 %v75, %v64
      %v77 = vmul.f32 %v76, %v75
      %v78 = vmul.f32 0.5, %v77
      %v79 = vsub.f32 1.5, %v78
      %v80 = vmul.f32 %v75, %v79
      %vm81 = vweird.f32 %v64
      %vm82 = vweird.f32 %v75
      %vm83 = vmor %vm81, %vm82
      %v84 = vsel %vm83, %v75, %v80
      %v85 = vmul.f32 %v51, %v74
      %v86 = vmul.f32 %v52, %v84
      %v87 = vld [vmem:[%s1] sm:$0x1]
      %v89 = vperm.slane %v87, 0
      %v91 = vmul.f32 %v85, %v89
      %v92 = vmul.f32 %v86, %v89
      %v93 = vld [vmem:[%s2] sm:$0x1]
      %v95 = vperm.slane %v93, 0
      %v97 = vadd.f32 %v91, %v95
      %v98 = vadd.f32 %v92, %v95
      %v99 = vpack.c.bf16 %v97, %v97
      %v100 = vpack.c.bf16 %v98, %v98
      %vm101 = vcmask 257024
      %102 = vst.msk [vmem:[#allocation3] sm:$0xf] %vm101, %v99
      %103 = vst.msk [vmem:[#allocation3 + $0x4] sm:$0xf] %vm101, %v100
    $region29: #{text_decoder_forward.37} parent=1 // pred_fallthru
      _
    %v104 = vld [vmem:[#allocation3] sm:$0xf]
    %v105 = vld [vmem:[#allocation3 + $0x4] sm:$0xf]
    %v106 = vld [vmem:[#allocation2] sm:$0xff]
    %v107 = vld [vmem:[#allocation2 + $0x8] sm:$0xff]
    %v108 = vld [vmem:[%s3] sm:$0xf]
    %v109 = vld [vmem:[%s3 + $0x4] sm:$0xf]
    %v110 = vld [vmem:[%s3 + $0x8] sm:$0xf]
    %v111 = vld [vmem:[%s3 + $0xc] sm:$0xf]
    %v114 = vunpack.c.l.b16 %v104
    %v115 = vunpack.c.l.b16 %v105
    %v116 = vpack.c.b16 %v115, %v114
    %v121 = vunpack.c.l.b16 %v108
    %v122 = vunpack.c.l.b16 %v109
    %v123 = vunpack.c.l.b16 %v110
    %v124 = vunpack.c.l.b16 %v111
    %v125 = vpack.c.b16 %v122, %v121
    %v126 = vpack.c.b16 %v124, %v123
    %vm129 = vcmask 261120
    %v131 = vsel %vm129, %v116, 0
    %133 = vmatpush.bf16.msra.mxu0 0
    %134 = vmatpush.bf16.msra.mxu0 0
    %135 = vmatpush.bf16.msra.mxu0 0
    %136 = vmatpush.bf16.msra.mxu0 0
    %137 = vmatpush.bf16.msra.mxu0 0
    %138 = vmatpush.bf16.msra.mxu0 0
    %139 = vmatpush.bf16.msra.mxu0 %v126
    %140 = vmatpush.bf16.msra.mxu0 %v125
    %141 = vmatmul.bf16.gmra.mxu0 %v131
    %v142 = vpop.f32.mrf.mxu0
    %v143 = vadd.f32 0.0, %v142
    %v144 = vpop.f32.mrf.mxu0
    %v145 = vadd.f32 0.0, %v144
    %146 = vdwg.mxu0
    %v147 = vadd.f32 %v106, %v143
    %v148 = vadd.f32 %v107, %v145
    %vm149 = vcmask 523264
    %150 = vst.msk [vmem:[#allocation2] sm:$0xff] %vm149, %v147
    %151 = vst.msk [vmem:[#allocation2 + $0x8] sm:$0xff] %vm149, %v148
    // Predicated region
    $region30: #{text_decoder_forward.37} parent=1 // pred_check
      %p152 = pneg %p22
    $region31: #{text_decoder_forward.37} parent=1 // pred_check_branch
      %154 = sbr.rel (%p152) target = $region33
    $region32: #{text_decoder_forward.37} parent=1 // pred_region
      %v155 = vld [vmem:[#allocation2] sm:$0xff]
      %v156 = vld [vmem:[#allocation2 + $0x8] sm:$0xff]
      %v157 = vld [vmem:[%s4] sm:$0x1]
      %v159 = vperm.slane %v157, 0
      %v161 = vadd.f32 %v155, %v159
      %v162 = vadd.f32 %v156, %v159
      %163 = vst.msk [vmem:[#allocation4] sm:$0xff] %vm149, %v161
      %164 = vst.msk [vmem:[#allocation4 + $0x8] sm:$0xff] %vm149, %v162
    $region33: #{text_decoder_forward.37} parent=1 // pred_fallthru
      _
    // Predicated region
    $region34: #{text_decoder_forward.37} parent=1 // pred_check
      _
    $region35: #{text_decoder_forward.37} parent=1 // pred_check_branch
      %166 = sbr.rel (0) target = $region37
    $region36: #{text_decoder_forward.37} parent=1 // pred_region
      %168 = vsyncadd [#allocation5], 0
      %s169 = sshll.u32 [#allocation4], 4
      %s170 = int_to_ptr.vmem [resolvable:$true] %s169
      %s171 = sshll.u32 %s5, 4
      %s172 = int_to_ptr.hbm [resolvable:$true] %s171
      %177 = dma.vmem_to_hbm [thread:$0]  %s170, 256, %s172, [#allocation5], 128, 128, 8
    $region37: #{text_decoder_forward.37} parent=1 // pred_fallthru
      _
    // Predicated region
    $region38: #{text_decoder_forward.37} parent=1 // pred_check
      _
    $region39: #{text_decoder_forward.37} parent=1 // pred_check_branch
      %179 = sbr.rel (0) target = $region41
    $region40: #{text_decoder_forward.37} parent=1 // pred_region
      %181 = dma.done [#allocation5], 256
    $region41: #{text_decoder_forward.37} parent=1 // pred_fallthru
      _
    %182 = vsyncpa [#allocation5], 1

</llo_original>
